<compile_context>
chip_gen: v7x
topology: tpu7x:2x2x1
jax: 0.10.0
libtpu: 0.0.40
codegen_flags: <defaults>
</compile_context>

<pallas_src>
import math

import jax
import jax.numpy as jnp
from jax.experimental import pallas as pl
from jax.experimental.pallas import tpu as pltpu

# ----------------------- ViT config (small, consistent with the module) ------
IMG = 16          # img_size
PATCH = 4         # patch size
IN_CH = 3         # conv in_channels=3
HIDDEN = 32       # config.hidden_size
NUM_HEADS = 4     # config.transformer['num_heads']
HEAD_DIM = HIDDEN // NUM_HEADS
MLP_DIM = 64      # config.transformer['mlp_dim']
NUM_LAYERS = 2    # config.transformer['num_layers']
CODE_SIZE = 8     # params.code_size (out_features of head)
N_PATCHES = (IMG // PATCH) * (IMG // PATCH)
SEQ = 1 + N_PATCHES
CPP = IN_CH * PATCH * PATCH
LN_EPS = 1e-6


# ----------------------- small in-kernel helpers ------------------------------
def _layer_norm(x, w, b):
    # x: (S, H); w, b: (1, H).  PyTorch LayerNorm (biased variance), eps=1e-6.
    mean = jnp.mean(x, axis=-1, keepdims=True)
    var = jnp.mean(jnp.square(x - mean), axis=-1, keepdims=True)
    return (x - mean) * jax.lax.rsqrt(var + LN_EPS) * w + b


def _gelu(x):
    # TODO(synk): PyTorch F.gelu defaults to exact erf-GELU; erf has no clean
    # Mosaic lowering, so we use the tanh approximation (max abs diff ~1e-3).
    c = math.sqrt(2.0 / math.pi)
    return 0.5 * x * (1.0 + jnp.tanh(c * (x + 0.044715 * x * x * x)))


# ----------------------- fused ViT kernel -------------------------------------
def fused_vit_kernel(
    patches_ref,            # (1, SEQ, CPP)   row 0 is zeros (cls slot)
    patch_w_ref,            # (CPP, HIDDEN)
    pos_full_ref,           # (SEQ, HIDDEN)   row 0 = cls+pos0, rows 1: = pos+conv_bias
    ln_wb_ref,              # (L, 4, HIDDEN)  rows: ln1_w, ln1_b, ln2_w, ln2_b
    wqkv_ref, bqkv_ref,     # (L, HIDDEN, 3H), (L, 1, 3H)   (attn scale folded into Q)
    wo_ref, bo_ref,         # (L, HIDDEN, HIDDEN), (L, 1, HIDDEN)
    w1_ref, b1_ref,         # (L, HIDDEN, MLP_DIM), (L, 1, MLP_DIM)
    w2_ref, b2_ref,         # (L, MLP_DIM, HIDDEN), (L, 1, HIDDEN)
    enc_ln_w_ref, enc_ln_b_ref,   # (1, HIDDEN)
    head_w_ref, head_b_ref,       # (HIDDEN, CODE_SIZE), (1, CODE_SIZE)
    out_ref,                # (1, 1, CODE_SIZE)
):
    """Full ViT forward for one image; everything stays resident on-chip."""
    # --- patch embedding (conv w/ kernel==stride == matmul) + cls + pos ------
    x = (
        jnp.dot(patches_ref[0], patch_w_ref[...],
                preferred_element_type=jnp.float32)
        + pos_full_ref[...]
    )                                                        # (SEQ, HIDDEN)
    # dropout layers are identities (eval mode)

    for l in range(NUM_LAYERS):                              # static unroll (L=2)
        ln = ln_wb_ref[l]                                    # (4, HIDDEN)

        # ---- attention (pre-norm, residual) ----
        res = x
        xn = _layer_norm(x, ln[0:1], ln[1:2])
        qkv = (
            jnp.dot(xn, wqkv_ref[l], preferred_element_type=jnp.float32)
            + bqkv_ref[l]
        )                                                    # (SEQ, 3H)
        wo_l = wo_ref[l]                                     # (HIDDEN, HIDDEN)

        acc = None
        for h in range(NUM_HEADS):
            q_off = h * HEAD_DIM
            k_off = HIDDEN + h * HEAD_DIM
            v_off = 2 * HIDDEN + h * HEAD_DIM
            qh = qkv[:, q_off:q_off + HEAD_DIM]              # (SEQ, HD), pre-scaled
            kh = qkv[:, k_off:k_off + HEAD_DIM]
            vh = qkv[:, v_off:v_off + HEAD_DIM]

            s = jnp.dot(qh, kh.T, preferred_element_type=jnp.float32)  # (SEQ, SEQ)
            s = s - jnp.max(s, axis=-1, keepdims=True)
            p = jnp.exp(s)
            p = p * pl.reciprocal(jnp.sum(p, axis=-1, keepdims=True), approx=True)

            ctx = jnp.dot(p, vh, preferred_element_type=jnp.float32)   # (SEQ, HD)
            # fold head context straight into the output projection (no concat)
            contrib = jnp.dot(ctx, wo_l[h * HEAD_DIM:(h + 1) * HEAD_DIM, :],
                              preferred_element_type=jnp.float32)      # (SEQ, H)
            acc = contrib if acc is None else acc + contrib

        x = res + acc + bo_ref[l]

        # ---- MLP (pre-norm, residual) ----
        res = x
        xn = _layer_norm(x, ln[2:3], ln[3:4])
        y = jnp.dot(xn, w1_ref[l], preferred_element_type=jnp.float32) + b1_ref[l]
        y = _gelu(y)
        y = jnp.dot(y, w2_ref[l], preferred_element_type=jnp.float32) + b2_ref[l]
        x = res + y

    # --- encoder_norm + head + tanh on the cls token -------------------------
    cls = x[0:1, :]                                          # (1, HIDDEN)
    cls_n = _layer_norm(cls, enc_ln_w_ref[...], enc_ln_b_ref[...])
    logits = (
        jnp.dot(cls_n, head_w_ref[...], preferred_element_type=jnp.float32)
        + head_b_ref[...]
    )                                                        # (1, CODE_SIZE)
    out_ref[0] = jnp.tanh(logits)


# ----------------------- wrapper ----------------------------------------------
@jax.jit
def retrieval_model_forward(image, params):
    """image: (B, C, H, W) NCHW float32 -> (B, CODE_SIZE) tanh codes."""
    B = image.shape[0]
    gh = gw = IMG // PATCH

    # patch extraction (layout-only glue): NCHW -> (B, SEQ, C*p*p), row 0 = zeros
    patches = image.reshape(B, IN_CH, gh, PATCH, gw, PATCH)
    patches = patches.transpose(0, 2, 4, 1, 3, 5).reshape(B, N_PATCHES, CPP)
    patches = jnp.concatenate(
        [jnp.zeros((B, 1, CPP), jnp.float32), patches], axis=1)   # (B, SEQ, CPP)

    const2d = lambda shape: pl.BlockSpec(shape, lambda b: (0, 0))
    const3d = lambda shape: pl.BlockSpec(shape, lambda b: (0, 0, 0))

    in_specs = [
        pl.BlockSpec((1, SEQ, CPP), lambda b: (b, 0, 0)),          # patches
        const2d((CPP, HIDDEN)),                                    # patch_w
        const2d((SEQ, HIDDEN)),                                    # pos_full
        const3d((NUM_LAYERS, 4, HIDDEN)),                          # ln_wb
        const3d((NUM_LAYERS, HIDDEN, 3 * HIDDEN)),                 # wqkv
        const3d((NUM_LAYERS, 1, 3 * HIDDEN)),                      # bqkv
        const3d((NUM_LAYERS, HIDDEN, HIDDEN)),                     # wo
        const3d((NUM_LAYERS, 1, HIDDEN)),                          # bo
        const3d((NUM_LAYERS, HIDDEN, MLP_DIM)),                    # w1
        const3d((NUM_LAYERS, 1, MLP_DIM)),                         # b1
        const3d((NUM_LAYERS, MLP_DIM, HIDDEN)),                    # w2
        const3d((NUM_LAYERS, 1, HIDDEN)),                          # b2
        const2d((1, HIDDEN)),                                      # enc_ln_w
        const2d((1, HIDDEN)),                                      # enc_ln_b
        const2d((HIDDEN, CODE_SIZE)),                              # head_w
        const2d((1, CODE_SIZE)),                                   # head_b
    ]
    out_spec = pl.BlockSpec((1, 1, CODE_SIZE), lambda b: (b, 0, 0))

    out = pl.pallas_call(
        fused_vit_kernel,
        out_shape=jax.ShapeDtypeStruct((B, 1, CODE_SIZE), jnp.float32),
        grid_spec=pltpu.PrefetchScalarGridSpec(
            num_scalar_prefetch=0,
            grid=(B,),
            in_specs=in_specs,
            out_specs=out_spec,
        ),
        compiler_params=pltpu.CompilerParams(
            dimension_semantics=("parallel",),   # v7x: one image per TensorCore
        ),
    )(
        patches,
        params["patch_w"], params["pos_full"],
        params["ln_wb"], params["wqkv"], params["bqkv"],
        params["wo"], params["bo"],
        params["w1"], params["b1"], params["w2"], params["b2"],
        params["enc_ln_w"], params["enc_ln_b"],
        params["head_w"], params["head_b"],
    )
    return out.reshape(B, CODE_SIZE)


# ----------------------- parameter init (deterministic, synthetic) -----------
def init_params(key):
    ks = iter(jax.random.split(key, 64))
    nrm = lambda shape, s=0.02: (s * jax.random.normal(next(ks), shape)).astype(
        jnp.float32
    )
    attn_scale = 1.0 / math.sqrt(HEAD_DIM)

    # patch embedding conv weight (hidden, C, p, p) flattened (c,ph,pw) -> (CPP, HIDDEN)
    patch_w = nrm((CPP, HIDDEN))
    patch_b = nrm((HIDDEN,))
    cls_token = nrm((1, HIDDEN))
    pos_emb = nrm((SEQ, HIDDEN))
    # fold cls token + conv bias into a single positional-add tensor:
    #   row 0  : cls_token + pos[0]          (patch row 0 is zero-padded)
    #   rows 1:: pos[1:] + conv bias
    pos_full = jnp.concatenate(
        [cls_token + pos_emb[0:1], pos_emb[1:] + patch_b[None, :]], axis=0)

    ln_wb, wqkv, bqkv, wo, bo, w1, b1, w2, b2 = ([] for _ in range(9))
    for _ in range(NUM_LAYERS):
        ln_wb.append(jnp.stack([
            jnp.ones(HIDDEN, jnp.float32), jnp.zeros(HIDDEN, jnp.float32),
            jnp.ones(HIDDEN, jnp.float32), jnp.zeros(HIDDEN, jnp.float32)]))
        wq, wk, wv = nrm((HIDDEN, HIDDEN)), nrm((HIDDEN, HIDDEN)), nrm((HIDDEN, HIDDEN))
        bq, bk, bv = nrm((HIDDEN,)), nrm((HIDDEN,)), nrm((HIDDEN,))
        # fold the 1/sqrt(head_dim) attention scale into the Q projection
        # (applied exactly once, here and nowhere in the kernel).
        wqkv.append(jnp.concatenate([wq * attn_scale, wk, wv], axis=1))
        bqkv.append(jnp.concatenate([bq * attn_scale, bk, bv])[None, :])
        wo.append(nrm((HIDDEN, HIDDEN)))
        bo.append(nrm((HIDDEN,))[None, :])
        w1.append(nrm((HIDDEN, MLP_DIM)))
        b1.append(nrm((MLP_DIM,), 1e-6)[None, :])
        w2.append(nrm((MLP_DIM, HIDDEN)))
        b2.append(nrm((HIDDEN,), 1e-6)[None, :])

    return dict(
        patch_w=patch_w,
        pos_full=pos_full,
        ln_wb=jnp.stack(ln_wb),
        wqkv=jnp.stack(wqkv), bqkv=jnp.stack(bqkv),
        wo=jnp.stack(wo), bo=jnp.stack(bo),
        w1=jnp.stack(w1), b1=jnp.stack(b1),
        w2=jnp.stack(w2), b2=jnp.stack(b2),
        enc_ln_w=jnp.ones((1, HIDDEN), jnp.float32),
        enc_ln_b=jnp.zeros((1, HIDDEN), jnp.float32),
        head_w=nrm((HIDDEN, CODE_SIZE)),
        head_b=nrm((CODE_SIZE,))[None, :],
    )


# ----------------------- main -------------------------------------------------
if __name__ == "__main__":
    key = jax.random.PRNGKey(0)
    k_img, k_par = jax.random.split(key)
    image = jax.random.normal(k_img, (2, IN_CH, IMG, IMG), dtype=jnp.float32)
    params = init_params(k_par)

    out = retrieval_model_forward(image, params)
    out = jax.block_until_ready(out)
    assert out.shape == (2, CODE_SIZE)
    assert bool(jnp.all(jnp.isfinite(out)))
    assert bool(jnp.all(jnp.abs(out) <= 1.0))   # tanh range
    print("KERNEL_OK")
</pallas_src>

<mosaic_0001>
module attributes {stable_mosaic.version = 11 : i64} {
  func.func @fused_vit_kernel(%arg0: i32, %arg1: memref<1x17x48xf32, #tpu.memory_space<vmem>>, %arg2: memref<48x32xf32, #tpu.memory_space<vmem>>, %arg3: memref<17x32xf32, #tpu.memory_space<vmem>>, %arg4: memref<2x4x32xf32, #tpu.memory_space<vmem>>, %arg5: memref<2x32x96xf32, #tpu.memory_space<vmem>>, %arg6: memref<2x1x96xf32, #tpu.memory_space<vmem>>, %arg7: memref<2x32x32xf32, #tpu.memory_space<vmem>>, %arg8: memref<2x1x32xf32, #tpu.memory_space<vmem>>, %arg9: memref<2x32x64xf32, #tpu.memory_space<vmem>>, %arg10: memref<2x1x64xf32, #tpu.memory_space<vmem>>, %arg11: memref<2x64x32xf32, #tpu.memory_space<vmem>>, %arg12: memref<2x1x32xf32, #tpu.memory_space<vmem>>, %arg13: memref<1x32xf32, #tpu.memory_space<vmem>>, %arg14: memref<1x32xf32, #tpu.memory_space<vmem>>, %arg15: memref<32x8xf32, #tpu.memory_space<vmem>>, %arg16: memref<1x8xf32, #tpu.memory_space<vmem>>, %arg17: memref<1x1x8xf32, #tpu.memory_space<vmem>>) attributes {dimension_semantics = [#tpu.dimension_semantics<parallel>], iteration_bounds = array<i64: 2>, scalar_prefetch = 0 : i64, scratch_operands = 0 : i64, tpu.core_type = #tpu.core_type<tc>, window_params = [{transform_indices = @transform_0, window_bounds = array<i64: 1, 17, 48>}, {pipeline_mode = #tpu.pipeline_mode<synchronous>, transform_indices = @transform_1, window_bounds = array<i64: 48, 32>}, {pipeline_mode = #tpu.pipeline_mode<synchronous>, transform_indices = @transform_2, window_bounds = array<i64: 17, 32>}, {pipeline_mode = #tpu.pipeline_mode<synchronous>, transform_indices = @transform_3, window_bounds = array<i64: 2, 4, 32>}, {pipeline_mode = #tpu.pipeline_mode<synchronous>, transform_indices = @transform_4, window_bounds = array<i64: 2, 32, 96>}, {pipeline_mode = #tpu.pipeline_mode<synchronous>, transform_indices = @transform_5, window_bounds = array<i64: 2, 1, 96>}, {pipeline_mode = #tpu.pipeline_mode<synchronous>, transform_indices = @transform_6, window_bounds = array<i64: 2, 32, 32>}, {pipeline_mode = #tpu.pipeline_mode<synchronous>, transform_indices = @transform_7, window_bounds = array<i64: 2, 1, 32>}, {pipeline_mode = #tpu.pipeline_mode<synchronous>, transform_indices = @transform_8, window_bounds = array<i64: 2, 32, 64>}, {pipeline_mode = #tpu.pipeline_mode<synchronous>, transform_indices = @transform_9, window_bounds = array<i64: 2, 1, 64>}, {pipeline_mode = #tpu.pipeline_mode<synchronous>, transform_indices = @transform_10, window_bounds = array<i64: 2, 64, 32>}, {pipeline_mode = #tpu.pipeline_mode<synchronous>, transform_indices = @transform_11, window_bounds = array<i64: 2, 1, 32>}, {pipeline_mode = #tpu.pipeline_mode<synchronous>, transform_indices = @transform_12, window_bounds = array<i64: 1, 32>}, {pipeline_mode = #tpu.pipeline_mode<synchronous>, transform_indices = @transform_13, window_bounds = array<i64: 1, 32>}, {pipeline_mode = #tpu.pipeline_mode<synchronous>, transform_indices = @transform_14, window_bounds = array<i64: 32, 8>}, {pipeline_mode = #tpu.pipeline_mode<synchronous>, transform_indices = @transform_15, window_bounds = array<i64: 1, 8>}, {transform_indices = @transform_16, window_bounds = array<i64: 1, 1, 8>}]} {
    %c0 = arith.constant 0 : index
    %c0_0 = arith.constant 0 : index
    %c0_1 = arith.constant 0 : index
    %0 = vector.load %arg1[%c0, %c0_0, %c0_1] : memref<1x17x48xf32, #tpu.memory_space<vmem>>, vector<1x17x48xf32>
    %1 = vector.shape_cast %0 : vector<1x17x48xf32> to vector<17x48xf32>
    %c0_2 = arith.constant 0 : index
    %c0_3 = arith.constant 0 : index
    %2 = vector.load %arg2[%c0_2, %c0_3] : memref<48x32xf32, #tpu.memory_space<vmem>>, vector<48x32xf32>
    %cst = arith.constant dense<0.000000e+00> : vector<17x32xf32>
    %3 = tpu.matmul %1, %2, %cst {dimension_numbers = #tpu.dot_dimension_numbers<[1], [0], [0], [1], [0, 0, 1, 1], [], []>} : vector<17x48xf32>, vector<48x32xf32>, vector<17x32xf32> -> vector<17x32xf32>
    %c0_4 = arith.constant 0 : index
    %c0_5 = arith.constant 0 : index
    %4 = vector.load %arg3[%c0_4, %c0_5] : memref<17x32xf32, #tpu.memory_space<vmem>>, vector<17x32xf32>
    %5 = arith.addf %3, %4 : vector<17x32xf32>
    %c0_6 = arith.constant 0 : index
    %c0_7 = arith.constant 0 : index
    %c0_8 = arith.constant 0 : index
    %6 = vector.load %arg4[%c0_6, %c0_7, %c0_8] : memref<2x4x32xf32, #tpu.memory_space<vmem>>, vector<1x4x32xf32>
    %7 = vector.shape_cast %6 : vector<1x4x32xf32> to vector<4x32xf32>
    %8 = vector.extract_strided_slice %7 {offsets = [0, 0], sizes = [1, 32], strides = [1, 1]} : vector<4x32xf32> to vector<1x32xf32>
    %9 = vector.extract_strided_slice %7 {offsets = [1, 0], sizes = [1, 32], strides = [1, 1]} : vector<4x32xf32> to vector<1x32xf32>
    %cst_9 = arith.constant dense<0.000000e+00> : vector<17xf32>
    %10 = vector.multi_reduction <add>, %5, %cst_9 [1] : vector<17x32xf32> to vector<17xf32>
    %11 = vector.shape_cast %10 : vector<17xf32> to vector<17x1xf32>
    %cst_10 = arith.constant 3.200000e+01 : f32
    %12 = vector.broadcast %cst_10 : f32 to vector<17x1xf32>
    %13 = arith.divf %11, %12 : vector<17x1xf32>
    %14 = vector.broadcast %13 : vector<17x1xf32> to vector<17x32xf32>
    %15 = arith.subf %5, %14 : vector<17x32xf32>
    %16 = arith.mulf %15, %15 : vector<17x32xf32>
    %cst_11 = arith.constant dense<0.000000e+00> : vector<17xf32>
    %17 = vector.multi_reduction <add>, %16, %cst_11 [1] : vector<17x32xf32> to vector<17xf32>
    %18 = vector.shape_cast %17 : vector<17xf32> to vector<17x1xf32>
    %cst_12 = arith.constant 3.200000e+01 : f32
    %19 = vector.broadcast %cst_12 : f32 to vector<17x1xf32>
    %20 = arith.divf %18, %19 : vector<17x1xf32>
    %21 = vector.broadcast %13 : vector<17x1xf32> to vector<17x32xf32>
    %22 = arith.subf %5, %21 : vector<17x32xf32>
    %cst_13 = arith.constant 9.99999997E-7 : f32
    %23 = vector.broadcast %cst_13 : f32 to vector<17x1xf32>
    %24 = arith.addf %20, %23 : vector<17x1xf32>
    %25 = math.rsqrt %24 : vector<17x1xf32>
    %26 = vector.broadcast %25 : vector<17x1xf32> to vector<17x32xf32>
    %27 = arith.mulf %22, %26 : vector<17x32xf32>
    %28 = vector.broadcast %8 : vector<1x32xf32> to vector<17x32xf32>
    %29 = arith.mulf %27, %28 : vector<17x32xf32>
    %30 = vector.broadcast %9 : vector<1x32xf32> to vector<17x32xf32>
    %31 = arith.addf %29, %30 : vector<17x32xf32>
    %c0_14 = arith.constant 0 : index
    %c0_15 = arith.constant 0 : index
    %c0_16 = arith.constant 0 : index
    %32 = vector.load %arg5[%c0_14, %c0_15, %c0_16] : memref<2x32x96xf32, #tpu.memory_space<vmem>>, vector<1x32x96xf32>
    %33 = vector.shape_cast %32 : vector<1x32x96xf32> to vector<32x96xf32>
    %cst_17 = arith.constant dense<0.000000e+00> : vector<17x96xf32>
    %34 = tpu.matmul %31, %33, %cst_17 {dimension_numbers = #tpu.dot_dimension_numbers<[1], [0], [0], [1], [0, 0, 1, 1], [], []>} : vector<17x32xf32>, vector<32x96xf32>, vector<17x96xf32> -> vector<17x96xf32>
    %c0_18 = arith.constant 0 : index
    %c0_19 = arith.constant 0 : index
    %c0_20 = arith.constant 0 : index
    %35 = vector.load %arg6[%c0_18, %c0_19, %c0_20] : memref<2x1x96xf32, #tpu.memory_space<vmem>>, vector<1x1x96xf32>
    %36 = vector.shape_cast %35 : vector<1x1x96xf32> to vector<1x96xf32>
    %37 = vector.broadcast %36 : vector<1x96xf32> to vector<17x96xf32>
    %38 = arith.addf %34, %37 : vector<17x96xf32>
    %c0_21 = arith.constant 0 : index
    %c0_22 = arith.constant 0 : index
    %c0_23 = arith.constant 0 : index
    %39 = vector.load %arg7[%c0_21, %c0_22, %c0_23] : memref<2x32x32xf32, #tpu.memory_space<vmem>>, vector<1x32x32xf32>
    %40 = vector.shape_cast %39 : vector<1x32x32xf32> to vector<32x32xf32>
    %41 = vector.extract_strided_slice %38 {offsets = [0, 0], sizes = [17, 8], strides = [1, 1]} : vector<17x96xf32> to vector<17x8xf32>
    %42 = vector.extract_strided_slice %38 {offsets = [0, 32], sizes = [17, 8], strides = [1, 1]} : vector<17x96xf32> to vector<17x8xf32>
    %43 = vector.extract_strided_slice %38 {offsets = [0, 64], sizes = [17, 8], strides = [1, 1]} : vector<17x96xf32> to vector<17x8xf32>
    %44 = tpu.transpose %42, [1, 0] : vector<17x8xf32> -> vector<8x17xf32>
    %cst_24 = arith.constant dense<0.000000e+00> : vector<17x17xf32>
    %45 = tpu.matmul %41, %44, %cst_24 {dimension_numbers = #tpu.dot_dimension_numbers<[1], [0], [0], [1], [0, 0, 1, 1], [], []>} : vector<17x8xf32>, vector<8x17xf32>, vector<17x17xf32> -> vector<17x17xf32>
    %cst_25 = arith.constant dense<0xFF800000> : vector<17xf32>
    %46 = vector.multi_reduction <maximumf>, %45, %cst_25 [1] : vector<17x17xf32> to vector<17xf32>
    %47 = vector.shape_cast %46 : vector<17xf32> to vector<17x1xf32>
    %48 = vector.broadcast %47 : vector<17x1xf32> to vector<17x17xf32>
    %49 = arith.subf %45, %48 : vector<17x17xf32>
    %50 = math.exp %49 : vector<17x17xf32>
    %cst_26 = arith.constant dense<0.000000e+00> : vector<17xf32>
    %51 = vector.multi_reduction <add>, %50, %cst_26 [1] : vector<17x17xf32> to vector<17xf32>
    %52 = vector.shape_cast %51 : vector<17xf32> to vector<17x1xf32>
    %53 = tpu.reciprocal %52 {approx = true} : vector<17x1xf32> -> vector<17x1xf32>
    %54 = vector.broadcast %53 : vector<17x1xf32> to vector<17x17xf32>
    %55 = arith.mulf %50, %54 : vector<17x17xf32>
    %cst_27 = arith.constant dense<0.000000e+00> : vector<17x8xf32>
    %56 = tpu.matmul %55, %43, %cst_27 {dimension_numbers = #tpu.dot_dimension_numbers<[1], [0], [0], [1], [0, 0, 1, 1], [], []>} : vector<17x17xf32>, vector<17x8xf32>, vector<17x8xf32> -> vector<17x8xf32>
    %57 = vector.extract_strided_slice %40 {offsets = [0, 0], sizes = [8, 32], strides = [1, 1]} : vector<32x32xf32> to vector<8x32xf32>
    %cst_28 = arith.constant dense<0.000000e+00> : vector<17x32xf32>
    %58 = tpu.matmul %56, %57, %cst_28 {dimension_numbers = #tpu.dot_dimension_numbers<[1], [0], [0], [1], [0, 0, 1, 1], [], []>} : vector<17x8xf32>, vector<8x32xf32>, vector<17x32xf32> -> vector<17x32xf32>
    %59 = vector.extract_strided_slice %38 {offsets = [0, 8], sizes = [17, 8], strides = [1, 1]} : vector<17x96xf32> to vector<17x8xf32>
    %60 = vector.extract_strided_slice %38 {offsets = [0, 40], sizes = [17, 8], strides = [1, 1]} : vector<17x96xf32> to vector<17x8xf32>
    %61 = vector.extract_strided_slice %38 {offsets = [0, 72], sizes = [17, 8], strides = [1, 1]} : vector<17x96xf32> to vector<17x8xf32>
    %62 = tpu.transpose %60, [1, 0] : vector<17x8xf32> -> vector<8x17xf32>
    %cst_29 = arith.constant dense<0.000000e+00> : vector<17x17xf32>
    %63 = tpu.matmul %59, %62, %cst_29 {dimension_numbers = #tpu.dot_dimension_numbers<[1], [0], [0], [1], [0, 0, 1, 1], [], []>} : vector<17x8xf32>, vector<8x17xf32>, vector<17x17xf32> -> vector<17x17xf32>
    %cst_30 = arith.constant dense<0xFF800000> : vector<17xf32>
    %64 = vector.multi_reduction <maximumf>, %63, %cst_30 [1] : vector<17x17xf32> to vector<17xf32>
    %65 = vector.shape_cast %64 : vector<17xf32> to vector<17x1xf32>
    %66 = vector.broadcast %65 : vector<17x1xf32> to vector<17x17xf32>
    %67 = arith.subf %63, %66 : vector<17x17xf32>
    %68 = math.exp %67 : vector<17x17xf32>
    %cst_31 = arith.constant dense<0.000000e+00> : vector<17xf32>
    %69 = vector.multi_reduction <add>, %68, %cst_31 [1] : vector<17x17xf32> to vector<17xf32>
    %70 = vector.shape_cast %69 : vector<17xf32> to vector<17x1xf32>
    %71 = tpu.reciprocal %70 {approx = true} : vector<17x1xf32> -> vector<17x1xf32>
    %72 = vector.broadcast %71 : vector<17x1xf32> to vector<17x17xf32>
    %73 = arith.mulf %68, %72 : vector<17x17xf32>
    %cst_32 = arith.constant dense<0.000000e+00> : vector<17x8xf32>
    %74 = tpu.matmul %73, %61, %cst_32 {dimension_numbers = #tpu.dot_dimension_numbers<[1], [0], [0], [1], [0, 0, 1, 1], [], []>} : vector<17x17xf32>, vector<17x8xf32>, vector<17x8xf32> -> vector<17x8xf32>
    %75 = vector.extract_strided_slice %40 {offsets = [8, 0], sizes = [8, 32], strides = [1, 1]} : vector<32x32xf32> to vector<8x32xf32>
    %cst_33 = arith.constant dense<0.000000e+00> : vector<17x32xf32>
    %76 = tpu.matmul %74, %75, %cst_33 {dimension_numbers = #tpu.dot_dimension_numbers<[1], [0], [0], [1], [0, 0, 1, 1], [], []>} : vector<17x8xf32>, vector<8x32xf32>, vector<17x32xf32> -> vector<17x32xf32>
    %77 = arith.addf %58, %76 : vector<17x32xf32>
    %78 = vector.extract_strided_slice %38 {offsets = [0, 16], sizes = [17, 8], strides = [1, 1]} : vector<17x96xf32> to vector<17x8xf32>
    %79 = vector.extract_strided_slice %38 {offsets = [0, 48], sizes = [17, 8], strides = [1, 1]} : vector<17x96xf32> to vector<17x8xf32>
    %80 = vector.extract_strided_slice %38 {offsets = [0, 80], sizes = [17, 8], strides = [1, 1]} : vector<17x96xf32> to vector<17x8xf32>
    %81 = tpu.transpose %79, [1, 0] : vector<17x8xf32> -> vector<8x17xf32>
    %cst_34 = arith.constant dense<0.000000e+00> : vector<17x17xf32>
    %82 = tpu.matmul %78, %81, %cst_34 {dimension_numbers = #tpu.dot_dimension_numbers<[1], [0], [0], [1], [0, 0, 1, 1], [], []>} : vector<17x8xf32>, vector<8x17xf32>, vector<17x17xf32> -> vector<17x17xf32>
    %cst_35 = arith.constant dense<0xFF800000> : vector<17xf32>
    %83 = vector.multi_reduction <maximumf>, %82, %cst_35 [1] : vector<17x17xf32> to vector<17xf32>
    %84 = vector.shape_cast %83 : vector<17xf32> to vector<17x1xf32>
    %85 = vector.broadcast %84 : vector<17x1xf32> to vector<17x17xf32>
    %86 = arith.subf %82, %85 : vector<17x17xf32>
    %87 = math.exp %86 : vector<17x17xf32>
    %cst_36 = arith.constant dense<0.000000e+00> : vector<17xf32>
    %88 = vector.multi_reduction <add>, %87, %cst_36 [1] : vector<17x17xf32> to vector<17xf32>
    %89 = vector.shape_cast %88 : vector<17xf32> to vector<17x1xf32>
    %90 = tpu.reciprocal %89 {approx = true} : vector<17x1xf32> -> vector<17x1xf32>
    %91 = vector.broadcast %90 : vector<17x1xf32> to vector<17x17xf32>
    %92 = arith.mulf %87, %91 : vector<17x17xf32>
    %cst_37 = arith.constant dense<0.000000e+00> : vector<17x8xf32>
    %93 = tpu.matmul %92, %80, %cst_37 {dimension_numbers = #tpu.dot_dimension_numbers<[1], [0], [0], [1], [0, 0, 1, 1], [], []>} : vector<17x17xf32>, vector<17x8xf32>, vector<17x8xf32> -> vector<17x8xf32>
    %94 = vector.extract_strided_slice %40 {offsets = [16, 0], sizes = [8, 32], strides = [1, 1]} : vector<32x32xf32> to vector<8x32xf32>
    %cst_38 = arith.constant dense<0.000000e+00> : vector<17x32xf32>
    %95 = tpu.matmul %93, %94, %cst_38 {dimension_numbers = #tpu.dot_dimension_numbers<[1], [0], [0], [1], [0, 0, 1, 1], [], []>} : vector<17x8xf32>, vector<8x32xf32>, vector<17x32xf32> -> vector<17x32xf32>
    %96 = arith.addf %77, %95 : vector<17x32xf32>
    %97 = vector.extract_strided_slice %38 {offsets = [0, 24], sizes = [17, 8], strides = [1, 1]} : vector<17x96xf32> to vector<17x8xf32>
    %98 = vector.extract_strided_slice %38 {offsets = [0, 56], sizes = [17, 8], strides = [1, 1]} : vector<17x96xf32> to vector<17x8xf32>
    %99 = vector.extract_strided_slice %38 {offsets = [0, 88], sizes = [17, 8], strides = [1, 1]} : vector<17x96xf32> to vector<17x8xf32>
    %100 = tpu.transpose %98, [1, 0] : vector<17x8xf32> -> vector<8x17xf32>
    %cst_39 = arith.constant dense<0.000000e+00> : vector<17x17xf32>
    %101 = tpu.matmul %97, %100, %cst_39 {dimension_numbers = #tpu.dot_dimension_numbers<[1], [0], [0], [1], [0, 0, 1, 1], [], []>} : vector<17x8xf32>, vector<8x17xf32>, vector<17x17xf32> -> vector<17x17xf32>
    %cst_40 = arith.constant dense<0xFF800000> : vector<17xf32>
    %102 = vector.multi_reduction <maximumf>, %101, %cst_40 [1] : vector<17x17xf32> to vector<17xf32>
    %103 = vector.shape_cast %102 : vector<17xf32> to vector<17x1xf32>
    %104 = vector.broadcast %103 : vector<17x1xf32> to vector<17x17xf32>
    %105 = arith.subf %101, %104 : vector<17x17xf32>
    %106 = math.exp %105 : vector<17x17xf32>
    %cst_41 = arith.constant dense<0.000000e+00> : vector<17xf32>
    %107 = vector.multi_reduction <add>, %106, %cst_41 [1] : vector<17x17xf32> to vector<17xf32>
    %108 = vector.shape_cast %107 : vector<17xf32> to vector<17x1xf32>
    %109 = tpu.reciprocal %108 {approx = true} : vector<17x1xf32> -> vector<17x1xf32>
    %110 = vector.broadcast %109 : vector<17x1xf32> to vector<17x17xf32>
    %111 = arith.mulf %106, %110 : vector<17x17xf32>
    %cst_42 = arith.constant dense<0.000000e+00> : vector<17x8xf32>
    %112 = tpu.matmul %111, %99, %cst_42 {dimension_numbers = #tpu.dot_dimension_numbers<[1], [0], [0], [1], [0, 0, 1, 1], [], []>} : vector<17x17xf32>, vector<17x8xf32>, vector<17x8xf32> -> vector<17x8xf32>
    %113 = vector.extract_strided_slice %40 {offsets = [24, 0], sizes = [8, 32], strides = [1, 1]} : vector<32x32xf32> to vector<8x32xf32>
    %cst_43 = arith.constant dense<0.000000e+00> : vector<17x32xf32>
    %114 = tpu.matmul %112, %113, %cst_43 {dimension_numbers = #tpu.dot_dimension_numbers<[1], [0], [0], [1], [0, 0, 1, 1], [], []>} : vector<17x8xf32>, vector<8x32xf32>, vector<17x32xf32> -> vector<17x32xf32>
    %115 = arith.addf %96, %114 : vector<17x32xf32>
    %116 = arith.addf %5, %115 : vector<17x32xf32>
    %c0_44 = arith.constant 0 : index
    %c0_45 = arith.constant 0 : index
    %c0_46 = arith.constant 0 : index
    %117 = vector.load %arg8[%c0_44, %c0_45, %c0_46] : memref<2x1x32xf32, #tpu.memory_space<vmem>>, vector<1x1x32xf32>
    %118 = vector.shape_cast %117 : vector<1x1x32xf32> to vector<1x32xf32>
    %119 = vector.broadcast %118 : vector<1x32xf32> to vector<17x32xf32>
    %120 = arith.addf %116, %119 : vector<17x32xf32>
    %121 = vector.extract_strided_slice %7 {offsets = [2, 0], sizes = [1, 32], strides = [1, 1]} : vector<4x32xf32> to vector<1x32xf32>
    %122 = vector.extract_strided_slice %7 {offsets = [3, 0], sizes = [1, 32], strides = [1, 1]} : vector<4x32xf32> to vector<1x32xf32>
    %cst_47 = arith.constant dense<0.000000e+00> : vector<17xf32>
    %123 = vector.multi_reduction <add>, %120, %cst_47 [1] : vector<17x32xf32> to vector<17xf32>
    %124 = vector.shape_cast %123 : vector<17xf32> to vector<17x1xf32>
    %cst_48 = arith.constant 3.200000e+01 : f32
    %125 = vector.broadcast %cst_48 : f32 to vector<17x1xf32>
    %126 = arith.divf %124, %125 : vector<17x1xf32>
    %127 = vector.broadcast %126 : vector<17x1xf32> to vector<17x32xf32>
    %128 = arith.subf %120, %127 : vector<17x32xf32>
    %129 = arith.mulf %128, %128 : vector<17x32xf32>
    %cst_49 = arith.constant dense<0.000000e+00> : vector<17xf32>
    %130 = vector.multi_reduction <add>, %129, %cst_49 [1] : vector<17x32xf32> to vector<17xf32>
    %131 = vector.shape_cast %130 : vector<17xf32> to vector<17x1xf32>
    %cst_50 = arith.constant 3.200000e+01 : f32
    %132 = vector.broadcast %cst_50 : f32 to vector<17x1xf32>
    %133 = arith.divf %131, %132 : vector<17x1xf32>
    %134 = vector.broadcast %126 : vector<17x1xf32> to vector<17x32xf32>
    %135 = arith.subf %120, %134 : vector<17x32xf32>
    %cst_51 = arith.constant 9.99999997E-7 : f32
    %136 = vector.broadcast %cst_51 : f32 to vector<17x1xf32>
    %137 = arith.addf %133, %136 : vector<17x1xf32>
    %138 = math.rsqrt %137 : vector<17x1xf32>
    %139 = vector.broadcast %138 : vector<17x1xf32> to vector<17x32xf32>
    %140 = arith.mulf %135, %139 : vector<17x32xf32>
    %141 = vector.broadcast %121 : vector<1x32xf32> to vector<17x32xf32>
    %142 = arith.mulf %140, %141 : vector<17x32xf32>
    %143 = vector.broadcast %122 : vector<1x32xf32> to vector<17x32xf32>
    %144 = arith.addf %142, %143 : vector<17x32xf32>
    %c0_52 = arith.constant 0 : index
    %c0_53 = arith.constant 0 : index
    %c0_54 = arith.constant 0 : index
    %145 = vector.load %arg9[%c0_52, %c0_53, %c0_54] : memref<2x32x64xf32, #tpu.memory_space<vmem>>, vector<1x32x64xf32>
    %146 = vector.shape_cast %145 : vector<1x32x64xf32> to vector<32x64xf32>
    %cst_55 = arith.constant dense<0.000000e+00> : vector<17x64xf32>
    %147 = tpu.matmul %144, %146, %cst_55 {dimension_numbers = #tpu.dot_dimension_numbers<[1], [0], [0], [1], [0, 0, 1, 1], [], []>} : vector<17x32xf32>, vector<32x64xf32>, vector<17x64xf32> -> vector<17x64xf32>
    %c0_56 = arith.constant 0 : index
    %c0_57 = arith.constant 0 : index
    %c0_58 = arith.constant 0 : index
    %148 = vector.load %arg10[%c0_56, %c0_57, %c0_58] : memref<2x1x64xf32, #tpu.memory_space<vmem>>, vector<1x1x64xf32>
    %149 = vector.shape_cast %148 : vector<1x1x64xf32> to vector<1x64xf32>
    %150 = vector.broadcast %149 : vector<1x64xf32> to vector<17x64xf32>
    %151 = arith.addf %147, %150 : vector<17x64xf32>
    %cst_59 = arith.constant 5.000000e-01 : f32
    %152 = vector.broadcast %cst_59 : f32 to vector<17x64xf32>
    %153 = arith.mulf %152, %151 : vector<17x64xf32>
    %cst_60 = arith.constant 4.471500e-02 : f32
    %154 = vector.broadcast %cst_60 : f32 to vector<17x64xf32>
    %155 = arith.mulf %154, %151 : vector<17x64xf32>
    %156 = arith.mulf %155, %151 : vector<17x64xf32>
    %157 = arith.mulf %156, %151 : vector<17x64xf32>
    %158 = arith.addf %151, %157 : vector<17x64xf32>
    %cst_61 = arith.constant 0.797884583 : f32
    %159 = vector.broadcast %cst_61 : f32 to vector<17x64xf32>
    %160 = arith.mulf %159, %158 : vector<17x64xf32>
    %161 = math.tanh %160 : vector<17x64xf32>
    %cst_62 = arith.constant 1.000000e+00 : f32
    %162 = vector.broadcast %cst_62 : f32 to vector<17x64xf32>
    %163 = arith.addf %162, %161 : vector<17x64xf32>
    %164 = arith.mulf %153, %163 : vector<17x64xf32>
    %c0_63 = arith.constant 0 : index
    %c0_64 = arith.constant 0 : index
    %c0_65 = arith.constant 0 : index
    %165 = vector.load %arg11[%c0_63, %c0_64, %c0_65] : memref<2x64x32xf32, #tpu.memory_space<vmem>>, vector<1x64x32xf32>
    %166 = vector.shape_cast %165 : vector<1x64x32xf32> to vector<64x32xf32>
    %cst_66 = arith.constant dense<0.000000e+00> : vector<17x32xf32>
    %167 = tpu.matmul %164, %166, %cst_66 {dimension_numbers = #tpu.dot_dimension_numbers<[1], [0], [0], [1], [0, 0, 1, 1], [], []>} : vector<17x64xf32>, vector<64x32xf32>, vector<17x32xf32> -> vector<17x32xf32>
    %c0_67 = arith.constant 0 : index
    %c0_68 = arith.constant 0 : index
    %c0_69 = arith.constant 0 : index
    %168 = vector.load %arg12[%c0_67, %c0_68, %c0_69] : memref<2x1x32xf32, #tpu.memory_space<vmem>>, vector<1x1x32xf32>
    %169 = vector.shape_cast %168 : vector<1x1x32xf32> to vector<1x32xf32>
    %170 = vector.broadcast %169 : vector<1x32xf32> to vector<17x32xf32>
    %171 = arith.addf %167, %170 : vector<17x32xf32>
    %172 = arith.addf %120, %171 : vector<17x32xf32>
    %c1 = arith.constant 1 : index
    %c0_70 = arith.constant 0 : index
    %c0_71 = arith.constant 0 : index
    %173 = vector.load %arg4[%c1, %c0_70, %c0_71] : memref<2x4x32xf32, #tpu.memory_space<vmem>>, vector<1x4x32xf32>
    %174 = vector.shape_cast %173 : vector<1x4x32xf32> to vector<4x32xf32>
    %175 = vector.extract_strided_slice %174 {offsets = [0, 0], sizes = [1, 32], strides = [1, 1]} : vector<4x32xf32> to vector<1x32xf32>
    %176 = vector.extract_strided_slice %174 {offsets = [1, 0], sizes = [1, 32], strides = [1, 1]} : vector<4x32xf32> to vector<1x32xf32>
    %cst_72 = arith.constant dense<0.000000e+00> : vector<17xf32>
    %177 = vector.multi_reduction <add>, %172, %cst_72 [1] : vector<17x32xf32> to vector<17xf32>
    %178 = vector.shape_cast %177 : vector<17xf32> to vector<17x1xf32>
    %cst_73 = arith.constant 3.200000e+01 : f32
    %179 = vector.broadcast %cst_73 : f32 to vector<17x1xf32>
    %180 = arith.divf %178, %179 : vector<17x1xf32>
    %181 = vector.broadcast %180 : vector<17x1xf32> to vector<17x32xf32>
    %182 = arith.subf %172, %181 : vector<17x32xf32>
    %183 = arith.mulf %182, %182 : vector<17x32xf32>
    %cst_74 = arith.constant dense<0.000000e+00> : vector<17xf32>
    %184 = vector.multi_reduction <add>, %183, %cst_74 [1] : vector<17x32xf32> to vector<17xf32>
    %185 = vector.shape_cast %184 : vector<17xf32> to vector<17x1xf32>
    %cst_75 = arith.constant 3.200000e+01 : f32
    %186 = vector.broadcast %cst_75 : f32 to vector<17x1xf32>
    %187 = arith.divf %185, %186 : vector<17x1xf32>
    %188 = vector.broadcast %180 : vector<17x1xf32> to vector<17x32xf32>
    %189 = arith.subf %172, %188 : vector<17x32xf32>
    %cst_76 = arith.constant 9.99999997E-7 : f32
    %190 = vector.broadcast %cst_76 : f32 to vector<17x1xf32>
    %191 = arith.addf %187, %190 : vector<17x1xf32>
    %192 = math.rsqrt %191 : vector<17x1xf32>
    %193 = vector.broadcast %192 : vector<17x1xf32> to vector<17x32xf32>
    %194 = arith.mulf %189, %193 : vector<17x32xf32>
    %195 = vector.broadcast %175 : vector<1x32xf32> to vector<17x32xf32>
    %196 = arith.mulf %194, %195 : vector<17x32xf32>
    %197 = vector.broadcast %176 : vector<1x32xf32> to vector<17x32xf32>
    %198 = arith.addf %196, %197 : vector<17x32xf32>
    %c1_77 = arith.constant 1 : index
    %c0_78 = arith.constant 0 : index
    %c0_79 = arith.constant 0 : index
    %199 = vector.load %arg5[%c1_77, %c0_78, %c0_79] : memref<2x32x96xf32, #tpu.memory_space<vmem>>, vector<1x32x96xf32>
    %200 = vector.shape_cast %199 : vector<1x32x96xf32> to vector<32x96xf32>
    %cst_80 = arith.constant dense<0.000000e+00> : vector<17x96xf32>
    %201 = tpu.matmul %198, %200, %cst_80 {dimension_numbers = #tpu.dot_dimension_numbers<[1], [0], [0], [1], [0, 0, 1, 1], [], []>} : vector<17x32xf32>, vector<32x96xf32>, vector<17x96xf32> -> vector<17x96xf32>
    %c1_81 = arith.constant 1 : index
    %c0_82 = arith.constant 0 : index
    %c0_83 = arith.constant 0 : index
    %202 = vector.load %arg6[%c1_81, %c0_82, %c0_83] : memref<2x1x96xf32, #tpu.memory_space<vmem>>, vector<1x1x96xf32>
    %203 = vector.shape_cast %202 : vector<1x1x96xf32> to vector<1x96xf32>
    %204 = vector.broadcast %203 : vector<1x96xf32> to vector<17x96xf32>
    %205 = arith.addf %201, %204 : vector<17x96xf32>
    %c1_84 = arith.constant 1 : index
    %c0_85 = arith.constant 0 : index
    %c0_86 = arith.constant 0 : index
    %206 = vector.load %arg7[%c1_84, %c0_85, %c0_86] : memref<2x32x32xf32, #tpu.memory_space<vmem>>, vector<1x32x32xf32>
    %207 = vector.shape_cast %206 : vector<1x32x32xf32> to vector<32x32xf32>
    %208 = vector.extract_strided_slice %205 {offsets = [0, 0], sizes = [17, 8], strides = [1, 1]} : vector<17x96xf32> to vector<17x8xf32>
    %209 = vector.extract_strided_slice %205 {offsets = [0, 32], sizes = [17, 8], strides = [1, 1]} : vector<17x96xf32> to vector<17x8xf32>
    %210 = vector.extract_strided_slice %205 {offsets = [0, 64], sizes = [17, 8], strides = [1, 1]} : vector<17x96xf32> to vector<17x8xf32>
    %211 = tpu.transpose %209, [1, 0] : vector<17x8xf32> -> vector<8x17xf32>
    %cst_87 = arith.constant dense<0.000000e+00> : vector<17x17xf32>
    %212 = tpu.matmul %208, %211, %cst_87 {dimension_numbers = #tpu.dot_dimension_numbers<[1], [0], [0], [1], [0, 0, 1, 1], [], []>} : vector<17x8xf32>, vector<8x17xf32>, vector<17x17xf32> -> vector<17x17xf32>
    %cst_88 = arith.constant dense<0xFF800000> : vector<17xf32>
    %213 = vector.multi_reduction <maximumf>, %212, %cst_88 [1] : vector<17x17xf32> to vector<17xf32>
    %214 = vector.shape_cast %213 : vector<17xf32> to vector<17x1xf32>
    %215 = vector.broadcast %214 : vector<17x1xf32> to vector<17x17xf32>
    %216 = arith.subf %212, %215 : vector<17x17xf32>
    %217 = math.exp %216 : vector<17x17xf32>
    %cst_89 = arith.constant dense<0.000000e+00> : vector<17xf32>
    %218 = vector.multi_reduction <add>, %217, %cst_89 [1] : vector<17x17xf32> to vector<17xf32>
    %219 = vector.shape_cast %218 : vector<17xf32> to vector<17x1xf32>
    %220 = tpu.reciprocal %219 {approx = true} : vector<17x1xf32> -> vector<17x1xf32>
    %221 = vector.broadcast %220 : vector<17x1xf32> to vector<17x17xf32>
    %222 = arith.mulf %217, %221 : vector<17x17xf32>
    %cst_90 = arith.constant dense<0.000000e+00> : vector<17x8xf32>
    %223 = tpu.matmul %222, %210, %cst_90 {dimension_numbers = #tpu.dot_dimension_numbers<[1], [0], [0], [1], [0, 0, 1, 1], [], []>} : vector<17x17xf32>, vector<17x8xf32>, vector<17x8xf32> -> vector<17x8xf32>
    %224 = vector.extract_strided_slice %207 {offsets = [0, 0], sizes = [8, 32], strides = [1, 1]} : vector<32x32xf32> to vector<8x32xf32>
    %cst_91 = arith.constant dense<0.000000e+00> : vector<17x32xf32>
    %225 = tpu.matmul %223, %224, %cst_91 {dimension_numbers = #tpu.dot_dimension_numbers<[1], [0], [0], [1], [0, 0, 1, 1], [], []>} : vector<17x8xf32>, vector<8x32xf32>, vector<17x32xf32> -> vector<17x32xf32>
    %226 = vector.extract_strided_slice %205 {offsets = [0, 8], sizes = [17, 8], strides = [1, 1]} : vector<17x96xf32> to vector<17x8xf32>
    %227 = vector.extract_strided_slice %205 {offsets = [0, 40], sizes = [17, 8], strides = [1, 1]} : vector<17x96xf32> to vector<17x8xf32>
    %228 = vector.extract_strided_slice %205 {offsets = [0, 72], sizes = [17, 8], strides = [1, 1]} : vector<17x96xf32> to vector<17x8xf32>
    %229 = tpu.transpose %227, [1, 0] : vector<17x8xf32> -> vector<8x17xf32>
    %cst_92 = arith.constant dense<0.000000e+00> : vector<17x17xf32>
    %230 = tpu.matmul %226, %229, %cst_92 {dimension_numbers = #tpu.dot_dimension_numbers<[1], [0], [0], [1], [0, 0, 1, 1], [], []>} : vector<17x8xf32>, vector<8x17xf32>, vector<17x17xf32> -> vector<17x17xf32>
    %cst_93 = arith.constant dense<0xFF800000> : vector<17xf32>
    %231 = vector.multi_reduction <maximumf>, %230, %cst_93 [1] : vector<17x17xf32> to vector<17xf32>
    %232 = vector.shape_cast %231 : vector<17xf32> to vector<17x1xf32>
    %233 = vector.broadcast %232 : vector<17x1xf32> to vector<17x17xf32>
    %234 = arith.subf %230, %233 : vector<17x17xf32>
    %235 = math.exp %234 : vector<17x17xf32>
    %cst_94 = arith.constant dense<0.000000e+00> : vector<17xf32>
    %236 = vector.multi_reduction <add>, %235, %cst_94 [1] : vector<17x17xf32> to vector<17xf32>
    %237 = vector.shape_cast %236 : vector<17xf32> to vector<17x1xf32>
    %238 = tpu.reciprocal %237 {approx = true} : vector<17x1xf32> -> vector<17x1xf32>
    %239 = vector.broadcast %238 : vector<17x1xf32> to vector<17x17xf32>
    %240 = arith.mulf %235, %239 : vector<17x17xf32>
    %cst_95 = arith.constant dense<0.000000e+00> : vector<17x8xf32>
    %241 = tpu.matmul %240, %228, %cst_95 {dimension_numbers = #tpu.dot_dimension_numbers<[1], [0], [0], [1], [0, 0, 1, 1], [], []>} : vector<17x17xf32>, vector<17x8xf32>, vector<17x8xf32> -> vector<17x8xf32>
    %242 = vector.extract_strided_slice %207 {offsets = [8, 0], sizes = [8, 32], strides = [1, 1]} : vector<32x32xf32> to vector<8x32xf32>
    %cst_96 = arith.constant dense<0.000000e+00> : vector<17x32xf32>
    %243 = tpu.matmul %241, %242, %cst_96 {dimension_numbers = #tpu.dot_dimension_numbers<[1], [0], [0], [1], [0, 0, 1, 1], [], []>} : vector<17x8xf32>, vector<8x32xf32>, vector<17x32xf32> -> vector<17x32xf32>
    %244 = arith.addf %225, %243 : vector<17x32xf32>
    %245 = vector.extract_strided_slice %205 {offsets = [0, 16], sizes = [17, 8], strides = [1, 1]} : vector<17x96xf32> to vector<17x8xf32>
    %246 = vector.extract_strided_slice %205 {offsets = [0, 48], sizes = [17, 8], strides = [1, 1]} : vector<17x96xf32> to vector<17x8xf32>
    %247 = vector.extract_strided_slice %205 {offsets = [0, 80], sizes = [17, 8], strides = [1, 1]} : vector<17x96xf32> to vector<17x8xf32>
    %248 = tpu.transpose %246, [1, 0] : vector<17x8xf32> -> vector<8x17xf32>
    %cst_97 = arith.constant dense<0.000000e+00> : vector<17x17xf32>
    %249 = tpu.matmul %245, %248, %cst_97 {dimension_numbers = #tpu.dot_dimension_numbers<[1], [0], [0], [1], [0, 0, 1, 1], [], []>} : vector<17x8xf32>, vector<8x17xf32>, vector<17x17xf32> -> vector<17x17xf32>
    %cst_98 = arith.constant dense<0xFF800000> : vector<17xf32>
    %250 = vector.multi_reduction <maximumf>, %249, %cst_98 [1] : vector<17x17xf32> to vector<17xf32>
    %251 = vector.shape_cast %250 : vector<17xf32> to vector<17x1xf32>
    %252 = vector.broadcast %251 : vector<17x1xf32> to vector<17x17xf32>
    %253 = arith.subf %249, %252 : vector<17x17xf32>
    %254 = math.exp %253 : vector<17x17xf32>
    %cst_99 = arith.constant dense<0.000000e+00> : vector<17xf32>
    %255 = vector.multi_reduction <add>, %254, %cst_99 [1] : vector<17x17xf32> to vector<17xf32>
    %256 = vector.shape_cast %255 : vector<17xf32> to vector<17x1xf32>
    %257 = tpu.reciprocal %256 {approx = true} : vector<17x1xf32> -> vector<17x1xf32>
    %258 = vector.broadcast %257 : vector<17x1xf32> to vector<17x17xf32>
    %259 = arith.mulf %254, %258 : vector<17x17xf32>
    %cst_100 = arith.constant dense<0.000000e+00> : vector<17x8xf32>
    %260 = tpu.matmul %259, %247, %cst_100 {dimension_numbers = #tpu.dot_dimension_numbers<[1], [0], [0], [1], [0, 0, 1, 1], [], []>} : vector<17x17xf32>, vector<17x8xf32>, vector<17x8xf32> -> vector<17x8xf32>
    %261 = vector.extract_strided_slice %207 {offsets = [16, 0], sizes = [8, 32], strides = [1, 1]} : vector<32x32xf32> to vector<8x32xf32>
    %cst_101 = arith.constant dense<0.000000e+00> : vector<17x32xf32>
    %262 = tpu.matmul %260, %261, %cst_101 {dimension_numbers = #tpu.dot_dimension_numbers<[1], [0], [0], [1], [0, 0, 1, 1], [], []>} : vector<17x8xf32>, vector<8x32xf32>, vector<17x32xf32> -> vector<17x32xf32>
    %263 = arith.addf %244, %262 : vector<17x32xf32>
    %264 = vector.extract_strided_slice %205 {offsets = [0, 24], sizes = [17, 8], strides = [1, 1]} : vector<17x96xf32> to vector<17x8xf32>
    %265 = vector.extract_strided_slice %205 {offsets = [0, 56], sizes = [17, 8], strides = [1, 1]} : vector<17x96xf32> to vector<17x8xf32>
    %266 = vector.extract_strided_slice %205 {offsets = [0, 88], sizes = [17, 8], strides = [1, 1]} : vector<17x96xf32> to vector<17x8xf32>
    %267 = tpu.transpose %265, [1, 0] : vector<17x8xf32> -> vector<8x17xf32>
    %cst_102 = arith.constant dense<0.000000e+00> : vector<17x17xf32>
    %268 = tpu.matmul %264, %267, %cst_102 {dimension_numbers = #tpu.dot_dimension_numbers<[1], [0], [0], [1], [0, 0, 1, 1], [], []>} : vector<17x8xf32>, vector<8x17xf32>, vector<17x17xf32> -> vector<17x17xf32>
    %cst_103 = arith.constant dense<0xFF800000> : vector<17xf32>
    %269 = vector.multi_reduction <maximumf>, %268, %cst_103 [1] : vector<17x17xf32> to vector<17xf32>
    %270 = vector.shape_cast %269 : vector<17xf32> to vector<17x1xf32>
    %271 = vector.broadcast %270 : vector<17x1xf32> to vector<17x17xf32>
    %272 = arith.subf %268, %271 : vector<17x17xf32>
    %273 = math.exp %272 : vector<17x17xf32>
    %cst_104 = arith.constant dense<0.000000e+00> : vector<17xf32>
    %274 = vector.multi_reduction <add>, %273, %cst_104 [1] : vector<17x17xf32> to vector<17xf32>
    %275 = vector.shape_cast %274 : vector<17xf32> to vector<17x1xf32>
    %276 = tpu.reciprocal %275 {approx = true} : vector<17x1xf32> -> vector<17x1xf32>
    %277 = vector.broadcast %276 : vector<17x1xf32> to vector<17x17xf32>
    %278 = arith.mulf %273, %277 : vector<17x17xf32>
    %cst_105 = arith.constant dense<0.000000e+00> : vector<17x8xf32>
    %279 = tpu.matmul %278, %266, %cst_105 {dimension_numbers = #tpu.dot_dimension_numbers<[1], [0], [0], [1], [0, 0, 1, 1], [], []>} : vector<17x17xf32>, vector<17x8xf32>, vector<17x8xf32> -> vector<17x8xf32>
    %280 = vector.extract_strided_slice %207 {offsets = [24, 0], sizes = [8, 32], strides = [1, 1]} : vector<32x32xf32> to vector<8x32xf32>
    %cst_106 = arith.constant dense<0.000000e+00> : vector<17x32xf32>
    %281 = tpu.matmul %279, %280, %cst_106 {dimension_numbers = #tpu.dot_dimension_numbers<[1], [0], [0], [1], [0, 0, 1, 1], [], []>} : vector<17x8xf32>, vector<8x32xf32>, vector<17x32xf32> -> vector<17x32xf32>
    %282 = arith.addf %263, %281 : vector<17x32xf32>
    %283 = arith.addf %172, %282 : vector<17x32xf32>
    %c1_107 = arith.constant 1 : index
    %c0_108 = arith.constant 0 : index
    %c0_109 = arith.constant 0 : index
    %284 = vector.load %arg8[%c1_107, %c0_108, %c0_109] : memref<2x1x32xf32, #tpu.memory_space<vmem>>, vector<1x1x32xf32>
    %285 = vector.shape_cast %284 : vector<1x1x32xf32> to vector<1x32xf32>
    %286 = vector.broadcast %285 : vector<1x32xf32> to vector<17x32xf32>
    %287 = arith.addf %283, %286 : vector<17x32xf32>
    %288 = vector.extract_strided_slice %174 {offsets = [2, 0], sizes = [1, 32], strides = [1, 1]} : vector<4x32xf32> to vector<1x32xf32>
    %289 = vector.extract_strided_slice %174 {offsets = [3, 0], sizes = [1, 32], strides = [1, 1]} : vector<4x32xf32> to vector<1x32xf32>
    %cst_110 = arith.constant dense<0.000000e+00> : vector<17xf32>
    %290 = vector.multi_reduction <add>, %287, %cst_110 [1] : vector<17x32xf32> to vector<17xf32>
    %291 = vector.shape_cast %290 : vector<17xf32> to vector<17x1xf32>
    %cst_111 = arith.constant 3.200000e+01 : f32
    %292 = vector.broadcast %cst_111 : f32 to vector<17x1xf32>
    %293 = arith.divf %291, %292 : vector<17x1xf32>
    %294 = vector.broadcast %293 : vector<17x1xf32> to vector<17x32xf32>
    %295 = arith.subf %287, %294 : vector<17x32xf32>
    %296 = arith.mulf %295, %295 : vector<17x32xf32>
    %cst_112 = arith.constant dense<0.000000e+00> : vector<17xf32>
    %297 = vector.multi_reduction <add>, %296, %cst_112 [1] : vector<17x32xf32> to vector<17xf32>
    %298 = vector.shape_cast %297 : vector<17xf32> to vector<17x1xf32>
    %cst_113 = arith.constant 3.200000e+01 : f32
    %299 = vector.broadcast %cst_113 : f32 to vector<17x1xf32>
    %300 = arith.divf %298, %299 : vector<17x1xf32>
    %301 = vector.broadcast %293 : vector<17x1xf32> to vector<17x32xf32>
    %302 = arith.subf %287, %301 : vector<17x32xf32>
    %cst_114 = arith.constant 9.99999997E-7 : f32
    %303 = vector.broadcast %cst_114 : f32 to vector<17x1xf32>
    %304 = arith.addf %300, %303 : vector<17x1xf32>
    %305 = math.rsqrt %304 : vector<17x1xf32>
    %306 = vector.broadcast %305 : vector<17x1xf32> to vector<17x32xf32>
    %307 = arith.mulf %302, %306 : vector<17x32xf32>
    %308 = vector.broadcast %288 : vector<1x32xf32> to vector<17x32xf32>
    %309 = arith.mulf %307, %308 : vector<17x32xf32>
    %310 = vector.broadcast %289 : vector<1x32xf32> to vector<17x32xf32>
    %311 = arith.addf %309, %310 : vector<17x32xf32>
    %c1_115 = arith.constant 1 : index
    %c0_116 = arith.constant 0 : index
    %c0_117 = arith.constant 0 : index
    %312 = vector.load %arg9[%c1_115, %c0_116, %c0_117] : memref<2x32x64xf32, #tpu.memory_space<vmem>>, vector<1x32x64xf32>
    %313 = vector.shape_cast %312 : vector<1x32x64xf32> to vector<32x64xf32>
    %cst_118 = arith.constant dense<0.000000e+00> : vector<17x64xf32>
    %314 = tpu.matmul %311, %313, %cst_118 {dimension_numbers = #tpu.dot_dimension_numbers<[1], [0], [0], [1], [0, 0, 1, 1], [], []>} : vector<17x32xf32>, vector<32x64xf32>, vector<17x64xf32> -> vector<17x64xf32>
    %c1_119 = arith.constant 1 : index
    %c0_120 = arith.constant 0 : index
    %c0_121 = arith.constant 0 : index
    %315 = vector.load %arg10[%c1_119, %c0_120, %c0_121] : memref<2x1x64xf32, #tpu.memory_space<vmem>>, vector<1x1x64xf32>
    %316 = vector.shape_cast %315 : vector<1x1x64xf32> to vector<1x64xf32>
    %317 = vector.broadcast %316 : vector<1x64xf32> to vector<17x64xf32>
    %318 = arith.addf %314, %317 : vector<17x64xf32>
    %cst_122 = arith.constant 5.000000e-01 : f32
    %319 = vector.broadcast %cst_122 : f32 to vector<17x64xf32>
    %320 = arith.mulf %319, %318 : vector<17x64xf32>
    %cst_123 = arith.constant 4.471500e-02 : f32
    %321 = vector.broadcast %cst_123 : f32 to vector<17x64xf32>
    %322 = arith.mulf %321, %318 : vector<17x64xf32>
    %323 = arith.mulf %322, %318 : vector<17x64xf32>
    %324 = arith.mulf %323, %318 : vector<17x64xf32>
    %325 = arith.addf %318, %324 : vector<17x64xf32>
    %cst_124 = arith.constant 0.797884583 : f32
    %326 = vector.broadcast %cst_124 : f32 to vector<17x64xf32>
    %327 = arith.mulf %326, %325 : vector<17x64xf32>
    %328 = math.tanh %327 : vector<17x64xf32>
    %cst_125 = arith.constant 1.000000e+00 : f32
    %329 = vector.broadcast %cst_125 : f32 to vector<17x64xf32>
    %330 = arith.addf %329, %328 : vector<17x64xf32>
    %331 = arith.mulf %320, %330 : vector<17x64xf32>
    %c1_126 = arith.constant 1 : index
    %c0_127 = arith.constant 0 : index
    %c0_128 = arith.constant 0 : index
    %332 = vector.load %arg11[%c1_126, %c0_127, %c0_128] : memref<2x64x32xf32, #tpu.memory_space<vmem>>, vector<1x64x32xf32>
    %333 = vector.shape_cast %332 : vector<1x64x32xf32> to vector<64x32xf32>
    %cst_129 = arith.constant dense<0.000000e+00> : vector<17x32xf32>
    %334 = tpu.matmul %331, %333, %cst_129 {dimension_numbers = #tpu.dot_dimension_numbers<[1], [0], [0], [1], [0, 0, 1, 1], [], []>} : vector<17x64xf32>, vector<64x32xf32>, vector<17x32xf32> -> vector<17x32xf32>
    %c1_130 = arith.constant 1 : index
    %c0_131 = arith.constant 0 : index
    %c0_132 = arith.constant 0 : index
    %335 = vector.load %arg12[%c1_130, %c0_131, %c0_132] : memref<2x1x32xf32, #tpu.memory_space<vmem>>, vector<1x1x32xf32>
    %336 = vector.shape_cast %335 : vector<1x1x32xf32> to vector<1x32xf32>
    %337 = vector.broadcast %336 : vector<1x32xf32> to vector<17x32xf32>
    %338 = arith.addf %334, %337 : vector<17x32xf32>
    %339 = arith.addf %287, %338 : vector<17x32xf32>
    %340 = vector.extract_strided_slice %339 {offsets = [0, 0], sizes = [1, 32], strides = [1, 1]} : vector<17x32xf32> to vector<1x32xf32>
    %c0_133 = arith.constant 0 : index
    %c0_134 = arith.constant 0 : index
    %341 = vector.load %arg13[%c0_133, %c0_134] : memref<1x32xf32, #tpu.memory_space<vmem>>, vector<1x32xf32>
    %c0_135 = arith.constant 0 : index
    %c0_136 = arith.constant 0 : index
    %342 = vector.load %arg14[%c0_135, %c0_136] : memref<1x32xf32, #tpu.memory_space<vmem>>, vector<1x32xf32>
    %cst_137 = arith.constant dense<0.000000e+00> : vector<1xf32>
    %343 = vector.multi_reduction <add>, %340, %cst_137 [1] : vector<1x32xf32> to vector<1xf32>
    %344 = vector.shape_cast %343 : vector<1xf32> to vector<1x1xf32>
    %cst_138 = arith.constant 3.200000e+01 : f32
    %345 = vector.broadcast %cst_138 : f32 to vector<1x1xf32>
    %346 = arith.divf %344, %345 : vector<1x1xf32>
    %347 = vector.broadcast %346 : vector<1x1xf32> to vector<1x32xf32>
    %348 = arith.subf %340, %347 : vector<1x32xf32>
    %349 = arith.mulf %348, %348 : vector<1x32xf32>
    %cst_139 = arith.constant dense<0.000000e+00> : vector<1xf32>
    %350 = vector.multi_reduction <add>, %349, %cst_139 [1] : vector<1x32xf32> to vector<1xf32>
    %351 = vector.shape_cast %350 : vector<1xf32> to vector<1x1xf32>
    %cst_140 = arith.constant 3.200000e+01 : f32
    %352 = vector.broadcast %cst_140 : f32 to vector<1x1xf32>
    %353 = arith.divf %351, %352 : vector<1x1xf32>
    %354 = vector.broadcast %346 : vector<1x1xf32> to vector<1x32xf32>
    %355 = arith.subf %340, %354 : vector<1x32xf32>
    %cst_141 = arith.constant 9.99999997E-7 : f32
    %356 = vector.broadcast %cst_141 : f32 to vector<1x1xf32>
    %357 = arith.addf %353, %356 : vector<1x1xf32>
    %358 = math.rsqrt %357 : vector<1x1xf32>
    %359 = vector.broadcast %358 : vector<1x1xf32> to vector<1x32xf32>
    %360 = arith.mulf %355, %359 : vector<1x32xf32>
    %361 = arith.mulf %360, %341 : vector<1x32xf32>
    %362 = arith.addf %361, %342 : vector<1x32xf32>
    %c0_142 = arith.constant 0 : index
    %c0_143 = arith.constant 0 : index
    %363 = vector.load %arg15[%c0_142, %c0_143] : memref<32x8xf32, #tpu.memory_space<vmem>>, vector<32x8xf32>
    %cst_144 = arith.constant dense<0.000000e+00> : vector<1x8xf32>
    %364 = tpu.matmul %362, %363, %cst_144 {dimension_numbers = #tpu.dot_dimension_numbers<[1], [0], [0], [1], [0, 0, 1, 1], [], []>} : vector<1x32xf32>, vector<32x8xf32>, vector<1x8xf32> -> vector<1x8xf32>
    %c0_145 = arith.constant 0 : index
    %c0_146 = arith.constant 0 : index
    %365 = vector.load %arg16[%c0_145, %c0_146] : memref<1x8xf32, #tpu.memory_space<vmem>>, vector<1x8xf32>
    %366 = arith.addf %364, %365 : vector<1x8xf32>
    %367 = math.tanh %366 : vector<1x8xf32>
    %c0_147 = arith.constant 0 : index
    %c0_148 = arith.constant 0 : index
    %c0_149 = arith.constant 0 : index
    %368 = vector.load %arg17[%c0_147, %c0_148, %c0_149] : memref<1x1x8xf32, #tpu.memory_space<vmem>>, vector<1x1x8xf32>
    %369 = vector.shape_cast %368 : vector<1x1x8xf32> to vector<1x8xf32>
    %370 = vector.shape_cast %367 : vector<1x8xf32> to vector<1x1x8xf32>
    tpu.vector_store %arg17[%c0_147, %c0_148, %c0_149], %370 {strides = array<i32>} : memref<1x1x8xf32, #tpu.memory_space<vmem>>, vector<1x1x8xf32>,
    return
  }
  func.func @transform_0(%arg0: i32) -> (i32, i32, i32) {
    %c0_i32 = arith.constant 0 : i32
    %c0_i32_0 = arith.constant 0 : i32
    %c0_i32_1 = arith.constant 0 : i32
    return %arg0, %c0_i32, %c0_i32_0 : i32, i32, i32
  }
  func.func @transform_1(%arg0: i32) -> (i32, i32) {
    %c0_i32 = arith.constant 0 : i32
    %c0_i32_0 = arith.constant 0 : i32
    %c0_i32_1 = arith.constant 0 : i32
    return %c0_i32, %c0_i32_0 : i32, i32
  }
  func.func @transform_2(%arg0: i32) -> (i32, i32) {
    %c0_i32 = arith.constant 0 : i32
    %c0_i32_0 = arith.constant 0 : i32
    %c0_i32_1 = arith.constant 0 : i32
    return %c0_i32, %c0_i32_0 : i32, i32
  }
  func.func @transform_3(%arg0: i32) -> (i32, i32, i32) {
    %c0_i32 = arith.constant 0 : i32
    %c0_i32_0 = arith.constant 0 : i32
    %c0_i32_1 = arith.constant 0 : i32
    %c0_i32_2 = arith.constant 0 : i32
    return %c0_i32, %c0_i32_0, %c0_i32_1 : i32, i32, i32
  }
  func.func @transform_4(%arg0: i32) -> (i32, i32, i32) {
    %c0_i32 = arith.constant 0 : i32
    %c0_i32_0 = arith.constant 0 : i32
    %c0_i32_1 = arith.constant 0 : i32
    %c0_i32_2 = arith.constant 0 : i32
    return %c0_i32, %c0_i32_0, %c0_i32_1 : i32, i32, i32
  }
  func.func @transform_5(%arg0: i32) -> (i32, i32, i32) {
    %c0_i32 = arith.constant 0 : i32
    %c0_i32_0 = arith.constant 0 : i32
    %c0_i32_1 = arith.constant 0 : i32
    %c0_i32_2 = arith.constant 0 : i32
    return %c0_i32, %c0_i32_0, %c0_i32_1 : i32, i32, i32
  }
  func.func @transform_6(%arg0: i32) -> (i32, i32, i32) {
    %c0_i32 = arith.constant 0 : i32
    %c0_i32_0 = arith.constant 0 : i32
    %c0_i32_1 = arith.constant 0 : i32
    %c0_i32_2 = arith.constant 0 : i32
    return %c0_i32, %c0_i32_0, %c0_i32_1 : i32, i32, i32
  }
  func.func @transform_7(%arg0: i32) -> (i32, i32, i32) {
    %c0_i32 = arith.constant 0 : i32
    %c0_i32_0 = arith.constant 0 : i32
    %c0_i32_1 = arith.constant 0 : i32
    %c0_i32_2 = arith.constant 0 : i32
    return %c0_i32, %c0_i32_0, %c0_i32_1 : i32, i32, i32
  }
  func.func @transform_8(%arg0: i32) -> (i32, i32, i32) {
    %c0_i32 = arith.constant 0 : i32
    %c0_i32_0 = arith.constant 0 : i32
    %c0_i32_1 = arith.constant 0 : i32
    %c0_i32_2 = arith.constant 0 : i32
    return %c0_i32, %c0_i32_0, %c0_i32_1 : i32, i32, i32
  }
  func.func @transform_9(%arg0: i32) -> (i32, i32, i32) {
    %c0_i32 = arith.constant 0 : i32
    %c0_i32_0 = arith.constant 0 : i32
    %c0_i32_1 = arith.constant 0 : i32
    %c0_i32_2 = arith.constant 0 : i32
    return %c0_i32, %c0_i32_0, %c0_i32_1 : i32, i32, i32
  }
  func.func @transform_10(%arg0: i32) -> (i32, i32, i32) {
    %c0_i32 = arith.constant 0 : i32
    %c0_i32_0 = arith.constant 0 : i32
    %c0_i32_1 = arith.constant 0 : i32
    %c0_i32_2 = arith.constant 0 : i32
    return %c0_i32, %c0_i32_0, %c0_i32_1 : i32, i32, i32
  }
  func.func @transform_11(%arg0: i32) -> (i32, i32, i32) {
    %c0_i32 = arith.constant 0 : i32
    %c0_i32_0 = arith.constant 0 : i32
    %c0_i32_1 = arith.constant 0 : i32
    %c0_i32_2 = arith.constant 0 : i32
    return %c0_i32, %c0_i32_0, %c0_i32_1 : i32, i32, i32
  }
  func.func @transform_12(%arg0: i32) -> (i32, i32) {
    %c0_i32 = arith.constant 0 : i32
    %c0_i32_0 = arith.constant 0 : i32
    %c0_i32_1 = arith.constant 0 : i32
    return %c0_i32, %c0_i32_0 : i32, i32
  }
  func.func @transform_13(%arg0: i32) -> (i32, i32) {
    %c0_i32 = arith.constant 0 : i32
    %c0_i32_0 = arith.constant 0 : i32
    %c0_i32_1 = arith.constant 0 : i32
    return %c0_i32, %c0_i32_0 : i32, i32
  }
  func.func @transform_14(%arg0: i32) -> (i32, i32) {
    %c0_i32 = arith.constant 0 : i32
    %c0_i32_0 = arith.constant 0 : i32
    %c0_i32_1 = arith.constant 0 : i32
    return %c0_i32, %c0_i32_0 : i32, i32
  }
  func.func @transform_15(%arg0: i32) -> (i32, i32) {
    %c0_i32 = arith.constant 0 : i32
    %c0_i32_0 = arith.constant 0 : i32
    %c0_i32_1 = arith.constant 0 : i32
    return %c0_i32, %c0_i32_0 : i32, i32
  }
  func.func @transform_16(%arg0: i32) -> (i32, i32, i32) {
    %c0_i32 = arith.constant 0 : i32
    %c0_i32_0 = arith.constant 0 : i32
    %c0_i32_1 = arith.constant 0 : i32
    return %arg0, %c0_i32, %c0_i32_0 : i32, i32, i32
  }
}

</mosaic_0001>

<llo_original>
// kernel: retrieval_model_forward.1
$region0: #{retrieval_model_forward.1}
  #allocation0 [shape = 'u32[]', space=smem, size = 0x4, offset = 0x4, fixed_abs, tag = 'smem constant byte address 0x4 - core index']
  #allocation1 [shape = 'u32[144,128]{1,0:T(1,128)}', space=vmem, size = 0x12000, scoped, tag = 'internal scratch']
  %s0 = inlined_call_operand.vmem [shape: f32[2,17,48], index: 0, kind: input, shape index: {}]
  %s1 = inlined_call_operand.vmem [shape: f32[48,32], index: 1, kind: input, shape index: {}]
  %s2 = inlined_call_operand.vmem [shape: f32[17,32], index: 2, kind: input, shape index: {}]
  %s3 = inlined_call_operand.vmem [shape: f32[2,4,32], index: 3, kind: input, shape index: {}]
  %s4 = inlined_call_operand.vmem [shape: f32[2,32,96], index: 4, kind: input, shape index: {}]
  %s5 = inlined_call_operand.vmem [shape: f32[2,1,96], index: 5, kind: input, shape index: {}]
  %s6 = inlined_call_operand.vmem [shape: f32[2,32,32], index: 6, kind: input, shape index: {}]
  %s7 = inlined_call_operand.vmem [shape: f32[2,1,32], index: 7, kind: input, shape index: {}]
  %s8 = inlined_call_operand.vmem [shape: f32[2,32,64], index: 8, kind: input, shape index: {}]
  %s9 = inlined_call_operand.vmem [shape: f32[2,1,64], index: 9, kind: input, shape index: {}]
  %s10 = inlined_call_operand.vmem [shape: f32[2,64,32], index: 10, kind: input, shape index: {}]
  %s11 = inlined_call_operand.vmem [shape: f32[2,1,32], index: 11, kind: input, shape index: {}]
  %s12 = inlined_call_operand.vmem [shape: f32[1,32], index: 12, kind: input, shape index: {}]
  %s13 = inlined_call_operand.vmem [shape: f32[1,32], index: 13, kind: input, shape index: {}]
  %s14 = inlined_call_operand.vmem [shape: f32[32,8], index: 14, kind: input, shape index: {}]
  %s15 = inlined_call_operand.vmem [shape: f32[1,8], index: 15, kind: input, shape index: {}]
  %s16 = inlined_call_operand.hbm [shape: f32[2,1,8], index: 16, kind: output, shape index: {}]
  %s17 = sld [smem:[#allocation0]]
  $region97: #{retrieval_model_forward.1} parent=0
    _
  %s19 = ssub.s32 1, %s17
  %s20 = scalar_select 0, %s19, %s17
  $region1: #{retrieval_model_forward.1} parent=0
    #allocation2 [shape = 'u8[1024]{0}', space=vmem, size = 0x400, scoped, tag = 'output window, operand 0']
    #allocation3 [shape = 's32[2]{0}', space=sflag, size = 0x8, scoped, tag = 'scoped memory for retrieval_model_forward.1']
    %21 = vsyncpa [#allocation3], 0
    %s22 = scalar_lea.sflag [#allocation3], 1
    %23 = vsyncpa %s22, 0
    loop: start=0, step=1, limit=4
    $region2: #{retrieval_model_forward.1} parent=1 // loop_pre_header
      _
    $region3: #{retrieval_model_forward.1} parent=1 // loop_header
      %s25 = sphi 0, %s29
      %p26 = scmp.ge.s32.totalorder %s25, 4
      %s35 = sphi 0, %s37
      %s38 = sphi 0, %s35
      %s39 = sphi 0, %s38
      %s55 = sphi 0, %s39
      %s59 = sphi 0, %s59
      %s61 = sphi 0, %s59
      %s62 = sphi 0, %s61
      %s76 = sphi 0, %s62
      %s80 = sphi 0, %s80
      %s82 = sphi 0, %s80
      %s83 = sphi 0, %s82
      %s97 = sphi 0, %s83
      %s101 = sphi 0, %s101
      %s103 = sphi 0, %s101
      %s104 = sphi 0, %s103
      %s118 = sphi 0, %s104
      %s122 = sphi 0, %s122
      %s124 = sphi 0, %s122
      %s125 = sphi 0, %s124
      %s139 = sphi 0, %s125
      %s143 = sphi 0, %s143
      %s145 = sphi 0, %s143
      %s146 = sphi 0, %s145
      %s160 = sphi 0, %s146
      %s164 = sphi 0, %s164
      %s166 = sphi 0, %s164
      %s167 = sphi 0, %s166
      %s181 = sphi 0, %s167
      %s185 = sphi 0, %s185
      %s187 = sphi 0, %s185
      %s188 = sphi 0, %s187
      %s202 = sphi 0, %s188
      %s206 = sphi 0, %s206
      %s208 = sphi 0, %s206
      %s209 = sphi 0, %s208
      %s223 = sphi 0, %s209
      %s227 = sphi 0, %s227
      %s229 = sphi 0, %s227
      %s230 = sphi 0, %s229
      %s244 = sphi 0, %s230
      %s248 = sphi 0, %s248
      %s250 = sphi 0, %s248
      %s251 = sphi 0, %s250
      %s265 = sphi 0, %s251
      %s269 = sphi 0, %s269
      %s271 = sphi 0, %s269
      %s272 = sphi 0, %s271
      %s286 = sphi 0, %s272
      %s290 = sphi 0, %s290
      %s292 = sphi 0, %s290
      %s293 = sphi 0, %s292
      %s307 = sphi 0, %s293
      %s311 = sphi 0, %s311
      %s313 = sphi 0, %s311
      %s314 = sphi 0, %s313
      %s328 = sphi 0, %s314
      %s332 = sphi 0, %s332
      %s334 = sphi 0, %s332
      %s335 = sphi 0, %s334
      %s349 = sphi 0, %s335
      %s353 = sphi 0, %s353
      %s355 = sphi 0, %s353
      %s356 = sphi 0, %s355
      %s370 = sphi 0, %s356
      %s376 = sphi 0, %s378
      %s379 = sphi 0, %s376
      %s380 = sphi 0, %s379
      %s396 = sphi 0, %s380
    $region4: #{retrieval_model_forward.1} parent=1 // loop_header_branch
      %28 = sbr.rel (%p26) target = $region8
    $region5: #{retrieval_model_forward.1} parent=1 // loop_body
      %s30 = ssub.s32 %s25, 1
      %s31 = ssub.s32 %s25, 2
      %s32 = sadd.s32 %s25, 1
      %s33 = ssub.s32 %s25, %s32
      %p34 = scmp.eq.s32.totalorder %s33, 0
      %s36 = sadd.s32 %s35, 1
      %s37 = scalar_select %p34, %s35, %s36
      %p40 = pneg %p34
      %p41 = scmp.eq.s32.totalorder %s25, 1
      %p42 = por %p40, %p41
      %p43 = scmp.ne.s32.totalorder %s35, %s38
      %p44 = scmp.eq.s32.totalorder %s25, 0
      %p45 = por %p43, %p44
      %p46 = scmp.ne.s32.totalorder %s35, %s38
      %p47 = scmp.eq.s32.totalorder %s30, 1
      %p48 = por %p46, %p47
      %p49 = scmp.ne.s32.totalorder %s38, %s39
      %p50 = scmp.eq.s32.totalorder %s30, 0
      %p51 = por %p49, %p50
      %p52 = scmp.ne.s32.totalorder %s38, %s39
      %p53 = scmp.eq.s32.totalorder %s31, 1
      %p54 = por %p52, %p53
      %p56 = scmp.ne.s32.totalorder %s39, %s55
      %p57 = scmp.eq.s32.totalorder %s31, 0
      %p58 = por %p56, %p57
      %s60 = sadd.s32 %s59, 1
      %p63 = scmp.eq.s32.totalorder %s25, 1
      %p64 = scmp.ne.s32.totalorder %s59, %s61
      %p65 = scmp.eq.s32.totalorder %s25, 0
      %p66 = por %p64, %p65
      %p67 = scmp.ne.s32.totalorder %s59, %s61
      %p68 = scmp.eq.s32.totalorder %s30, 1
      %p69 = por %p67, %p68
      %p70 = scmp.ne.s32.totalorder %s61, %s62
      %p71 = scmp.eq.s32.totalorder %s30, 0
      %p72 = por %p70, %p71
      %p73 = scmp.ne.s32.totalorder %s61, %s62
      %p74 = scmp.eq.s32.totalorder %s31, 1
      %p75 = por %p73, %p74
      %p77 = scmp.ne.s32.totalorder %s62, %s76
      %p78 = scmp.eq.s32.totalorder %s31, 0
      %p79 = por %p77, %p78
      %s81 = sadd.s32 %s80, 1
      %p84 = scmp.eq.s32.totalorder %s25, 1
      %p85 = scmp.ne.s32.totalorder %s80, %s82
      %p86 = scmp.eq.s32.totalorder %s25, 0
      %p87 = por %p85, %p86
      %p88 = scmp.ne.s32.totalorder %s80, %s82
      %p89 = scmp.eq.s32.totalorder %s30, 1
      %p90 = por %p88, %p89
      %p91 = scmp.ne.s32.totalorder %s82, %s83
      %p92 = scmp.eq.s32.totalorder %s30, 0
      %p93 = por %p91, %p92
      %p94 = scmp.ne.s32.totalorder %s82, %s83
      %p95 = scmp.eq.s32.totalorder %s31, 1
      %p96 = por %p94, %p95
      %p98 = scmp.ne.s32.totalorder %s83, %s97
      %p99 = scmp.eq.s32.totalorder %s31, 0
      %p100 = por %p98, %p99
      %s102 = sadd.s32 %s101, 1
      %p105 = scmp.eq.s32.totalorder %s25, 1
      %p106 = scmp.ne.s32.totalorder %s101, %s103
      %p107 = scmp.eq.s32.totalorder %s25, 0
      %p108 = por %p106, %p107
      %p109 = scmp.ne.s32.totalorder %s101, %s103
      %p110 = scmp.eq.s32.totalorder %s30, 1
      %p111 = por %p109, %p110
      %p112 = scmp.ne.s32.totalorder %s103, %s104
      %p113 = scmp.eq.s32.totalorder %s30, 0
      %p114 = por %p112, %p113
      %p115 = scmp.ne.s32.totalorder %s103, %s104
      %p116 = scmp.eq.s32.totalorder %s31, 1
      %p117 = por %p115, %p116
      %p119 = scmp.ne.s32.totalorder %s104, %s118
      %p120 = scmp.eq.s32.totalorder %s31, 0
      %p121 = por %p119, %p120
      %s123 = sadd.s32 %s122, 1
      %p126 = scmp.eq.s32.totalorder %s25, 1
      %p127 = scmp.ne.s32.totalorder %s122, %s124
      %p128 = scmp.eq.s32.totalorder %s25, 0
      %p129 = por %p127, %p128
      %p130 = scmp.ne.s32.totalorder %s122, %s124
      %p131 = scmp.eq.s32.totalorder %s30, 1
      %p132 = por %p130, %p131
      %p133 = scmp.ne.s32.totalorder %s124, %s125
      %p134 = scmp.eq.s32.totalorder %s30, 0
      %p135 = por %p133, %p134
      %p136 = scmp.ne.s32.totalorder %s124, %s125
      %p137 = scmp.eq.s32.totalorder %s31, 1
      %p138 = por %p136, %p137
      %p140 = scmp.ne.s32.totalorder %s125, %s139
      %p141 = scmp.eq.s32.totalorder %s31, 0
      %p142 = por %p140, %p141
      %s144 = sadd.s32 %s143, 1
      %p147 = scmp.eq.s32.totalorder %s25, 1
      %p148 = scmp.ne.s32.totalorder %s143, %s145
      %p149 = scmp.eq.s32.totalorder %s25, 0
      %p150 = por %p148, %p149
      %p151 = scmp.ne.s32.totalorder %s143, %s145
      %p152 = scmp.eq.s32.totalorder %s30, 1
      %p153 = por %p151, %p152
      %p154 = scmp.ne.s32.totalorder %s145, %s146
      %p155 = scmp.eq.s32.totalorder %s30, 0
      %p156 = por %p154, %p155
      %p157 = scmp.ne.s32.totalorder %s145, %s146
      %p158 = scmp.eq.s32.totalorder %s31, 1
      %p159 = por %p157, %p158
      %p161 = scmp.ne.s32.totalorder %s146, %s160
      %p162 = scmp.eq.s32.totalorder %s31, 0
      %p163 = por %p161, %p162
      %s165 = sadd.s32 %s164, 1
      %p168 = scmp.eq.s32.totalorder %s25, 1
      %p169 = scmp.ne.s32.totalorder %s164, %s166
      %p170 = scmp.eq.s32.totalorder %s25, 0
      %p171 = por %p169, %p170
      %p172 = scmp.ne.s32.totalorder %s164, %s166
      %p173 = scmp.eq.s32.totalorder %s30, 1
      %p174 = por %p172, %p173
      %p175 = scmp.ne.s32.totalorder %s166, %s167
      %p176 = scmp.eq.s32.totalorder %s30, 0
      %p177 = por %p175, %p176
      %p178 = scmp.ne.s32.totalorder %s166, %s167
      %p179 = scmp.eq.s32.totalorder %s31, 1
      %p180 = por %p178, %p179
      %p182 = scmp.ne.s32.totalorder %s167, %s181
      %p183 = scmp.eq.s32.totalorder %s31, 0
      %p184 = por %p182, %p183
      %s186 = sadd.s32 %s185, 1
      %p189 = scmp.eq.s32.totalorder %s25, 1
      %p190 = scmp.ne.s32.totalorder %s185, %s187
      %p191 = scmp.eq.s32.totalorder %s25, 0
      %p192 = por %p190, %p191
      %p193 = scmp.ne.s32.totalorder %s185, %s187
      %p194 = scmp.eq.s32.totalorder %s30, 1
      %p195 = por %p193, %p194
      %p196 = scmp.ne.s32.totalorder %s187, %s188
      %p197 = scmp.eq.s32.totalorder %s30, 0
      %p198 = por %p196, %p197
      %p199 = scmp.ne.s32.totalorder %s187, %s188
      %p200 = scmp.eq.s32.totalorder %s31, 1
      %p201 = por %p199, %p200
      %p203 = scmp.ne.s32.totalorder %s188, %s202
      %p204 = scmp.eq.s32.totalorder %s31, 0
      %p205 = por %p203, %p204
      %s207 = sadd.s32 %s206, 1
      %p210 = scmp.eq.s32.totalorder %s25, 1
      %p211 = scmp.ne.s32.totalorder %s206, %s208
      %p212 = scmp.eq.s32.totalorder %s25, 0
      %p213 = por %p211, %p212
      %p214 = scmp.ne.s32.totalorder %s206, %s208
      %p215 = scmp.eq.s32.totalorder %s30, 1
      %p216 = por %p214, %p215
      %p217 = scmp.ne.s32.totalorder %s208, %s209
      %p218 = scmp.eq.s32.totalorder %s30, 0
      %p219 = por %p217, %p218
      %p220 = scmp.ne.s32.totalorder %s208, %s209
      %p221 = scmp.eq.s32.totalorder %s31, 1
      %p222 = por %p220, %p221
      %p224 = scmp.ne.s32.totalorder %s209, %s223
      %p225 = scmp.eq.s32.totalorder %s31, 0
      %p226 = por %p224, %p225
      %s228 = sadd.s32 %s227, 1
      %p231 = scmp.eq.s32.totalorder %s25, 1
      %p232 = scmp.ne.s32.totalorder %s227, %s229
      %p233 = scmp.eq.s32.totalorder %s25, 0
      %p234 = por %p232, %p233
      %p235 = scmp.ne.s32.totalorder %s227, %s229
      %p236 = scmp.eq.s32.totalorder %s30, 1
      %p237 = por %p235, %p236
      %p238 = scmp.ne.s32.totalorder %s229, %s230
      %p239 = scmp.eq.s32.totalorder %s30, 0
      %p240 = por %p238, %p239
      %p241 = scmp.ne.s32.totalorder %s229, %s230
      %p242 = scmp.eq.s32.totalorder %s31, 1
      %p243 = por %p241, %p242
      %p245 = scmp.ne.s32.totalorder %s230, %s244
      %p246 = scmp.eq.s32.totalorder %s31, 0
      %p247 = por %p245, %p246
      %s249 = sadd.s32 %s248, 1
      %p252 = scmp.eq.s32.totalorder %s25, 1
      %p253 = scmp.ne.s32.totalorder %s248, %s250
      %p254 = scmp.eq.s32.totalorder %s25, 0
      %p255 = por %p253, %p254
      %p256 = scmp.ne.s32.totalorder %s248, %s250
      %p257 = scmp.eq.s32.totalorder %s30, 1
      %p258 = por %p256, %p257
      %p259 = scmp.ne.s32.totalorder %s250, %s251
      %p260 = scmp.eq.s32.totalorder %s30, 0
      %p261 = por %p259, %p260
      %p262 = scmp.ne.s32.totalorder %s250, %s251
      %p263 = scmp.eq.s32.totalorder %s31, 1
      %p264 = por %p262, %p263
      %p266 = scmp.ne.s32.totalorder %s251, %s265
      %p267 = scmp.eq.s32.totalorder %s31, 0
      %p268 = por %p266, %p267
      %s270 = sadd.s32 %s269, 1
      %p273 = scmp.eq.s32.totalorder %s25, 1
      %p274 = scmp.ne.s32.totalorder %s269, %s271
      %p275 = scmp.eq.s32.totalorder %s25, 0
      %p276 = por %p274, %p275
      %p277 = scmp.ne.s32.totalorder %s269, %s271
      %p278 = scmp.eq.s32.totalorder %s30, 1
      %p279 = por %p277, %p278
      %p280 = scmp.ne.s32.totalorder %s271, %s272
      %p281 = scmp.eq.s32.totalorder %s30, 0
      %p282 = por %p280, %p281
      %p283 = scmp.ne.s32.totalorder %s271, %s272
      %p284 = scmp.eq.s32.totalorder %s31, 1
      %p285 = por %p283, %p284
      %p287 = scmp.ne.s32.totalorder %s272, %s286
      %p288 = scmp.eq.s32.totalorder %s31, 0
      %p289 = por %p287, %p288
      %s291 = sadd.s32 %s290, 1
      %p294 = scmp.eq.s32.totalorder %s25, 1
      %p295 = scmp.ne.s32.totalorder %s290, %s292
      %p296 = scmp.eq.s32.totalorder %s25, 0
      %p297 = por %p295, %p296
      %p298 = scmp.ne.s32.totalorder %s290, %s292
      %p299 = scmp.eq.s32.totalorder %s30, 1
      %p300 = por %p298, %p299
      %p301 = scmp.ne.s32.totalorder %s292, %s293
      %p302 = scmp.eq.s32.totalorder %s30, 0
      %p303 = por %p301, %p302
      %p304 = scmp.ne.s32.totalorder %s292, %s293
      %p305 = scmp.eq.s32.totalorder %s31, 1
      %p306 = por %p304, %p305
      %p308 = scmp.ne.s32.totalorder %s293, %s307
      %p309 = scmp.eq.s32.totalorder %s31, 0
      %p310 = por %p308, %p309
      %s312 = sadd.s32 %s311, 1
      %p315 = scmp.eq.s32.totalorder %s25, 1
      %p316 = scmp.ne.s32.totalorder %s311, %s313
      %p317 = scmp.eq.s32.totalorder %s25, 0
      %p318 = por %p316, %p317
      %p319 = scmp.ne.s32.totalorder %s311, %s313
      %p320 = scmp.eq.s32.totalorder %s30, 1
      %p321 = por %p319, %p320
      %p322 = scmp.ne.s32.totalorder %s313, %s314
      %p323 = scmp.eq.s32.totalorder %s30, 0
      %p324 = por %p322, %p323
      %p325 = scmp.ne.s32.totalorder %s313, %s314
      %p326 = scmp.eq.s32.totalorder %s31, 1
      %p327 = por %p325, %p326
      %p329 = scmp.ne.s32.totalorder %s314, %s328
      %p330 = scmp.eq.s32.totalorder %s31, 0
      %p331 = por %p329, %p330
      %s333 = sadd.s32 %s332, 1
      %p336 = scmp.eq.s32.totalorder %s25, 1
      %p337 = scmp.ne.s32.totalorder %s332, %s334
      %p338 = scmp.eq.s32.totalorder %s25, 0
      %p339 = por %p337, %p338
      %p340 = scmp.ne.s32.totalorder %s332, %s334
      %p341 = scmp.eq.s32.totalorder %s30, 1
      %p342 = por %p340, %p341
      %p343 = scmp.ne.s32.totalorder %s334, %s335
      %p344 = scmp.eq.s32.totalorder %s30, 0
      %p345 = por %p343, %p344
      %p346 = scmp.ne.s32.totalorder %s334, %s335
      %p347 = scmp.eq.s32.totalorder %s31, 1
      %p348 = por %p346, %p347
      %p350 = scmp.ne.s32.totalorder %s335, %s349
      %p351 = scmp.eq.s32.totalorder %s31, 0
      %p352 = por %p350, %p351
      %s354 = sadd.s32 %s353, 1
      %p357 = scmp.eq.s32.totalorder %s25, 1
      %p358 = scmp.ne.s32.totalorder %s353, %s355
      %p359 = scmp.eq.s32.totalorder %s25, 0
      %p360 = por %p358, %p359
      %p361 = scmp.ne.s32.totalorder %s353, %s355
      %p362 = scmp.eq.s32.totalorder %s30, 1
      %p363 = por %p361, %p362
      %p364 = scmp.ne.s32.totalorder %s355, %s356
      %p365 = scmp.eq.s32.totalorder %s30, 0
      %p366 = por %p364, %p365
      %p367 = scmp.ne.s32.totalorder %s355, %s356
      %p368 = scmp.eq.s32.totalorder %s31, 1
      %p369 = por %p367, %p368
      %p371 = scmp.ne.s32.totalorder %s356, %s370
      %p372 = scmp.eq.s32.totalorder %s31, 0
      %p373 = por %p371, %p372
      %s374 = ssub.s32 %s25, %s32
      %p375 = scmp.eq.s32.totalorder %s374, 0
      %s377 = sadd.s32 %s376, 1
      %s378 = scalar_select %p375, %s376, %s377
      %p381 = pneg %p375
      %p382 = scmp.eq.s32.totalorder %s25, 1
      %p383 = por %p381, %p382
      %p384 = scmp.ne.s32.totalorder %s376, %s379
      %p385 = scmp.eq.s32.totalorder %s25, 0
      %p386 = por %p384, %p385
      %p387 = scmp.ne.s32.totalorder %s376, %s379
      %p388 = scmp.eq.s32.totalorder %s30, 1
      %p389 = por %p387, %p388
      %p390 = scmp.ne.s32.totalorder %s379, %s380
      %p391 = scmp.eq.s32.totalorder %s30, 0
      %p392 = por %p390, %p391
      %p393 = scmp.ne.s32.totalorder %s379, %s380
      %p394 = scmp.eq.s32.totalorder %s31, 1
      %p395 = por %p393, %p394
      %p397 = scmp.ne.s32.totalorder %s380, %s396
      %p398 = scmp.eq.s32.totalorder %s31, 0
      %p399 = por %p397, %p398
      %p400 = scmp.le.s32.totalorder 1, %s25
      %p401 = scmp.lt.s32.totalorder %s25, 3
      %p402 = pnand %p400, %p401
      %p403 = pneg %p402
      // Predicated region
      $region9: #{retrieval_model_forward.1} parent=5 // pred_check
        _
      $region10: #{retrieval_model_forward.1} parent=5 // pred_check_branch
        %405 = sbr.rel (%p402) target = $region12
      $region11: #{retrieval_model_forward.1} parent=5 // pred_region
        %s406 = ssub.s32 %s25, 1
        // Predicated region
        $region13: #{retrieval_model_forward.1} parent=11 // pred_check
          %p407 = pneg %p72
        $region14: #{retrieval_model_forward.1} parent=11 // pred_check_branch
          %409 = sbr.rel (%p407) target = $region16
        $region15: #{retrieval_model_forward.1} parent=11 // pred_region
          _
        $region16: #{retrieval_model_forward.1} parent=11 // pred_fallthru
          _
        // Predicated region
        $region17: #{retrieval_model_forward.1} parent=11 // pred_check
          %p410 = pneg %p93
        $region18: #{retrieval_model_forward.1} parent=11 // pred_check_branch
          %412 = sbr.rel (%p410) target = $region20
        $region19: #{retrieval_model_forward.1} parent=11 // pred_region
          _
        $region20: #{retrieval_model_forward.1} parent=11 // pred_fallthru
          _
        // Predicated region
        $region21: #{retrieval_model_forward.1} parent=11 // pred_check
          %p413 = pneg %p114
        $region22: #{retrieval_model_forward.1} parent=11 // pred_check_branch
          %415 = sbr.rel (%p413) target = $region24
        $region23: #{retrieval_model_forward.1} parent=11 // pred_region
          _
        $region24: #{retrieval_model_forward.1} parent=11 // pred_fallthru
          _
        // Predicated region
        $region25: #{retrieval_model_forward.1} parent=11 // pred_check
          %p416 = pneg %p135
        $region26: #{retrieval_model_forward.1} parent=11 // pred_check_branch
          %418 = sbr.rel (%p416) target = $region28
        $region27: #{retrieval_model_forward.1} parent=11 // pred_region
          _
        $region28: #{retrieval_model_forward.1} parent=11 // pred_fallthru
          _
        // Predicated region
        $region29: #{retrieval_model_forward.1} parent=11 // pred_check
          %p419 = pneg %p156
        $region30: #{retrieval_model_forward.1} parent=11 // pred_check_branch
          %421 = sbr.rel (%p419) target = $region32
        $region31: #{retrieval_model_forward.1} parent=11 // pred_region
          _
        $region32: #{retrieval_model_forward.1} parent=11 // pred_fallthru
          _
        // Predicated region
        $region33: #{retrieval_model_forward.1} parent=11 // pred_check
          %p422 = pneg %p177
        $region34: #{retrieval_model_forward.1} parent=11 // pred_check_branch
          %424 = sbr.rel (%p422) target = $region36
        $region35: #{retrieval_model_forward.1} parent=11 // pred_region
          _
        $region36: #{retrieval_model_forward.1} parent=11 // pred_fallthru
          _
        // Predicated region
        $region37: #{retrieval_model_forward.1} parent=11 // pred_check
          %p425 = pneg %p198
        $region38: #{retrieval_model_forward.1} parent=11 // pred_check_branch
          %427 = sbr.rel (%p425) target = $region40
        $region39: #{retrieval_model_forward.1} parent=11 // pred_region
          _
        $region40: #{retrieval_model_forward.1} parent=11 // pred_fallthru
          _
        // Predicated region
        $region41: #{retrieval_model_forward.1} parent=11 // pred_check
          %p428 = pneg %p219
        $region42: #{retrieval_model_forward.1} parent=11 // pred_check_branch
          %430 = sbr.rel (%p428) target = $region44
        $region43: #{retrieval_model_forward.1} parent=11 // pred_region
          _
        $region44: #{retrieval_model_forward.1} parent=11 // pred_fallthru
          _
        // Predicated region
        $region45: #{retrieval_model_forward.1} parent=11 // pred_check
          %p431 = pneg %p240
        $region46: #{retrieval_model_forward.1} parent=11 // pred_check_branch
          %433 = sbr.rel (%p431) target = $region48
        $region47: #{retrieval_model_forward.1} parent=11 // pred_region
          _
        $region48: #{retrieval_model_forward.1} parent=11 // pred_fallthru
          _
        // Predicated region
        $region49: #{retrieval_model_forward.1} parent=11 // pred_check
          %p434 = pneg %p261
        $region50: #{retrieval_model_forward.1} parent=11 // pred_check_branch
          %436 = sbr.rel (%p434) target = $region52
        $region51: #{retrieval_model_forward.1} parent=11 // pred_region
          _
        $region52: #{retrieval_model_forward.1} parent=11 // pred_fallthru
          _
        // Predicated region
        $region53: #{retrieval_model_forward.1} parent=11 // pred_check
          %p437 = pneg %p282
        $region54: #{retrieval_model_forward.1} parent=11 // pred_check_branch
          %439 = sbr.rel (%p437) target = $region56
        $region55: #{retrieval_model_forward.1} parent=11 // pred_region
          _
        $region56: #{retrieval_model_forward.1} parent=11 // pred_fallthru
          _
        // Predicated region
        $region57: #{retrieval_model_forward.1} parent=11 // pred_check
          %p440 = pneg %p303
        $region58: #{retrieval_model_forward.1} parent=11 // pred_check_branch
          %442 = sbr.rel (%p440) target = $region60
        $region59: #{retrieval_model_forward.1} parent=11 // pred_region
          _
        $region60: #{retrieval_model_forward.1} parent=11 // pred_fallthru
          _
        // Predicated region
        $region61: #{retrieval_model_forward.1} parent=11 // pred_check
          %p443 = pneg %p324
        $region62: #{retrieval_model_forward.1} parent=11 // pred_check_branch
          %445 = sbr.rel (%p443) target = $region64
        $region63: #{retrieval_model_forward.1} parent=11 // pred_region
          _
        $region64: #{retrieval_model_forward.1} parent=11 // pred_fallthru
          _
        // Predicated region
        $region65: #{retrieval_model_forward.1} parent=11 // pred_check
          %p446 = pneg %p345
        $region66: #{retrieval_model_forward.1} parent=11 // pred_check_branch
          %448 = sbr.rel (%p446) target = $region68
        $region67: #{retrieval_model_forward.1} parent=11 // pred_region
          _
        $region68: #{retrieval_model_forward.1} parent=11 // pred_fallthru
          _
        // Predicated region
        $region69: #{retrieval_model_forward.1} parent=11 // pred_check
          %p449 = pneg %p366
        $region70: #{retrieval_model_forward.1} parent=11 // pred_check_branch
          %451 = sbr.rel (%p449) target = $region72
        $region71: #{retrieval_model_forward.1} parent=11 // pred_region
          _
        $region72: #{retrieval_model_forward.1} parent=11 // pred_fallthru
          _
      $region12: #{retrieval_model_forward.1} parent=5 // pred_fallthru
        _
      %p452 = scmp.lt.s32.totalorder %s25, 2
      // Predicated region
      $region73: #{retrieval_model_forward.1} parent=5 // pred_check
        %p453 = pneg %p452
      $region74: #{retrieval_model_forward.1} parent=5 // pred_check_branch
        %455 = sbr.rel (%p453) target = $region76
      $region75: #{retrieval_model_forward.1} parent=5 // pred_region
        // Predicated region
        $region77: #{retrieval_model_forward.1} parent=75 // pred_check
          %p456 = pneg %p45
        $region78: #{retrieval_model_forward.1} parent=75 // pred_check_branch
          %458 = sbr.rel (%p456) target = $region80
        $region79: #{retrieval_model_forward.1} parent=75 // pred_region
          %p459 = scmp.lt.s32.totalorder %s25, 1
          %s460 = scalar_select %p459, %s25, 1
          %s461 = smul.addr %s460, 3
          %s462 = smul.addr %s461, 8
          %s463 = scalar_lea.vmem %s0, %s462
        $region80: #{retrieval_model_forward.1} parent=75 // pred_fallthru
          _
      $region76: #{retrieval_model_forward.1} parent=5 // pred_fallthru
        _
      %p464 = scmp.le.s32.totalorder 1, %s25
      %p465 = scmp.lt.s32.totalorder %s25, 3
      %p466 = pnand %p464, %p465
      %p467 = pneg %p466
      // Predicated region
      $region81: #{retrieval_model_forward.1} parent=5 // pred_check
        _
      $region82: #{retrieval_model_forward.1} parent=5 // pred_check_branch
        %469 = sbr.rel (%p466) target = $region84
      $region83: #{retrieval_model_forward.1} parent=5 // pred_region
        %s470 = ssub.s32 %s25, 1
        %p471 = scmp.lt.s32.totalorder %s30, 1
        %s472 = scalar_select %p471, %s30, 1
        %s473 = smul.addr %s472, 3
        %s474 = smul.addr %s473, 8
        %s475 = scalar_lea.vmem %s0, %s474
        %p476 = pneg %p51
        %p477 = pneg %p48
        %p478 = pneg %p72
        %p479 = pneg %p69
        %p480 = pneg %p93
        %p481 = pneg %p90
        %p482 = pneg %p114
        %p483 = pneg %p111
        %p484 = pneg %p135
        %p485 = pneg %p132
        %p486 = pneg %p156
        %p487 = pneg %p153
        %p488 = pneg %p177
        %p489 = pneg %p174
        %p490 = pneg %p198
        %p491 = pneg %p195
        %p492 = pneg %p219
        %p493 = pneg %p216
        %p494 = pneg %p240
        %p495 = pneg %p237
        %p496 = pneg %p261
        %p497 = pneg %p258
        %p498 = pneg %p282
        %p499 = pneg %p279
        %p500 = pneg %p303
        %p501 = pneg %p300
        %p502 = pneg %p324
        %p503 = pneg %p321
        %p504 = pneg %p345
        %p505 = pneg %p342
        %p506 = pneg %p366
        %p507 = pneg %p363
        %p508 = pneg %p392
        %p509 = pneg %p389
        %s510 = sand.u32 %s379, 1
        %s511 = scalar_lea.sflag [#allocation3], %s510
        %s512 = sand.u32 %s379, 1
        %s513 = scalar_lea.vmem [#allocation2], %s512
        %p514 = scmp.lt.s32.totalorder %s30, 1
        %s515 = scalar_select %p514, %s30, 1
        %s516 = smul.addr %s515, 3
        %s517 = smul.addr %s516, 8
        %s518 = scalar_lea.vmem %s0, %s517
        %v519 = vld [vmem:[%s518] sm:$0xff]
        %v520 = vld [vmem:[%s518 + $0x8] sm:$0xff]
        %v521 = vld [vmem:[%s518 + $0x10] sm:$0x1]
        %v522 = vld [vmem:[%s1] sm:$0xff]
        %v523 = vld [vmem:[%s1 + $0x8] sm:$0xff]
        %v524 = vld [vmem:[%s1 + $0x10] sm:$0xff]
        %v525 = vld [vmem:[%s1 + $0x18] sm:$0xff]
        %v526 = vld [vmem:[%s1 + $0x20] sm:$0xff]
        %v527 = vld [vmem:[%s1 + $0x28] sm:$0xff]
        %v528 = vld [vmem:[%s2] sm:$0xff]
        %v529 = vld [vmem:[%s2 + $0x8] sm:$0xff]
        %v530 = vld [vmem:[%s2 + $0x10] sm:$0x1]
        %vm531 = vcmask 392192
        %v533 = vsel %vm531, %v519, 0
        %v536 = vsel %vm531, %v520, 0
        %v539 = vsel %vm531, %v521, 0
        %541 = vmatprep.subr.mxu0 0.0
        %542 = vmatpush1.msra.mxu0 %v522
        %543 = vmatprep.subr.mxu0 0.0
        %544 = vmatpush1.msra.mxu0 %v523
        %545 = vmatprep.subr.mxu0 0.0
        %546 = vmatpush1.msra.mxu0 %v524
        %547 = vmatprep.subr.mxu0 0.0
        %548 = vmatpush1.msra.mxu0 %v525
        %549 = vmatprep.subr.mxu0 0.0
        %550 = vmatpush1.msra.mxu0 %v526
        %551 = vmatprep.subr.mxu0 0.0
        %552 = vmatpush1.msra.mxu0 %v527
        %553 = vmatprep.subr.mxu0 0.0
        %554 = vmatpush1.msra.mxu0 0.0
        %555 = vmatprep.subr.mxu0 0.0
        %556 = vmatpush1.msra.mxu0 0.0
        %557 = vmatprep.subr.mxu0 0.0
        %558 = vmatpush1.msra.mxu0 0.0
        %559 = vmatprep.subr.mxu0 0.0
        %560 = vmatpush1.msra.mxu0 0.0
        %561 = vmatprep.subr.mxu0 0.0
        %562 = vmatpush1.msra.mxu0 0.0
        %563 = vmatprep.subr.mxu0 0.0
        %564 = vmatpush1.msra.mxu0 0.0
        %565 = vmatprep.subr.mxu0 0.0
        %566 = vmatpush1.msra.mxu0 0.0
        %567 = vmatprep.subr.mxu0 0.0
        %568 = vmatpush1.msra.mxu0 0.0
        %569 = vmatprep.subr.mxu0 0.0
        %570 = vmatpush1.msra.mxu0 0.0
        %571 = vmatprep.subr.mxu0 0.0
        %572 = vmatpush1.msra.mxu0 0.0
        %573 = vmatprep.subr.mxu0 0.0
        %574 = vmatpush1.msra.mxu0 0.0
        %575 = vmatprep.subr.mxu0 0.0
        %576 = vmatpush1.msra.mxu0 0.0
        %577 = vmatprep.subr.mxu0 0.0
        %578 = vmatpush1.msra.mxu0 0.0
        %579 = vmatprep.subr.mxu0 0.0
        %580 = vmatpush1.msra.mxu0 0.0
        %581 = vmatprep.subr.mxu0 0.0
        %582 = vmatpush1.msra.mxu0 0.0
        %583 = vmatprep.subr.mxu0 0.0
        %584 = vmatpush1.msra.mxu0 0.0
        %585 = vmatprep.subr.mxu0 0.0
        %586 = vmatpush1.msra.mxu0 0.0
        %587 = vmatprep.subr.mxu0 0.0
        %588 = vmatpush1.msra.mxu0 0.0
        %589 = vmatprep.subr.mxu0 0.0
        %590 = vmatpush1.msra.mxu0 0.0
        %591 = vmatprep.subr.mxu0 0.0
        %592 = vmatpush1.msra.mxu0 0.0
        %593 = vmatprep.subr.mxu0 0.0
        %594 = vmatpush1.msra.mxu0 0.0
        %595 = vmatprep.subr.mxu0 0.0
        %596 = vmatpush1.msra.mxu0 0.0
        %597 = vmatprep.subr.mxu0 0.0
        %598 = vmatpush1.msra.mxu0 0.0
        %599 = vmatprep.subr.mxu0 0.0
        %600 = vmatpush1.msra.mxu0 0.0
        %601 = vmatprep.subr.mxu0 0.0
        %602 = vmatpush1.msra.mxu0 0.0
        %603 = vmatprep.subr.mxu0 0.0
        %604 = vmatpush1.msra.mxu0 0.0
        %605 = vmatprep.mubr.f32.mxu0 0.0
        %606 = vmatmul.mubr.f32.gmra.mrb[0].mxu0 %v533
        %v607 = vpop.f32.mrb[0].mxu0
        %v608 = vadd.f32 %v528, %v607
        %v609 = vpop.f32.mrb[0].mxu0
        %610 = vmatprep.mubr.f32.mxu0 0.0
        %611 = vmatmul.mubr.f32.gmra.mrb[0].mxu0 %v536
        %v612 = vpop.f32.mrb[0].mxu0
        %v613 = vadd.f32 %v529, %v612
        %v614 = vpop.f32.mrb[0].mxu0
        %615 = vmatprep.mubr.f32.mxu0 0.0
        %616 = vmatmul.mubr.f32.gmra.mrb[0].mxu0 %v539
        %v617 = vpop.f32.mrb[0].mxu0
        %v618 = vadd.f32 %v530, %v617
        %v619 = vpop.f32.mrb[0].mxu0
        %620 = vdwg.mxu0
        %v621 = vld [vmem:[%s3] sm:$0xf]
        %vm622 = vcmask 261120
        %v623 = vsel %vm622, %v608, 0.0
        %624 = vadd.xlane.f32.xlu0 %v623
        %v625 = vpop.xlane.xlu0 %624
        %v626 = vsel %vm622, %v613, 0.0
        %627 = vadd.xlane.f32.xlu0 %v626
        %v628 = vpop.xlane.xlu0 %627
        %vm629 = vcmask 253952
        %v630 = vsel %vm629, %v618, 0.0
        %631 = vadd.xlane.f32.xlu0 %v630
        %v632 = vpop.xlane.xlu0 %631
        %v633 = vrcp.pop 32.0
        %v634 = vmul.f32 %v625, %v633
        %v635 = vmul.f32 %v628, %v633
        %v636 = vmul.f32 %v632, %v633
        %v637 = vsub.f32 %v608, %v634
        %v638 = vsub.f32 %v613, %v635
        %v639 = vsub.f32 %v618, %v636
        %v640 = vmul.f32 %v637, %v637
        %v641 = vmul.f32 %v638, %v638
        %v642 = vmul.f32 %v639, %v639
        %v643 = vsel %vm622, %v640, 0.0
        %644 = vadd.xlane.f32.xlu0 %v643
        %v645 = vpop.xlane.xlu0 %644
        %v646 = vsel %vm622, %v641, 0.0
        %647 = vadd.xlane.f32.xlu0 %v646
        %v648 = vpop.xlane.xlu0 %647
        %v649 = vsel %vm629, %v642, 0.0
        %650 = vadd.xlane.f32.xlu0 %v649
        %v651 = vpop.xlane.xlu0 %650
        %v652 = vmul.f32 %v645, %v633
        %v653 = vmul.f32 %v648, %v633
        %v654 = vmul.f32 %v651, %v633
        %v655 = vadd.f32 %v652, 1e-06
        %v656 = vadd.f32 %v653, 1e-06
        %v657 = vadd.f32 %v654, 1e-06
        %v658 = vrsqrt.pop %v655
        %v659 = vrsqrt.pop %v656
        %v660 = vrsqrt.pop %v657
        %v661 = vmul.f32 %v637, %v658
        %v662 = vmul.f32 %v638, %v659
        %v663 = vmul.f32 %v639, %v660
        %v664 = vlaneseq
        %v665 = vshrl.u32 %v664, 7
        %v666 = vsub.s32 0, %v665
        %v667 = vrot.slane %v621, %v666
        %v668 = vmul.f32 %v661, %v667
        %v669 = vmul.f32 %v662, %v667
        %v670 = vmul.f32 %v663, %v667
        %v671 = vlaneseq
        %v672 = vshrl.u32 %v671, 7
        %v673 = vsub.s32 1, %v672
        %v674 = vrot.slane %v621, %v673
        %v675 = vadd.f32 %v668, %v674
        %v676 = vadd.f32 %v669, %v674
        %v677 = vadd.f32 %v670, %v674
        %v678 = vld [vmem:[%s4] sm:$0xff]
        %v679 = vld [vmem:[%s4 + $0x8] sm:$0xff]
        %v680 = vld [vmem:[%s4 + $0x10] sm:$0xff]
        %v681 = vld [vmem:[%s4 + $0x18] sm:$0xff]
        %v682 = vld [vmem:[%s5] sm:$0x1]
        %v684 = vlaneseq
        %v685 = vshrl.u32 %v684, 7
        %v686 = vsub.s32 0, %v685
        %v687 = vrot.slane %v682, %v686
        %v690 = vsel %vm622, %v675, 0
        %v693 = vsel %vm622, %v676, 0
        %v696 = vsel %vm622, %v677, 0
        %698 = vmatprep.subr.mxu0 0.0
        %699 = vmatpush1.msra.mxu0 %v678
        %700 = vmatprep.subr.mxu0 0.0
        %701 = vmatpush1.msra.mxu0 %v679
        %702 = vmatprep.subr.mxu0 0.0
        %703 = vmatpush1.msra.mxu0 %v680
        %704 = vmatprep.subr.mxu0 0.0
        %705 = vmatpush1.msra.mxu0 %v681
        %706 = vmatprep.subr.mxu0 0.0
        %707 = vmatpush1.msra.mxu0 0.0
        %708 = vmatprep.subr.mxu0 0.0
        %709 = vmatpush1.msra.mxu0 0.0
        %710 = vmatprep.subr.mxu0 0.0
        %711 = vmatpush1.msra.mxu0 0.0
        %712 = vmatprep.subr.mxu0 0.0
        %713 = vmatpush1.msra.mxu0 0.0
        %714 = vmatprep.subr.mxu0 0.0
        %715 = vmatpush1.msra.mxu0 0.0
        %716 = vmatprep.subr.mxu0 0.0
        %717 = vmatpush1.msra.mxu0 0.0
        %718 = vmatprep.subr.mxu0 0.0
        %719 = vmatpush1.msra.mxu0 0.0
        %720 = vmatprep.subr.mxu0 0.0
        %721 = vmatpush1.msra.mxu0 0.0
        %722 = vmatprep.subr.mxu0 0.0
        %723 = vmatpush1.msra.mxu0 0.0
        %724 = vmatprep.subr.mxu0 0.0
        %725 = vmatpush1.msra.mxu0 0.0
        %726 = vmatprep.subr.mxu0 0.0
        %727 = vmatpush1.msra.mxu0 0.0
        %728 = vmatprep.subr.mxu0 0.0
        %729 = vmatpush1.msra.mxu0 0.0
        %730 = vmatprep.subr.mxu0 0.0
        %731 = vmatpush1.msra.mxu0 0.0
        %732 = vmatprep.subr.mxu0 0.0
        %733 = vmatpush1.msra.mxu0 0.0
        %734 = vmatprep.subr.mxu0 0.0
        %735 = vmatpush1.msra.mxu0 0.0
        %736 = vmatprep.subr.mxu0 0.0
        %737 = vmatpush1.msra.mxu0 0.0
        %738 = vmatprep.subr.mxu0 0.0
        %739 = vmatpush1.msra.mxu0 0.0
        %740 = vmatprep.subr.mxu0 0.0
        %741 = vmatpush1.msra.mxu0 0.0
        %742 = vmatprep.subr.mxu0 0.0
        %743 = vmatpush1.msra.mxu0 0.0
        %744 = vmatprep.subr.mxu0 0.0
        %745 = vmatpush1.msra.mxu0 0.0
        %746 = vmatprep.subr.mxu0 0.0
        %747 = vmatpush1.msra.mxu0 0.0
        %748 = vmatprep.subr.mxu0 0.0
        %749 = vmatpush1.msra.mxu0 0.0
        %750 = vmatprep.subr.mxu0 0.0
        %751 = vmatpush1.msra.mxu0 0.0
        %752 = vmatprep.subr.mxu0 0.0
        %753 = vmatpush1.msra.mxu0 0.0
        %754 = vmatprep.subr.mxu0 0.0
        %755 = vmatpush1.msra.mxu0 0.0
        %756 = vmatprep.subr.mxu0 0.0
        %757 = vmatpush1.msra.mxu0 0.0
        %758 = vmatprep.subr.mxu0 0.0
        %759 = vmatpush1.msra.mxu0 0.0
        %760 = vmatprep.subr.mxu0 0.0
        %761 = vmatpush1.msra.mxu0 0.0
        %762 = vmatprep.mubr.f32.mxu0 0.0
        %763 = vmatmul.mubr.f32.gmra.mrb[0].mxu0 %v690
        %v764 = vpop.f32.mrb[0].mxu0
        %v765 = vadd.f32 %v687, %v764
        %v766 = vpop.f32.mrb[0].mxu0
        %767 = vmatprep.mubr.f32.mxu0 0.0
        %768 = vmatmul.mubr.f32.gmra.mrb[0].mxu0 %v693
        %v769 = vpop.f32.mrb[0].mxu0
        %v770 = vadd.f32 %v687, %v769
        %v771 = vpop.f32.mrb[0].mxu0
        %772 = vmatprep.mubr.f32.mxu0 0.0
        %773 = vmatmul.mubr.f32.gmra.mrb[0].mxu0 %v696
        %v774 = vpop.f32.mrb[0].mxu0
        %v775 = vadd.f32 %v687, %v774
        %v776 = vpop.f32.mrb[0].mxu0
        %777 = vdwg.mxu0
        %v778 = vld [vmem:[%s6] sm:$0xff]
        %v779 = vld [vmem:[%s6 + $0x8] sm:$0xff]
        %v780 = vld [vmem:[%s6 + $0x10] sm:$0xff]
        %v781 = vld [vmem:[%s6 + $0x18] sm:$0xff]
        %785 = vrot.lane.b32.xlu0 %v765, 96
        %v786 = vpop.permute.xlu0 %785
        %787 = vrot.lane.b32.xlu0 %v770, 96
        %v788 = vpop.permute.xlu0 %787
        %789 = vrot.lane.b32.xlu0 %v775, 96
        %v790 = vpop.permute.xlu0 %789
        %vm791 = vcmask 64512
        %v792 = vsel %vm791, %v765, 0
        %v794 = vsel %vm791, %v770, 0
        %v796 = vsel %vm791, %v775, 0
        %v798 = vsel %vm791, %v786, 0
        %v800 = vsel %vm791, %v788, 0
        %v802 = vsel %vm791, %v790, 0
        %804 = vmatprep.subr.mxu0 0.0
        %805 = vmatpush1.xpose.msra.mxu0 %v798
        %806 = vmatprep.subr.mxu0 0.0
        %807 = vmatpush1.xpose.msra.mxu0 %v800
        %808 = vmatprep.subr.mxu0 0.0
        %809 = vmatpush1.xpose.msra.mxu0 %v802
        %810 = vmatprep.subr.mxu0 0.0
        %811 = vmatpush1.xpose.msra.mxu0 0.0
        %812 = vmatprep.subr.mxu0 0.0
        %813 = vmatpush1.xpose.msra.mxu0 0.0
        %814 = vmatprep.subr.mxu0 0.0
        %815 = vmatpush1.xpose.msra.mxu0 0.0
        %816 = vmatprep.subr.mxu0 0.0
        %817 = vmatpush1.xpose.msra.mxu0 0.0
        %818 = vmatprep.subr.mxu0 0.0
        %819 = vmatpush1.xpose.msra.mxu0 0.0
        %820 = vmatprep.subr.mxu0 0.0
        %821 = vmatpush1.xpose.msra.mxu0 0.0
        %822 = vmatprep.subr.mxu0 0.0
        %823 = vmatpush1.xpose.msra.mxu0 0.0
        %824 = vmatprep.subr.mxu0 0.0
        %825 = vmatpush1.xpose.msra.mxu0 0.0
        %826 = vmatprep.subr.mxu0 0.0
        %827 = vmatpush1.xpose.msra.mxu0 0.0
        %828 = vmatprep.subr.mxu0 0.0
        %829 = vmatpush1.xpose.msra.mxu0 0.0
        %830 = vmatprep.subr.mxu0 0.0
        %831 = vmatpush1.xpose.msra.mxu0 0.0
        %832 = vmatprep.subr.mxu0 0.0
        %833 = vmatpush1.xpose.msra.mxu0 0.0
        %834 = vmatprep.subr.mxu0 0.0
        %835 = vmatpush1.xpose.msra.mxu0 0.0
        %836 = vmatprep.subr.mxu0 0.0
        %837 = vmatpush1.xpose.msra.mxu0 0.0
        %838 = vmatprep.subr.mxu0 0.0
        %839 = vmatpush1.xpose.msra.mxu0 0.0
        %840 = vmatprep.subr.mxu0 0.0
        %841 = vmatpush1.xpose.msra.mxu0 0.0
        %842 = vmatprep.subr.mxu0 0.0
        %843 = vmatpush1.xpose.msra.mxu0 0.0
        %844 = vmatprep.subr.mxu0 0.0
        %845 = vmatpush1.xpose.msra.mxu0 0.0
        %846 = vmatprep.subr.mxu0 0.0
        %847 = vmatpush1.xpose.msra.mxu0 0.0
        %848 = vmatprep.subr.mxu0 0.0
        %849 = vmatpush1.xpose.msra.mxu0 0.0
        %850 = vmatprep.subr.mxu0 0.0
        %851 = vmatpush1.xpose.msra.mxu0 0.0
        %852 = vmatprep.subr.mxu0 0.0
        %853 = vmatpush1.xpose.msra.mxu0 0.0
        %854 = vmatprep.subr.mxu0 0.0
        %855 = vmatpush1.xpose.msra.mxu0 0.0
        %856 = vmatprep.subr.mxu0 0.0
        %857 = vmatpush1.xpose.msra.mxu0 0.0
        %858 = vmatprep.subr.mxu0 0.0
        %859 = vmatpush1.xpose.msra.mxu0 0.0
        %860 = vmatprep.subr.mxu0 0.0
        %861 = vmatpush1.xpose.msra.mxu0 0.0
        %862 = vmatprep.subr.mxu0 0.0
        %863 = vmatpush1.xpose.msra.mxu0 0.0
        %864 = vmatprep.subr.mxu0 0.0
        %865 = vmatpush1.xpose.msra.mxu0 0.0
        %866 = vmatprep.subr.mxu0 0.0
        %867 = vmatpush1.xpose.msra.mxu0 0.0
        %868 = vmatprep.mubr.f32.mxu0 0.0
        %869 = vmatmul.mubr.f32.gmra.mrb[0].mxu0 %v792
        %v870 = vpop.f32.mrb[0].mxu0
        %v871 = vadd.f32 0.0, %v870
        %v872 = vpop.f32.mrb[0].mxu0
        %873 = vmatprep.mubr.f32.mxu0 0.0
        %874 = vmatmul.mubr.f32.gmra.mrb[0].mxu0 %v794
        %v875 = vpop.f32.mrb[0].mxu0
        %v876 = vadd.f32 0.0, %v875
        %v877 = vpop.f32.mrb[0].mxu0
        %878 = vmatprep.mubr.f32.mxu0 0.0
        %879 = vmatmul.mubr.f32.gmra.mrb[0].mxu0 %v796
        %v880 = vpop.f32.mrb[0].mxu0
        %v881 = vadd.f32 0.0, %v880
        %v882 = vpop.f32.mrb[0].mxu0
        %883 = vdwg.mxu0
        %vm884 = vcmask 138240
        %v885 = vsel %vm884, %v871, -inf
        %886 = vmax.xlane.f32.xlu0 %v885
        %v887 = vpop.xlane.xlu0 %886
        %v888 = vsel %vm884, %v876, -inf
        %889 = vmax.xlane.f32.xlu0 %v888
        %v890 = vpop.xlane.xlu0 %889
        %vm891 = vcmask 131072
        %v892 = vsel %vm891, %v881, -inf
        %893 = vmax.xlane.f32.xlu0 %v892
        %v894 = vpop.xlane.xlu0 %893
        %v895 = vsub.f32 %v871, %v887
        %v896 = vsub.f32 %v876, %v890
        %v897 = vsub.f32 %v881, %v894
        %v898 = vmul.f32 %v895, 1.442695
        %v899 = vpow.pop %v898
        %v900 = vmul.f32 %v896, 1.442695
        %v901 = vpow.pop %v900
        %v902 = vmul.f32 %v897, 1.442695
        %v903 = vpow.pop %v902
        %v904 = vsel %vm884, %v899, 0.0
        %905 = vadd.xlane.f32.xlu0 %v904
        %v906 = vpop.xlane.xlu0 %905
        %v907 = vsel %vm884, %v901, 0.0
        %908 = vadd.xlane.f32.xlu0 %v907
        %v909 = vpop.xlane.xlu0 %908
        %v910 = vsel %vm891, %v903, 0.0
        %911 = vadd.xlane.f32.xlu0 %v910
        %v912 = vpop.xlane.xlu0 %911
        %v913 = vrcp.pop %v906
        %v914 = vrcp.pop %v909
        %v915 = vrcp.pop %v912
        %v916 = vmul.f32 %v899, %v913
        %v917 = vmul.f32 %v901, %v914
        %v918 = vmul.f32 %v903, %v915
        %919 = vrot.lane.b32.xlu0 %v765, 64
        %v920 = vpop.permute.xlu0 %919
        %921 = vrot.lane.b32.xlu0 %v770, 64
        %v922 = vpop.permute.xlu0 %921
        %923 = vrot.lane.b32.xlu0 %v775, 64
        %v924 = vpop.permute.xlu0 %923
        %v928 = vsel %vm884, %v916, 0
        %v931 = vsel %vm884, %v917, 0
        %v934 = vsel %vm884, %v918, 0
        %vm936 = vcmask 1040384
        %v937 = vsel %vm936, %v924, 0
        %939 = vmatprep.subr.mxu0 0.0
        %940 = vmatpush1.msra.mxu0 %v920
        %941 = vmatprep.subr.mxu0 0.0
        %942 = vmatpush1.msra.mxu0 %v922
        %943 = vmatprep.subr.mxu0 0.0
        %944 = vmatpush1.msra.mxu0 %v937
        %945 = vmatprep.subr.mxu0 0.0
        %946 = vmatpush1.msra.mxu0 0.0
        %947 = vmatprep.subr.mxu0 0.0
        %948 = vmatpush1.msra.mxu0 0.0
        %949 = vmatprep.subr.mxu0 0.0
        %950 = vmatpush1.msra.mxu0 0.0
        %951 = vmatprep.subr.mxu0 0.0
        %952 = vmatpush1.msra.mxu0 0.0
        %953 = vmatprep.subr.mxu0 0.0
        %954 = vmatpush1.msra.mxu0 0.0
        %955 = vmatprep.subr.mxu0 0.0
        %956 = vmatpush1.msra.mxu0 0.0
        %957 = vmatprep.subr.mxu0 0.0
        %958 = vmatpush1.msra.mxu0 0.0
        %959 = vmatprep.subr.mxu0 0.0
        %960 = vmatpush1.msra.mxu0 0.0
        %961 = vmatprep.subr.mxu0 0.0
        %962 = vmatpush1.msra.mxu0 0.0
        %963 = vmatprep.subr.mxu0 0.0
        %964 = vmatpush1.msra.mxu0 0.0
        %965 = vmatprep.subr.mxu0 0.0
        %966 = vmatpush1.msra.mxu0 0.0
        %967 = vmatprep.subr.mxu0 0.0
        %968 = vmatpush1.msra.mxu0 0.0
        %969 = vmatprep.subr.mxu0 0.0
        %970 = vmatpush1.msra.mxu0 0.0
        %971 = vmatprep.subr.mxu0 0.0
        %972 = vmatpush1.msra.mxu0 0.0
        %973 = vmatprep.subr.mxu0 0.0
        %974 = vmatpush1.msra.mxu0 0.0
        %975 = vmatprep.subr.mxu0 0.0
        %976 = vmatpush1.msra.mxu0 0.0
        %977 = vmatprep.subr.mxu0 0.0
        %978 = vmatpush1.msra.mxu0 0.0
        %979 = vmatprep.subr.mxu0 0.0
        %980 = vmatpush1.msra.mxu0 0.0
        %981 = vmatprep.subr.mxu0 0.0
        %982 = vmatpush1.msra.mxu0 0.0
        %983 = vmatprep.subr.mxu0 0.0
        %984 = vmatpush1.msra.mxu0 0.0
        %985 = vmatprep.subr.mxu0 0.0
        %986 = vmatpush1.msra.mxu0 0.0
        %987 = vmatprep.subr.mxu0 0.0
        %988 = vmatpush1.msra.mxu0 0.0
        %989 = vmatprep.subr.mxu0 0.0
        %990 = vmatpush1.msra.mxu0 0.0
        %991 = vmatprep.subr.mxu0 0.0
        %992 = vmatpush1.msra.mxu0 0.0
        %993 = vmatprep.subr.mxu0 0.0
        %994 = vmatpush1.msra.mxu0 0.0
        %995 = vmatprep.subr.mxu0 0.0
        %996 = vmatpush1.msra.mxu0 0.0
        %997 = vmatprep.subr.mxu0 0.0
        %998 = vmatpush1.msra.mxu0 0.0
        %999 = vmatprep.subr.mxu0 0.0
        %1000 = vmatpush1.msra.mxu0 0.0
        %1001 = vmatprep.subr.mxu0 0.0
        %1002 = vmatpush1.msra.mxu0 0.0
        %1003 = vmatprep.mubr.f32.mxu0 0.0
        %1004 = vmatmul.mubr.f32.gmra.mrb[0].mxu0 %v928
        %v1005 = vpop.f32.mrb[0].mxu0
        %v1006 = vadd.f32 0.0, %v1005
        %v1007 = vpop.f32.mrb[0].mxu0
        %1008 = vmatprep.mubr.f32.mxu0 0.0
        %1009 = vmatmul.mubr.f32.gmra.mrb[0].mxu0 %v931
        %v1010 = vpop.f32.mrb[0].mxu0
        %v1011 = vadd.f32 0.0, %v1010
        %v1012 = vpop.f32.mrb[0].mxu0
        %1013 = vmatprep.mubr.f32.mxu0 0.0
        %1014 = vmatmul.mubr.f32.gmra.mrb[0].mxu0 %v934
        %v1015 = vpop.f32.mrb[0].mxu0
        %v1016 = vadd.f32 0.0, %v1015
        %v1017 = vpop.f32.mrb[0].mxu0
        %1018 = vdwg.mxu0
        %1019 = vrot.lane.b32.xlu0 %v765, 120
        %v1020 = vpop.permute.xlu0 %1019
        %1021 = vrot.lane.b32.xlu0 %v770, 120
        %v1022 = vpop.permute.xlu0 %1021
        %1023 = vrot.lane.b32.xlu0 %v775, 120
        %v1024 = vpop.permute.xlu0 %1023
        %1025 = vrot.lane.b32.xlu0 %v765, 88
        %v1026 = vpop.permute.xlu0 %1025
        %1027 = vrot.lane.b32.xlu0 %v770, 88
        %v1028 = vpop.permute.xlu0 %1027
        %1029 = vrot.lane.b32.xlu0 %v775, 88
        %v1030 = vpop.permute.xlu0 %1029
        %v1031 = vsel %vm791, %v1020, 0
        %v1033 = vsel %vm791, %v1022, 0
        %v1035 = vsel %vm791, %v1024, 0
        %v1037 = vsel %vm791, %v1026, 0
        %v1039 = vsel %vm791, %v1028, 0
        %v1041 = vsel %vm791, %v1030, 0
        %1043 = vmatprep.subr.mxu0 0.0
        %1044 = vmatpush1.xpose.msra.mxu0 %v1037
        %1045 = vmatprep.subr.mxu0 0.0
        %1046 = vmatpush1.xpose.msra.mxu0 %v1039
        %1047 = vmatprep.subr.mxu0 0.0
        %1048 = vmatpush1.xpose.msra.mxu0 %v1041
        %1049 = vmatprep.subr.mxu0 0.0
        %1050 = vmatpush1.xpose.msra.mxu0 0.0
        %1051 = vmatprep.subr.mxu0 0.0
        %1052 = vmatpush1.xpose.msra.mxu0 0.0
        %1053 = vmatprep.subr.mxu0 0.0
        %1054 = vmatpush1.xpose.msra.mxu0 0.0
        %1055 = vmatprep.subr.mxu0 0.0
        %1056 = vmatpush1.xpose.msra.mxu0 0.0
        %1057 = vmatprep.subr.mxu0 0.0
        %1058 = vmatpush1.xpose.msra.mxu0 0.0
        %1059 = vmatprep.subr.mxu0 0.0
        %1060 = vmatpush1.xpose.msra.mxu0 0.0
        %1061 = vmatprep.subr.mxu0 0.0
        %1062 = vmatpush1.xpose.msra.mxu0 0.0
        %1063 = vmatprep.subr.mxu0 0.0
        %1064 = vmatpush1.xpose.msra.mxu0 0.0
        %1065 = vmatprep.subr.mxu0 0.0
        %1066 = vmatpush1.xpose.msra.mxu0 0.0
        %1067 = vmatprep.subr.mxu0 0.0
        %1068 = vmatpush1.xpose.msra.mxu0 0.0
        %1069 = vmatprep.subr.mxu0 0.0
        %1070 = vmatpush1.xpose.msra.mxu0 0.0
        %1071 = vmatprep.subr.mxu0 0.0
        %1072 = vmatpush1.xpose.msra.mxu0 0.0
        %1073 = vmatprep.subr.mxu0 0.0
        %1074 = vmatpush1.xpose.msra.mxu0 0.0
        %1075 = vmatprep.subr.mxu0 0.0
        %1076 = vmatpush1.xpose.msra.mxu0 0.0
        %1077 = vmatprep.subr.mxu0 0.0
        %1078 = vmatpush1.xpose.msra.mxu0 0.0
        %1079 = vmatprep.subr.mxu0 0.0
        %1080 = vmatpush1.xpose.msra.mxu0 0.0
        %1081 = vmatprep.subr.mxu0 0.0
        %1082 = vmatpush1.xpose.msra.mxu0 0.0
        %1083 = vmatprep.subr.mxu0 0.0
        %1084 = vmatpush1.xpose.msra.mxu0 0.0
        %1085 = vmatprep.subr.mxu0 0.0
        %1086 = vmatpush1.xpose.msra.mxu0 0.0
        %1087 = vmatprep.subr.mxu0 0.0
        %1088 = vmatpush1.xpose.msra.mxu0 0.0
        %1089 = vmatprep.subr.mxu0 0.0
        %1090 = vmatpush1.xpose.msra.mxu0 0.0
        %1091 = vmatprep.subr.mxu0 0.0
        %1092 = vmatpush1.xpose.msra.mxu0 0.0
        %1093 = vmatprep.subr.mxu0 0.0
        %1094 = vmatpush1.xpose.msra.mxu0 0.0
        %1095 = vmatprep.subr.mxu0 0.0
        %1096 = vmatpush1.xpose.msra.mxu0 0.0
        %1097 = vmatprep.subr.mxu0 0.0
        %1098 = vmatpush1.xpose.msra.mxu0 0.0
        %1099 = vmatprep.subr.mxu0 0.0
        %1100 = vmatpush1.xpose.msra.mxu0 0.0
        %1101 = vmatprep.subr.mxu0 0.0
        %1102 = vmatpush1.xpose.msra.mxu0 0.0
        %1103 = vmatprep.subr.mxu0 0.0
        %1104 = vmatpush1.xpose.msra.mxu0 0.0
        %1105 = vmatprep.subr.mxu0 0.0
        %1106 = vmatpush1.xpose.msra.mxu0 0.0
        %1107 = vmatprep.mubr.f32.mxu0 0.0
        %1108 = vmatmul.mubr.f32.gmra.mrb[0].mxu0 %v1031
        %v1109 = vpop.f32.mrb[0].mxu0
        %v1110 = vadd.f32 0.0, %v1109
        %v1111 = vpop.f32.mrb[0].mxu0
        %1112 = vmatprep.mubr.f32.mxu0 0.0
        %1113 = vmatmul.mubr.f32.gmra.mrb[0].mxu0 %v1033
        %v1114 = vpop.f32.mrb[0].mxu0
        %v1115 = vadd.f32 0.0, %v1114
        %v1116 = vpop.f32.mrb[0].mxu0
        %1117 = vmatprep.mubr.f32.mxu0 0.0
        %1118 = vmatmul.mubr.f32.gmra.mrb[0].mxu0 %v1035
        %v1119 = vpop.f32.mrb[0].mxu0
        %v1120 = vadd.f32 0.0, %v1119
        %v1121 = vpop.f32.mrb[0].mxu0
        %1122 = vdwg.mxu0
        %v1123 = vsel %vm884, %v1110, -inf
        %1124 = vmax.xlane.f32.xlu0 %v1123
        %v1125 = vpop.xlane.xlu0 %1124
        %v1126 = vsel %vm884, %v1115, -inf
        %1127 = vmax.xlane.f32.xlu0 %v1126
        %v1128 = vpop.xlane.xlu0 %1127
        %v1129 = vsel %vm891, %v1120, -inf
        %1130 = vmax.xlane.f32.xlu0 %v1129
        %v1131 = vpop.xlane.xlu0 %1130
        %v1132 = vsub.f32 %v1110, %v1125
        %v1133 = vsub.f32 %v1115, %v1128
        %v1134 = vsub.f32 %v1120, %v1131
        %v1135 = vmul.f32 %v1132, 1.442695
        %v1136 = vpow.pop %v1135
        %v1137 = vmul.f32 %v1133, 1.442695
        %v1138 = vpow.pop %v1137
        %v1139 = vmul.f32 %v1134, 1.442695
        %v1140 = vpow.pop %v1139
        %v1141 = vsel %vm884, %v1136, 0.0
        %1142 = vadd.xlane.f32.xlu0 %v1141
        %v1143 = vpop.xlane.xlu0 %1142
        %v1144 = vsel %vm884, %v1138, 0.0
        %1145 = vadd.xlane.f32.xlu0 %v1144
        %v1146 = vpop.xlane.xlu0 %1145
        %v1147 = vsel %vm891, %v1140, 0.0
        %1148 = vadd.xlane.f32.xlu0 %v1147
        %v1149 = vpop.xlane.xlu0 %1148
        %v1150 = vrcp.pop %v1143
        %v1151 = vrcp.pop %v1146
        %v1152 = vrcp.pop %v1149
        %v1153 = vmul.f32 %v1136, %v1150
        %v1154 = vmul.f32 %v1138, %v1151
        %v1155 = vmul.f32 %v1140, %v1152
        %1156 = vrot.lane.b32.xlu0 %v765, 56
        %v1157 = vpop.permute.xlu0 %1156
        %1158 = vrot.lane.b32.xlu0 %v770, 56
        %v1159 = vpop.permute.xlu0 %1158
        %1160 = vrot.lane.b32.xlu0 %v775, 56
        %v1161 = vpop.permute.xlu0 %1160
        %v1165 = vsel %vm884, %v1153, 0
        %v1168 = vsel %vm884, %v1154, 0
        %v1171 = vsel %vm884, %v1155, 0
        %v1173 = vsel %vm936, %v1161, 0
        %1175 = vmatprep.subr.mxu0 0.0
        %1176 = vmatpush1.msra.mxu0 %v1157
        %1177 = vmatprep.subr.mxu0 0.0
        %1178 = vmatpush1.msra.mxu0 %v1159
        %1179 = vmatprep.subr.mxu0 0.0
        %1180 = vmatpush1.msra.mxu0 %v1173
        %1181 = vmatprep.subr.mxu0 0.0
        %1182 = vmatpush1.msra.mxu0 0.0
        %1183 = vmatprep.subr.mxu0 0.0
        %1184 = vmatpush1.msra.mxu0 0.0
        %1185 = vmatprep.subr.mxu0 0.0
        %1186 = vmatpush1.msra.mxu0 0.0
        %1187 = vmatprep.subr.mxu0 0.0
        %1188 = vmatpush1.msra.mxu0 0.0
        %1189 = vmatprep.subr.mxu0 0.0
        %1190 = vmatpush1.msra.mxu0 0.0
        %1191 = vmatprep.subr.mxu0 0.0
        %1192 = vmatpush1.msra.mxu0 0.0
        %1193 = vmatprep.subr.mxu0 0.0
        %1194 = vmatpush1.msra.mxu0 0.0
        %1195 = vmatprep.subr.mxu0 0.0
        %1196 = vmatpush1.msra.mxu0 0.0
        %1197 = vmatprep.subr.mxu0 0.0
        %1198 = vmatpush1.msra.mxu0 0.0
        %1199 = vmatprep.subr.mxu0 0.0
        %1200 = vmatpush1.msra.mxu0 0.0
        %1201 = vmatprep.subr.mxu0 0.0
        %1202 = vmatpush1.msra.mxu0 0.0
        %1203 = vmatprep.subr.mxu0 0.0
        %1204 = vmatpush1.msra.mxu0 0.0
        %1205 = vmatprep.subr.mxu0 0.0
        %1206 = vmatpush1.msra.mxu0 0.0
        %1207 = vmatprep.subr.mxu0 0.0
        %1208 = vmatpush1.msra.mxu0 0.0
        %1209 = vmatprep.subr.mxu0 0.0
        %1210 = vmatpush1.msra.mxu0 0.0
        %1211 = vmatprep.subr.mxu0 0.0
        %1212 = vmatpush1.msra.mxu0 0.0
        %1213 = vmatprep.subr.mxu0 0.0
        %1214 = vmatpush1.msra.mxu0 0.0
        %1215 = vmatprep.subr.mxu0 0.0
        %1216 = vmatpush1.msra.mxu0 0.0
        %1217 = vmatprep.subr.mxu0 0.0
        %1218 = vmatpush1.msra.mxu0 0.0
        %1219 = vmatprep.subr.mxu0 0.0
        %1220 = vmatpush1.msra.mxu0 0.0
        %1221 = vmatprep.subr.mxu0 0.0
        %1222 = vmatpush1.msra.mxu0 0.0
        %1223 = vmatprep.subr.mxu0 0.0
        %1224 = vmatpush1.msra.mxu0 0.0
        %1225 = vmatprep.subr.mxu0 0.0
        %1226 = vmatpush1.msra.mxu0 0.0
        %1227 = vmatprep.subr.mxu0 0.0
        %1228 = vmatpush1.msra.mxu0 0.0
        %1229 = vmatprep.subr.mxu0 0.0
        %1230 = vmatpush1.msra.mxu0 0.0
        %1231 = vmatprep.subr.mxu0 0.0
        %1232 = vmatpush1.msra.mxu0 0.0
        %1233 = vmatprep.subr.mxu0 0.0
        %1234 = vmatpush1.msra.mxu0 0.0
        %1235 = vmatprep.subr.mxu0 0.0
        %1236 = vmatpush1.msra.mxu0 0.0
        %1237 = vmatprep.subr.mxu0 0.0
        %1238 = vmatpush1.msra.mxu0 0.0
        %1239 = vmatprep.mubr.f32.mxu0 0.0
        %1240 = vmatmul.mubr.f32.gmra.mrb[0].mxu0 %v1165
        %v1241 = vpop.f32.mrb[0].mxu0
        %v1242 = vadd.f32 0.0, %v1241
        %v1243 = vpop.f32.mrb[0].mxu0
        %1244 = vmatprep.mubr.f32.mxu0 0.0
        %1245 = vmatmul.mubr.f32.gmra.mrb[0].mxu0 %v1168
        %v1246 = vpop.f32.mrb[0].mxu0
        %v1247 = vadd.f32 0.0, %v1246
        %v1248 = vpop.f32.mrb[0].mxu0
        %1249 = vmatprep.mubr.f32.mxu0 0.0
        %1250 = vmatmul.mubr.f32.gmra.mrb[0].mxu0 %v1171
        %v1251 = vpop.f32.mrb[0].mxu0
        %v1252 = vadd.f32 0.0, %v1251
        %v1253 = vpop.f32.mrb[0].mxu0
        %1254 = vdwg.mxu0
        %v1256 = vsel %vm791, %v1242, 0
        %v1259 = vsel %vm791, %v1247, 0
        %v1262 = vsel %vm791, %v1252, 0
        %1264 = vmatprep.subr.mxu0 0.0
        %1265 = vmatpush1.msra.mxu0 %v779
        %1266 = vmatprep.subr.mxu0 0.0
        %1267 = vmatpush1.msra.mxu0 0.0
        %1268 = vmatprep.subr.mxu0 0.0
        %1269 = vmatpush1.msra.mxu0 0.0
        %1270 = vmatprep.subr.mxu0 0.0
        %1271 = vmatpush1.msra.mxu0 0.0
        %1272 = vmatprep.subr.mxu0 0.0
        %1273 = vmatpush1.msra.mxu0 0.0
        %1274 = vmatprep.subr.mxu0 0.0
        %1275 = vmatpush1.msra.mxu0 0.0
        %1276 = vmatprep.subr.mxu0 0.0
        %1277 = vmatpush1.msra.mxu0 0.0
        %1278 = vmatprep.subr.mxu0 0.0
        %1279 = vmatpush1.msra.mxu0 0.0
        %1280 = vmatprep.subr.mxu0 0.0
        %1281 = vmatpush1.msra.mxu0 0.0
        %1282 = vmatprep.subr.mxu0 0.0
        %1283 = vmatpush1.msra.mxu0 0.0
        %1284 = vmatprep.subr.mxu0 0.0
        %1285 = vmatpush1.msra.mxu0 0.0
        %1286 = vmatprep.subr.mxu0 0.0
        %1287 = vmatpush1.msra.mxu0 0.0
        %1288 = vmatprep.subr.mxu0 0.0
        %1289 = vmatpush1.msra.mxu0 0.0
        %1290 = vmatprep.subr.mxu0 0.0
        %1291 = vmatpush1.msra.mxu0 0.0
        %1292 = vmatprep.subr.mxu0 0.0
        %1293 = vmatpush1.msra.mxu0 0.0
        %1294 = vmatprep.subr.mxu0 0.0
        %1295 = vmatpush1.msra.mxu0 0.0
        %1296 = vmatprep.subr.mxu0 0.0
        %1297 = vmatpush1.msra.mxu0 0.0
        %1298 = vmatprep.subr.mxu0 0.0
        %1299 = vmatpush1.msra.mxu0 0.0
        %1300 = vmatprep.subr.mxu0 0.0
        %1301 = vmatpush1.msra.mxu0 0.0
        %1302 = vmatprep.subr.mxu0 0.0
        %1303 = vmatpush1.msra.mxu0 0.0
        %1304 = vmatprep.subr.mxu0 0.0
        %1305 = vmatpush1.msra.mxu0 0.0
        %1306 = vmatprep.subr.mxu0 0.0
        %1307 = vmatpush1.msra.mxu0 0.0
        %1308 = vmatprep.subr.mxu0 0.0
        %1309 = vmatpush1.msra.mxu0 0.0
        %1310 = vmatprep.subr.mxu0 0.0
        %1311 = vmatpush1.msra.mxu0 0.0
        %1312 = vmatprep.subr.mxu0 0.0
        %1313 = vmatpush1.msra.mxu0 0.0
        %1314 = vmatprep.subr.mxu0 0.0
        %1315 = vmatpush1.msra.mxu0 0.0
        %1316 = vmatprep.subr.mxu0 0.0
        %1317 = vmatpush1.msra.mxu0 0.0
        %1318 = vmatprep.subr.mxu0 0.0
        %1319 = vmatpush1.msra.mxu0 0.0
        %1320 = vmatprep.subr.mxu0 0.0
        %1321 = vmatpush1.msra.mxu0 0.0
        %1322 = vmatprep.subr.mxu0 0.0
        %1323 = vmatpush1.msra.mxu0 0.0
        %1324 = vmatprep.subr.mxu0 0.0
        %1325 = vmatpush1.msra.mxu0 0.0
        %1326 = vmatprep.subr.mxu0 0.0
        %1327 = vmatpush1.msra.mxu0 0.0
        %1328 = vmatprep.mubr.f32.mxu0 0.0
        %1329 = vmatmul.mubr.f32.gmra.mrb[0].mxu0 %v1256
        %v1330 = vpop.f32.mrb[0].mxu0
        %v1331 = vadd.f32 0.0, %v1330
        %v1332 = vpop.f32.mrb[0].mxu0
        %1333 = vmatprep.mubr.f32.mxu0 0.0
        %1334 = vmatmul.mubr.f32.gmra.mrb[0].mxu0 %v1259
        %v1335 = vpop.f32.mrb[0].mxu0
        %v1336 = vadd.f32 0.0, %v1335
        %v1337 = vpop.f32.mrb[0].mxu0
        %1338 = vmatprep.mubr.f32.mxu0 0.0
        %1339 = vmatmul.mubr.f32.gmra.mrb[0].mxu0 %v1262
        %v1340 = vpop.f32.mrb[0].mxu0
        %v1341 = vadd.f32 0.0, %v1340
        %v1342 = vpop.f32.mrb[0].mxu0
        %1343 = vdwg.mxu0
        %v1345 = vsel %vm791, %v1006, 0
        %v1348 = vsel %vm791, %v1011, 0
        %v1351 = vsel %vm791, %v1016, 0
        %1353 = vmatprep.subr.mxu0 0.0
        %1354 = vmatpush1.msra.mxu0 %v778
        %1355 = vmatprep.subr.mxu0 0.0
        %1356 = vmatpush1.msra.mxu0 0.0
        %1357 = vmatprep.subr.mxu0 0.0
        %1358 = vmatpush1.msra.mxu0 0.0
        %1359 = vmatprep.subr.mxu0 0.0
        %1360 = vmatpush1.msra.mxu0 0.0
        %1361 = vmatprep.subr.mxu0 0.0
        %1362 = vmatpush1.msra.mxu0 0.0
        %1363 = vmatprep.subr.mxu0 0.0
        %1364 = vmatpush1.msra.mxu0 0.0
        %1365 = vmatprep.subr.mxu0 0.0
        %1366 = vmatpush1.msra.mxu0 0.0
        %1367 = vmatprep.subr.mxu0 0.0
        %1368 = vmatpush1.msra.mxu0 0.0
        %1369 = vmatprep.subr.mxu0 0.0
        %1370 = vmatpush1.msra.mxu0 0.0
        %1371 = vmatprep.subr.mxu0 0.0
        %1372 = vmatpush1.msra.mxu0 0.0
        %1373 = vmatprep.subr.mxu0 0.0
        %1374 = vmatpush1.msra.mxu0 0.0
        %1375 = vmatprep.subr.mxu0 0.0
        %1376 = vmatpush1.msra.mxu0 0.0
        %1377 = vmatprep.subr.mxu0 0.0
        %1378 = vmatpush1.msra.mxu0 0.0
        %1379 = vmatprep.subr.mxu0 0.0
        %1380 = vmatpush1.msra.mxu0 0.0
        %1381 = vmatprep.subr.mxu0 0.0
        %1382 = vmatpush1.msra.mxu0 0.0
        %1383 = vmatprep.subr.mxu0 0.0
        %1384 = vmatpush1.msra.mxu0 0.0
        %1385 = vmatprep.subr.mxu0 0.0
        %1386 = vmatpush1.msra.mxu0 0.0
        %1387 = vmatprep.subr.mxu0 0.0
        %1388 = vmatpush1.msra.mxu0 0.0
        %1389 = vmatprep.subr.mxu0 0.0
        %1390 = vmatpush1.msra.mxu0 0.0
        %1391 = vmatprep.subr.mxu0 0.0
        %1392 = vmatpush1.msra.mxu0 0.0
        %1393 = vmatprep.subr.mxu0 0.0
        %1394 = vmatpush1.msra.mxu0 0.0
        %1395 = vmatprep.subr.mxu0 0.0
        %1396 = vmatpush1.msra.mxu0 0.0
        %1397 = vmatprep.subr.mxu0 0.0
        %1398 = vmatpush1.msra.mxu0 0.0
        %1399 = vmatprep.subr.mxu0 0.0
        %1400 = vmatpush1.msra.mxu0 0.0
        %1401 = vmatprep.subr.mxu0 0.0
        %1402 = vmatpush1.msra.mxu0 0.0
        %1403 = vmatprep.subr.mxu0 0.0
        %1404 = vmatpush1.msra.mxu0 0.0
        %1405 = vmatprep.subr.mxu0 0.0
        %1406 = vmatpush1.msra.mxu0 0.0
        %1407 = vmatprep.subr.mxu0 0.0
        %1408 = vmatpush1.msra.mxu0 0.0
        %1409 = vmatprep.subr.mxu0 0.0
        %1410 = vmatpush1.msra.mxu0 0.0
        %1411 = vmatprep.subr.mxu0 0.0
        %1412 = vmatpush1.msra.mxu0 0.0
        %1413 = vmatprep.subr.mxu0 0.0
        %1414 = vmatpush1.msra.mxu0 0.0
        %1415 = vmatprep.subr.mxu0 0.0
        %1416 = vmatpush1.msra.mxu0 0.0
        %1417 = vmatprep.mubr.f32.mxu0 0.0
        %1418 = vmatmul.mubr.f32.gmra.mrb[0].mxu0 %v1345
        %v1419 = vpop.f32.mrb[0].mxu0
        %v1420 = vadd.f32 %v1331, %v1419
        %v1421 = vpop.f32.mrb[0].mxu0
        %1422 = vmatprep.mubr.f32.mxu0 0.0
        %1423 = vmatmul.mubr.f32.gmra.mrb[0].mxu0 %v1348
        %v1424 = vpop.f32.mrb[0].mxu0
        %v1425 = vadd.f32 %v1336, %v1424
        %v1426 = vpop.f32.mrb[0].mxu0
        %1427 = vmatprep.mubr.f32.mxu0 0.0
        %1428 = vmatmul.mubr.f32.gmra.mrb[0].mxu0 %v1351
        %v1429 = vpop.f32.mrb[0].mxu0
        %v1430 = vadd.f32 %v1341, %v1429
        %v1431 = vpop.f32.mrb[0].mxu0
        %1432 = vdwg.mxu0
        %1433 = vrot.lane.b32.xlu0 %v765, 112
        %v1434 = vpop.permute.xlu0 %1433
        %1435 = vrot.lane.b32.xlu0 %v770, 112
        %v1436 = vpop.permute.xlu0 %1435
        %1437 = vrot.lane.b32.xlu0 %v775, 112
        %v1438 = vpop.permute.xlu0 %1437
        %1439 = vrot.lane.b32.xlu0 %v765, 80
        %v1440 = vpop.permute.xlu0 %1439
        %1441 = vrot.lane.b32.xlu0 %v770, 80
        %v1442 = vpop.permute.xlu0 %1441
        %1443 = vrot.lane.b32.xlu0 %v775, 80
        %v1444 = vpop.permute.xlu0 %1443
        %v1445 = vsel %vm791, %v1434, 0
        %v1447 = vsel %vm791, %v1436, 0
        %v1449 = vsel %vm791, %v1438, 0
        %v1451 = vsel %vm791, %v1440, 0
        %v1453 = vsel %vm791, %v1442, 0
        %v1455 = vsel %vm791, %v1444, 0
        %1457 = vmatprep.subr.mxu0 0.0
        %1458 = vmatpush1.xpose.msra.mxu0 %v1451
        %1459 = vmatprep.subr.mxu0 0.0
        %1460 = vmatpush1.xpose.msra.mxu0 %v1453
        %1461 = vmatprep.subr.mxu0 0.0
        %1462 = vmatpush1.xpose.msra.mxu0 %v1455
        %1463 = vmatprep.subr.mxu0 0.0
        %1464 = vmatpush1.xpose.msra.mxu0 0.0
        %1465 = vmatprep.subr.mxu0 0.0
        %1466 = vmatpush1.xpose.msra.mxu0 0.0
        %1467 = vmatprep.subr.mxu0 0.0
        %1468 = vmatpush1.xpose.msra.mxu0 0.0
        %1469 = vmatprep.subr.mxu0 0.0
        %1470 = vmatpush1.xpose.msra.mxu0 0.0
        %1471 = vmatprep.subr.mxu0 0.0
        %1472 = vmatpush1.xpose.msra.mxu0 0.0
        %1473 = vmatprep.subr.mxu0 0.0
        %1474 = vmatpush1.xpose.msra.mxu0 0.0
        %1475 = vmatprep.subr.mxu0 0.0
        %1476 = vmatpush1.xpose.msra.mxu0 0.0
        %1477 = vmatprep.subr.mxu0 0.0
        %1478 = vmatpush1.xpose.msra.mxu0 0.0
        %1479 = vmatprep.subr.mxu0 0.0
        %1480 = vmatpush1.xpose.msra.mxu0 0.0
        %1481 = vmatprep.subr.mxu0 0.0
        %1482 = vmatpush1.xpose.msra.mxu0 0.0
        %1483 = vmatprep.subr.mxu0 0.0
        %1484 = vmatpush1.xpose.msra.mxu0 0.0
        %1485 = vmatprep.subr.mxu0 0.0
        %1486 = vmatpush1.xpose.msra.mxu0 0.0
        %1487 = vmatprep.subr.mxu0 0.0
        %1488 = vmatpush1.xpose.msra.mxu0 0.0
        %1489 = vmatprep.subr.mxu0 0.0
        %1490 = vmatpush1.xpose.msra.mxu0 0.0
        %1491 = vmatprep.subr.mxu0 0.0
        %1492 = vmatpush1.xpose.msra.mxu0 0.0
        %1493 = vmatprep.subr.mxu0 0.0
        %1494 = vmatpush1.xpose.msra.mxu0 0.0
        %1495 = vmatprep.subr.mxu0 0.0
        %1496 = vmatpush1.xpose.msra.mxu0 0.0
        %1497 = vmatprep.subr.mxu0 0.0
        %1498 = vmatpush1.xpose.msra.mxu0 0.0
        %1499 = vmatprep.subr.mxu0 0.0
        %1500 = vmatpush1.xpose.msra.mxu0 0.0
        %1501 = vmatprep.subr.mxu0 0.0
        %1502 = vmatpush1.xpose.msra.mxu0 0.0
        %1503 = vmatprep.subr.mxu0 0.0
        %1504 = vmatpush1.xpose.msra.mxu0 0.0
        %1505 = vmatprep.subr.mxu0 0.0
        %1506 = vmatpush1.xpose.msra.mxu0 0.0
        %1507 = vmatprep.subr.mxu0 0.0
        %1508 = vmatpush1.xpose.msra.mxu0 0.0
        %1509 = vmatprep.subr.mxu0 0.0
        %1510 = vmatpush1.xpose.msra.mxu0 0.0
        %1511 = vmatprep.subr.mxu0 0.0
        %1512 = vmatpush1.xpose.msra.mxu0 0.0
        %1513 = vmatprep.subr.mxu0 0.0
        %1514 = vmatpush1.xpose.msra.mxu0 0.0
        %1515 = vmatprep.subr.mxu0 0.0
        %1516 = vmatpush1.xpose.msra.mxu0 0.0
        %1517 = vmatprep.subr.mxu0 0.0
        %1518 = vmatpush1.xpose.msra.mxu0 0.0
        %1519 = vmatprep.subr.mxu0 0.0
        %1520 = vmatpush1.xpose.msra.mxu0 0.0
        %1521 = vmatprep.mubr.f32.mxu0 0.0
        %1522 = vmatmul.mubr.f32.gmra.mrb[0].mxu0 %v1445
        %v1523 = vpop.f32.mrb[0].mxu0
        %v1524 = vadd.f32 0.0, %v1523
        %v1525 = vpop.f32.mrb[0].mxu0
        %1526 = vmatprep.mubr.f32.mxu0 0.0
        %1527 = vmatmul.mubr.f32.gmra.mrb[0].mxu0 %v1447
        %v1528 = vpop.f32.mrb[0].mxu0
        %v1529 = vadd.f32 0.0, %v1528
        %v1530 = vpop.f32.mrb[0].mxu0
        %1531 = vmatprep.mubr.f32.mxu0 0.0
        %1532 = vmatmul.mubr.f32.gmra.mrb[0].mxu0 %v1449
        %v1533 = vpop.f32.mrb[0].mxu0
        %v1534 = vadd.f32 0.0, %v1533
        %v1535 = vpop.f32.mrb[0].mxu0
        %1536 = vdwg.mxu0
        %v1537 = vsel %vm884, %v1524, -inf
        %1538 = vmax.xlane.f32.xlu0 %v1537
        %v1539 = vpop.xlane.xlu0 %1538
        %v1540 = vsel %vm884, %v1529, -inf
        %1541 = vmax.xlane.f32.xlu0 %v1540
        %v1542 = vpop.xlane.xlu0 %1541
        %v1543 = vsel %vm891, %v1534, -inf
        %1544 = vmax.xlane.f32.xlu0 %v1543
        %v1545 = vpop.xlane.xlu0 %1544
        %v1546 = vsub.f32 %v1524, %v1539
        %v1547 = vsub.f32 %v1529, %v1542
        %v1548 = vsub.f32 %v1534, %v1545
        %v1549 = vmul.f32 %v1546, 1.442695
        %v1550 = vpow.pop %v1549
        %v1551 = vmul.f32 %v1547, 1.442695
        %v1552 = vpow.pop %v1551
        %v1553 = vmul.f32 %v1548, 1.442695
        %v1554 = vpow.pop %v1553
        %v1555 = vsel %vm884, %v1550, 0.0
        %1556 = vadd.xlane.f32.xlu0 %v1555
        %v1557 = vpop.xlane.xlu0 %1556
        %v1558 = vsel %vm884, %v1552, 0.0
        %1559 = vadd.xlane.f32.xlu0 %v1558
        %v1560 = vpop.xlane.xlu0 %1559
        %v1561 = vsel %vm891, %v1554, 0.0
        %1562 = vadd.xlane.f32.xlu0 %v1561
        %v1563 = vpop.xlane.xlu0 %1562
        %v1564 = vrcp.pop %v1557
        %v1565 = vrcp.pop %v1560
        %v1566 = vrcp.pop %v1563
        %v1567 = vmul.f32 %v1550, %v1564
        %v1568 = vmul.f32 %v1552, %v1565
        %v1569 = vmul.f32 %v1554, %v1566
        %1570 = vrot.lane.b32.xlu0 %v765, 48
        %v1571 = vpop.permute.xlu0 %1570
        %1572 = vrot.lane.b32.xlu0 %v770, 48
        %v1573 = vpop.permute.xlu0 %1572
        %1574 = vrot.lane.b32.xlu0 %v775, 48
        %v1575 = vpop.permute.xlu0 %1574
        %v1579 = vsel %vm884, %v1567, 0
        %v1582 = vsel %vm884, %v1568, 0
        %v1585 = vsel %vm884, %v1569, 0
        %v1587 = vsel %vm936, %v1575, 0
        %1589 = vmatprep.subr.mxu0 0.0
        %1590 = vmatpush1.msra.mxu0 %v1571
        %1591 = vmatprep.subr.mxu0 0.0
        %1592 = vmatpush1.msra.mxu0 %v1573
        %1593 = vmatprep.subr.mxu0 0.0
        %1594 = vmatpush1.msra.mxu0 %v1587
        %1595 = vmatprep.subr.mxu0 0.0
        %1596 = vmatpush1.msra.mxu0 0.0
        %1597 = vmatprep.subr.mxu0 0.0
        %1598 = vmatpush1.msra.mxu0 0.0
        %1599 = vmatprep.subr.mxu0 0.0
        %1600 = vmatpush1.msra.mxu0 0.0
        %1601 = vmatprep.subr.mxu0 0.0
        %1602 = vmatpush1.msra.mxu0 0.0
        %1603 = vmatprep.subr.mxu0 0.0
        %1604 = vmatpush1.msra.mxu0 0.0
        %1605 = vmatprep.subr.mxu0 0.0
        %1606 = vmatpush1.msra.mxu0 0.0
        %1607 = vmatprep.subr.mxu0 0.0
        %1608 = vmatpush1.msra.mxu0 0.0
        %1609 = vmatprep.subr.mxu0 0.0
        %1610 = vmatpush1.msra.mxu0 0.0
        %1611 = vmatprep.subr.mxu0 0.0
        %1612 = vmatpush1.msra.mxu0 0.0
        %1613 = vmatprep.subr.mxu0 0.0
        %1614 = vmatpush1.msra.mxu0 0.0
        %1615 = vmatprep.subr.mxu0 0.0
        %1616 = vmatpush1.msra.mxu0 0.0
        %1617 = vmatprep.subr.mxu0 0.0
        %1618 = vmatpush1.msra.mxu0 0.0
        %1619 = vmatprep.subr.mxu0 0.0
        %1620 = vmatpush1.msra.mxu0 0.0
        %1621 = vmatprep.subr.mxu0 0.0
        %1622 = vmatpush1.msra.mxu0 0.0
        %1623 = vmatprep.subr.mxu0 0.0
        %1624 = vmatpush1.msra.mxu0 0.0
        %1625 = vmatprep.subr.mxu0 0.0
        %1626 = vmatpush1.msra.mxu0 0.0
        %1627 = vmatprep.subr.mxu0 0.0
        %1628 = vmatpush1.msra.mxu0 0.0
        %1629 = vmatprep.subr.mxu0 0.0
        %1630 = vmatpush1.msra.mxu0 0.0
        %1631 = vmatprep.subr.mxu0 0.0
        %1632 = vmatpush1.msra.mxu0 0.0
        %1633 = vmatprep.subr.mxu0 0.0
        %1634 = vmatpush1.msra.mxu0 0.0
        %1635 = vmatprep.subr.mxu0 0.0
        %1636 = vmatpush1.msra.mxu0 0.0
        %1637 = vmatprep.subr.mxu0 0.0
        %1638 = vmatpush1.msra.mxu0 0.0
        %1639 = vmatprep.subr.mxu0 0.0
        %1640 = vmatpush1.msra.mxu0 0.0
        %1641 = vmatprep.subr.mxu0 0.0
        %1642 = vmatpush1.msra.mxu0 0.0
        %1643 = vmatprep.subr.mxu0 0.0
        %1644 = vmatpush1.msra.mxu0 0.0
        %1645 = vmatprep.subr.mxu0 0.0
        %1646 = vmatpush1.msra.mxu0 0.0
        %1647 = vmatprep.subr.mxu0 0.0
        %1648 = vmatpush1.msra.mxu0 0.0
        %1649 = vmatprep.subr.mxu0 0.0
        %1650 = vmatpush1.msra.mxu0 0.0
        %1651 = vmatprep.subr.mxu0 0.0
        %1652 = vmatpush1.msra.mxu0 0.0
        %1653 = vmatprep.mubr.f32.mxu0 0.0
        %1654 = vmatmul.mubr.f32.gmra.mrb[0].mxu0 %v1579
        %v1655 = vpop.f32.mrb[0].mxu0
        %v1656 = vadd.f32 0.0, %v1655
        %v1657 = vpop.f32.mrb[0].mxu0
        %1658 = vmatprep.mubr.f32.mxu0 0.0
        %1659 = vmatmul.mubr.f32.gmra.mrb[0].mxu0 %v1582
        %v1660 = vpop.f32.mrb[0].mxu0
        %v1661 = vadd.f32 0.0, %v1660
        %v1662 = vpop.f32.mrb[0].mxu0
        %1663 = vmatprep.mubr.f32.mxu0 0.0
        %1664 = vmatmul.mubr.f32.gmra.mrb[0].mxu0 %v1585
        %v1665 = vpop.f32.mrb[0].mxu0
        %v1666 = vadd.f32 0.0, %v1665
        %v1667 = vpop.f32.mrb[0].mxu0
        %1668 = vdwg.mxu0
        %v1670 = vsel %vm791, %v1656, 0
        %v1673 = vsel %vm791, %v1661, 0
        %v1676 = vsel %vm791, %v1666, 0
        %1678 = vmatprep.subr.mxu0 0.0
        %1679 = vmatpush1.msra.mxu0 %v780
        %1680 = vmatprep.subr.mxu0 0.0
        %1681 = vmatpush1.msra.mxu0 0.0
        %1682 = vmatprep.subr.mxu0 0.0
        %1683 = vmatpush1.msra.mxu0 0.0
        %1684 = vmatprep.subr.mxu0 0.0
        %1685 = vmatpush1.msra.mxu0 0.0
        %1686 = vmatprep.subr.mxu0 0.0
        %1687 = vmatpush1.msra.mxu0 0.0
        %1688 = vmatprep.subr.mxu0 0.0
        %1689 = vmatpush1.msra.mxu0 0.0
        %1690 = vmatprep.subr.mxu0 0.0
        %1691 = vmatpush1.msra.mxu0 0.0
        %1692 = vmatprep.subr.mxu0 0.0
        %1693 = vmatpush1.msra.mxu0 0.0
        %1694 = vmatprep.subr.mxu0 0.0
        %1695 = vmatpush1.msra.mxu0 0.0
        %1696 = vmatprep.subr.mxu0 0.0
        %1697 = vmatpush1.msra.mxu0 0.0
        %1698 = vmatprep.subr.mxu0 0.0
        %1699 = vmatpush1.msra.mxu0 0.0
        %1700 = vmatprep.subr.mxu0 0.0
        %1701 = vmatpush1.msra.mxu0 0.0
        %1702 = vmatprep.subr.mxu0 0.0
        %1703 = vmatpush1.msra.mxu0 0.0
        %1704 = vmatprep.subr.mxu0 0.0
        %1705 = vmatpush1.msra.mxu0 0.0
        %1706 = vmatprep.subr.mxu0 0.0
        %1707 = vmatpush1.msra.mxu0 0.0
        %1708 = vmatprep.subr.mxu0 0.0
        %1709 = vmatpush1.msra.mxu0 0.0
        %1710 = vmatprep.subr.mxu0 0.0
        %1711 = vmatpush1.msra.mxu0 0.0
        %1712 = vmatprep.subr.mxu0 0.0
        %1713 = vmatpush1.msra.mxu0 0.0
        %1714 = vmatprep.subr.mxu0 0.0
        %1715 = vmatpush1.msra.mxu0 0.0
        %1716 = vmatprep.subr.mxu0 0.0
        %1717 = vmatpush1.msra.mxu0 0.0
        %1718 = vmatprep.subr.mxu0 0.0
        %1719 = vmatpush1.msra.mxu0 0.0
        %1720 = vmatprep.subr.mxu0 0.0
        %1721 = vmatpush1.msra.mxu0 0.0
        %1722 = vmatprep.subr.mxu0 0.0
        %1723 = vmatpush1.msra.mxu0 0.0
        %1724 = vmatprep.subr.mxu0 0.0
        %1725 = vmatpush1.msra.mxu0 0.0
        %1726 = vmatprep.subr.mxu0 0.0
        %1727 = vmatpush1.msra.mxu0 0.0
        %1728 = vmatprep.subr.mxu0 0.0
        %1729 = vmatpush1.msra.mxu0 0.0
        %1730 = vmatprep.subr.mxu0 0.0
        %1731 = vmatpush1.msra.mxu0 0.0
        %1732 = vmatprep.subr.mxu0 0.0
        %1733 = vmatpush1.msra.mxu0 0.0
        %1734 = vmatprep.subr.mxu0 0.0
        %1735 = vmatpush1.msra.mxu0 0.0
        %1736 = vmatprep.subr.mxu0 0.0
        %1737 = vmatpush1.msra.mxu0 0.0
        %1738 = vmatprep.subr.mxu0 0.0
        %1739 = vmatpush1.msra.mxu0 0.0
        %1740 = vmatprep.subr.mxu0 0.0
        %1741 = vmatpush1.msra.mxu0 0.0
        %1742 = vmatprep.mubr.f32.mxu0 0.0
        %1743 = vmatmul.mubr.f32.gmra.mrb[0].mxu0 %v1670
        %v1744 = vpop.f32.mrb[0].mxu0
        %v1745 = vadd.f32 0.0, %v1744
        %v1746 = vpop.f32.mrb[0].mxu0
        %1747 = vmatprep.mubr.f32.mxu0 0.0
        %1748 = vmatmul.mubr.f32.gmra.mrb[0].mxu0 %v1673
        %v1749 = vpop.f32.mrb[0].mxu0
        %v1750 = vadd.f32 0.0, %v1749
        %v1751 = vpop.f32.mrb[0].mxu0
        %1752 = vmatprep.mubr.f32.mxu0 0.0
        %1753 = vmatmul.mubr.f32.gmra.mrb[0].mxu0 %v1676
        %v1754 = vpop.f32.mrb[0].mxu0
        %v1755 = vadd.f32 0.0, %v1754
        %v1756 = vpop.f32.mrb[0].mxu0
        %1757 = vdwg.mxu0
        %v1758 = vadd.f32 %v1420, %v1745
        %v1759 = vadd.f32 %v1425, %v1750
        %v1760 = vadd.f32 %v1430, %v1755
        %1761 = vrot.lane.b32.xlu0 %v765, 104
        %v1762 = vpop.permute.xlu0 %1761
        %1763 = vrot.lane.b32.xlu0 %v770, 104
        %v1764 = vpop.permute.xlu0 %1763
        %1765 = vrot.lane.b32.xlu0 %v775, 104
        %v1766 = vpop.permute.xlu0 %1765
        %1767 = vrot.lane.b32.xlu0 %v765, 72
        %v1768 = vpop.permute.xlu0 %1767
        %1769 = vrot.lane.b32.xlu0 %v770, 72
        %v1770 = vpop.permute.xlu0 %1769
        %1771 = vrot.lane.b32.xlu0 %v775, 72
        %v1772 = vpop.permute.xlu0 %1771
        %v1773 = vsel %vm791, %v1762, 0
        %v1775 = vsel %vm791, %v1764, 0
        %v1777 = vsel %vm791, %v1766, 0
        %v1779 = vsel %vm791, %v1768, 0
        %v1781 = vsel %vm791, %v1770, 0
        %v1783 = vsel %vm791, %v1772, 0
        %1785 = vmatprep.subr.mxu0 0.0
        %1786 = vmatpush1.xpose.msra.mxu0 %v1779
        %1787 = vmatprep.subr.mxu0 0.0
        %1788 = vmatpush1.xpose.msra.mxu0 %v1781
        %1789 = vmatprep.subr.mxu0 0.0
        %1790 = vmatpush1.xpose.msra.mxu0 %v1783
        %1791 = vmatprep.subr.mxu0 0.0
        %1792 = vmatpush1.xpose.msra.mxu0 0.0
        %1793 = vmatprep.subr.mxu0 0.0
        %1794 = vmatpush1.xpose.msra.mxu0 0.0
        %1795 = vmatprep.subr.mxu0 0.0
        %1796 = vmatpush1.xpose.msra.mxu0 0.0
        %1797 = vmatprep.subr.mxu0 0.0
        %1798 = vmatpush1.xpose.msra.mxu0 0.0
        %1799 = vmatprep.subr.mxu0 0.0
        %1800 = vmatpush1.xpose.msra.mxu0 0.0
        %1801 = vmatprep.subr.mxu0 0.0
        %1802 = vmatpush1.xpose.msra.mxu0 0.0
        %1803 = vmatprep.subr.mxu0 0.0
        %1804 = vmatpush1.xpose.msra.mxu0 0.0
        %1805 = vmatprep.subr.mxu0 0.0
        %1806 = vmatpush1.xpose.msra.mxu0 0.0
        %1807 = vmatprep.subr.mxu0 0.0
        %1808 = vmatpush1.xpose.msra.mxu0 0.0
        %1809 = vmatprep.subr.mxu0 0.0
        %1810 = vmatpush1.xpose.msra.mxu0 0.0
        %1811 = vmatprep.subr.mxu0 0.0
        %1812 = vmatpush1.xpose.msra.mxu0 0.0
        %1813 = vmatprep.subr.mxu0 0.0
        %1814 = vmatpush1.xpose.msra.mxu0 0.0
        %1815 = vmatprep.subr.mxu0 0.0
        %1816 = vmatpush1.xpose.msra.mxu0 0.0
        %1817 = vmatprep.subr.mxu0 0.0
        %1818 = vmatpush1.xpose.msra.mxu0 0.0
        %1819 = vmatprep.subr.mxu0 0.0
        %1820 = vmatpush1.xpose.msra.mxu0 0.0
        %1821 = vmatprep.subr.mxu0 0.0
        %1822 = vmatpush1.xpose.msra.mxu0 0.0
        %1823 = vmatprep.subr.mxu0 0.0
        %1824 = vmatpush1.xpose.msra.mxu0 0.0
        %1825 = vmatprep.subr.mxu0 0.0
        %1826 = vmatpush1.xpose.msra.mxu0 0.0
        %1827 = vmatprep.subr.mxu0 0.0
        %1828 = vmatpush1.xpose.msra.mxu0 0.0
        %1829 = vmatprep.subr.mxu0 0.0
        %1830 = vmatpush1.xpose.msra.mxu0 0.0
        %1831 = vmatprep.subr.mxu0 0.0
        %1832 = vmatpush1.xpose.msra.mxu0 0.0
        %1833 = vmatprep.subr.mxu0 0.0
        %1834 = vmatpush1.xpose.msra.mxu0 0.0
        %1835 = vmatprep.subr.mxu0 0.0
        %1836 = vmatpush1.xpose.msra.mxu0 0.0
        %1837 = vmatprep.subr.mxu0 0.0
        %1838 = vmatpush1.xpose.msra.mxu0 0.0
        %1839 = vmatprep.subr.mxu0 0.0
        %1840 = vmatpush1.xpose.msra.mxu0 0.0
        %1841 = vmatprep.subr.mxu0 0.0
        %1842 = vmatpush1.xpose.msra.mxu0 0.0
        %1843 = vmatprep.subr.mxu0 0.0
        %1844 = vmatpush1.xpose.msra.mxu0 0.0
        %1845 = vmatprep.subr.mxu0 0.0
        %1846 = vmatpush1.xpose.msra.mxu0 0.0
        %1847 = vmatprep.subr.mxu0 0.0
        %1848 = vmatpush1.xpose.msra.mxu0 0.0
        %1849 = vmatprep.mubr.f32.mxu0 0.0
        %1850 = vmatmul.mubr.f32.gmra.mrb[0].mxu0 %v1773
        %v1851 = vpop.f32.mrb[0].mxu0
        %v1852 = vadd.f32 0.0, %v1851
        %v1853 = vpop.f32.mrb[0].mxu0
        %1854 = vmatprep.mubr.f32.mxu0 0.0
        %1855 = vmatmul.mubr.f32.gmra.mrb[0].mxu0 %v1775
        %v1856 = vpop.f32.mrb[0].mxu0
        %v1857 = vadd.f32 0.0, %v1856
        %v1858 = vpop.f32.mrb[0].mxu0
        %1859 = vmatprep.mubr.f32.mxu0 0.0
        %1860 = vmatmul.mubr.f32.gmra.mrb[0].mxu0 %v1777
        %v1861 = vpop.f32.mrb[0].mxu0
        %v1862 = vadd.f32 0.0, %v1861
        %v1863 = vpop.f32.mrb[0].mxu0
        %1864 = vdwg.mxu0
        %v1865 = vsel %vm884, %v1852, -inf
        %1866 = vmax.xlane.f32.xlu0 %v1865
        %v1867 = vpop.xlane.xlu0 %1866
        %v1868 = vsel %vm884, %v1857, -inf
        %1869 = vmax.xlane.f32.xlu0 %v1868
        %v1870 = vpop.xlane.xlu0 %1869
        %v1871 = vsel %vm891, %v1862, -inf
        %1872 = vmax.xlane.f32.xlu0 %v1871
        %v1873 = vpop.xlane.xlu0 %1872
        %v1874 = vsub.f32 %v1852, %v1867
        %v1875 = vsub.f32 %v1857, %v1870
        %v1876 = vsub.f32 %v1862, %v1873
        %v1877 = vmul.f32 %v1874, 1.442695
        %v1878 = vpow.pop %v1877
        %v1879 = vmul.f32 %v1875, 1.442695
        %v1880 = vpow.pop %v1879
        %v1881 = vmul.f32 %v1876, 1.442695
        %v1882 = vpow.pop %v1881
        %v1883 = vsel %vm884, %v1878, 0.0
        %1884 = vadd.xlane.f32.xlu0 %v1883
        %v1885 = vpop.xlane.xlu0 %1884
        %v1886 = vsel %vm884, %v1880, 0.0
        %1887 = vadd.xlane.f32.xlu0 %v1886
        %v1888 = vpop.xlane.xlu0 %1887
        %v1889 = vsel %vm891, %v1882, 0.0
        %1890 = vadd.xlane.f32.xlu0 %v1889
        %v1891 = vpop.xlane.xlu0 %1890
        %v1892 = vrcp.pop %v1885
        %v1893 = vrcp.pop %v1888
        %v1894 = vrcp.pop %v1891
        %v1895 = vmul.f32 %v1878, %v1892
        %v1896 = vmul.f32 %v1880, %v1893
        %v1897 = vmul.f32 %v1882, %v1894
        %1898 = vrot.lane.b32.xlu0 %v765, 40
        %v1899 = vpop.permute.xlu0 %1898
        %1900 = vrot.lane.b32.xlu0 %v770, 40
        %v1901 = vpop.permute.xlu0 %1900
        %1902 = vrot.lane.b32.xlu0 %v775, 40
        %v1903 = vpop.permute.xlu0 %1902
        %v1907 = vsel %vm884, %v1895, 0
        %v1910 = vsel %vm884, %v1896, 0
        %v1913 = vsel %vm884, %v1897, 0
        %v1915 = vsel %vm936, %v1903, 0
        %1917 = vmatprep.subr.mxu0 0.0
        %1918 = vmatpush1.msra.mxu0 %v1899
        %1919 = vmatprep.subr.mxu0 0.0
        %1920 = vmatpush1.msra.mxu0 %v1901
        %1921 = vmatprep.subr.mxu0 0.0
        %1922 = vmatpush1.msra.mxu0 %v1915
        %1923 = vmatprep.subr.mxu0 0.0
        %1924 = vmatpush1.msra.mxu0 0.0
        %1925 = vmatprep.subr.mxu0 0.0
        %1926 = vmatpush1.msra.mxu0 0.0
        %1927 = vmatprep.subr.mxu0 0.0
        %1928 = vmatpush1.msra.mxu0 0.0
        %1929 = vmatprep.subr.mxu0 0.0
        %1930 = vmatpush1.msra.mxu0 0.0
        %1931 = vmatprep.subr.mxu0 0.0
        %1932 = vmatpush1.msra.mxu0 0.0
        %1933 = vmatprep.subr.mxu0 0.0
        %1934 = vmatpush1.msra.mxu0 0.0
        %1935 = vmatprep.subr.mxu0 0.0
        %1936 = vmatpush1.msra.mxu0 0.0
        %1937 = vmatprep.subr.mxu0 0.0
        %1938 = vmatpush1.msra.mxu0 0.0
        %1939 = vmatprep.subr.mxu0 0.0
        %1940 = vmatpush1.msra.mxu0 0.0
        %1941 = vmatprep.subr.mxu0 0.0
        %1942 = vmatpush1.msra.mxu0 0.0
        %1943 = vmatprep.subr.mxu0 0.0
        %1944 = vmatpush1.msra.mxu0 0.0
        %1945 = vmatprep.subr.mxu0 0.0
        %1946 = vmatpush1.msra.mxu0 0.0
        %1947 = vmatprep.subr.mxu0 0.0
        %1948 = vmatpush1.msra.mxu0 0.0
        %1949 = vmatprep.subr.mxu0 0.0
        %1950 = vmatpush1.msra.mxu0 0.0
        %1951 = vmatprep.subr.mxu0 0.0
        %1952 = vmatpush1.msra.mxu0 0.0
        %1953 = vmatprep.subr.mxu0 0.0
        %1954 = vmatpush1.msra.mxu0 0.0
        %1955 = vmatprep.subr.mxu0 0.0
        %1956 = vmatpush1.msra.mxu0 0.0
        %1957 = vmatprep.subr.mxu0 0.0
        %1958 = vmatpush1.msra.mxu0 0.0
        %1959 = vmatprep.subr.mxu0 0.0
        %1960 = vmatpush1.msra.mxu0 0.0
        %1961 = vmatprep.subr.mxu0 0.0
        %1962 = vmatpush1.msra.mxu0 0.0
        %1963 = vmatprep.subr.mxu0 0.0
        %1964 = vmatpush1.msra.mxu0 0.0
        %1965 = vmatprep.subr.mxu0 0.0
        %1966 = vmatpush1.msra.mxu0 0.0
        %1967 = vmatprep.subr.mxu0 0.0
        %1968 = vmatpush1.msra.mxu0 0.0
        %1969 = vmatprep.subr.mxu0 0.0
        %1970 = vmatpush1.msra.mxu0 0.0
        %1971 = vmatprep.subr.mxu0 0.0
        %1972 = vmatpush1.msra.mxu0 0.0
        %1973 = vmatprep.subr.mxu0 0.0
        %1974 = vmatpush1.msra.mxu0 0.0
        %1975 = vmatprep.subr.mxu0 0.0
        %1976 = vmatpush1.msra.mxu0 0.0
        %1977 = vmatprep.subr.mxu0 0.0
        %1978 = vmatpush1.msra.mxu0 0.0
        %1979 = vmatprep.subr.mxu0 0.0
        %1980 = vmatpush1.msra.mxu0 0.0
        %1981 = vmatprep.mubr.f32.mxu0 0.0
        %1982 = vmatmul.mubr.f32.gmra.mrb[0].mxu0 %v1907
        %v1983 = vpop.f32.mrb[0].mxu0
        %v1984 = vadd.f32 0.0, %v1983
        %v1985 = vpop.f32.mrb[0].mxu0
        %1986 = vmatprep.mubr.f32.mxu0 0.0
        %1987 = vmatmul.mubr.f32.gmra.mrb[0].mxu0 %v1910
        %v1988 = vpop.f32.mrb[0].mxu0
        %v1989 = vadd.f32 0.0, %v1988
        %v1990 = vpop.f32.mrb[0].mxu0
        %1991 = vmatprep.mubr.f32.mxu0 0.0
        %1992 = vmatmul.mubr.f32.gmra.mrb[0].mxu0 %v1913
        %v1993 = vpop.f32.mrb[0].mxu0
        %v1994 = vadd.f32 0.0, %v1993
        %v1995 = vpop.f32.mrb[0].mxu0
        %1996 = vdwg.mxu0
        %v1998 = vsel %vm791, %v1984, 0
        %v2001 = vsel %vm791, %v1989, 0
        %v2004 = vsel %vm791, %v1994, 0
        %2006 = vmatprep.subr.mxu0 0.0
        %2007 = vmatpush1.msra.mxu0 %v781
        %2008 = vmatprep.subr.mxu0 0.0
        %2009 = vmatpush1.msra.mxu0 0.0
        %2010 = vmatprep.subr.mxu0 0.0
        %2011 = vmatpush1.msra.mxu0 0.0
        %2012 = vmatprep.subr.mxu0 0.0
        %2013 = vmatpush1.msra.mxu0 0.0
        %2014 = vmatprep.subr.mxu0 0.0
        %2015 = vmatpush1.msra.mxu0 0.0
        %2016 = vmatprep.subr.mxu0 0.0
        %2017 = vmatpush1.msra.mxu0 0.0
        %2018 = vmatprep.subr.mxu0 0.0
        %2019 = vmatpush1.msra.mxu0 0.0
        %2020 = vmatprep.subr.mxu0 0.0
        %2021 = vmatpush1.msra.mxu0 0.0
        %2022 = vmatprep.subr.mxu0 0.0
        %2023 = vmatpush1.msra.mxu0 0.0
        %2024 = vmatprep.subr.mxu0 0.0
        %2025 = vmatpush1.msra.mxu0 0.0
        %2026 = vmatprep.subr.mxu0 0.0
        %2027 = vmatpush1.msra.mxu0 0.0
        %2028 = vmatprep.subr.mxu0 0.0
        %2029 = vmatpush1.msra.mxu0 0.0
        %2030 = vmatprep.subr.mxu0 0.0
        %2031 = vmatpush1.msra.mxu0 0.0
        %2032 = vmatprep.subr.mxu0 0.0
        %2033 = vmatpush1.msra.mxu0 0.0
        %2034 = vmatprep.subr.mxu0 0.0
        %2035 = vmatpush1.msra.mxu0 0.0
        %2036 = vmatprep.subr.mxu0 0.0
        %2037 = vmatpush1.msra.mxu0 0.0
        %2038 = vmatprep.subr.mxu0 0.0
        %2039 = vmatpush1.msra.mxu0 0.0
        %2040 = vmatprep.subr.mxu0 0.0
        %2041 = vmatpush1.msra.mxu0 0.0
        %2042 = vmatprep.subr.mxu0 0.0
        %2043 = vmatpush1.msra.mxu0 0.0
        %2044 = vmatprep.subr.mxu0 0.0
        %2045 = vmatpush1.msra.mxu0 0.0
        %2046 = vmatprep.subr.mxu0 0.0
        %2047 = vmatpush1.msra.mxu0 0.0
        %2048 = vmatprep.subr.mxu0 0.0
        %2049 = vmatpush1.msra.mxu0 0.0
        %2050 = vmatprep.subr.mxu0 0.0
        %2051 = vmatpush1.msra.mxu0 0.0
        %2052 = vmatprep.subr.mxu0 0.0
        %2053 = vmatpush1.msra.mxu0 0.0
        %2054 = vmatprep.subr.mxu0 0.0
        %2055 = vmatpush1.msra.mxu0 0.0
        %2056 = vmatprep.subr.mxu0 0.0
        %2057 = vmatpush1.msra.mxu0 0.0
        %2058 = vmatprep.subr.mxu0 0.0
        %2059 = vmatpush1.msra.mxu0 0.0
        %2060 = vmatprep.subr.mxu0 0.0
        %2061 = vmatpush1.msra.mxu0 0.0
        %2062 = vmatprep.subr.mxu0 0.0
        %2063 = vmatpush1.msra.mxu0 0.0
        %2064 = vmatprep.subr.mxu0 0.0
        %2065 = vmatpush1.msra.mxu0 0.0
        %2066 = vmatprep.subr.mxu0 0.0
        %2067 = vmatpush1.msra.mxu0 0.0
        %2068 = vmatprep.subr.mxu0 0.0
        %2069 = vmatpush1.msra.mxu0 0.0
        %2070 = vmatprep.mubr.f32.mxu0 0.0
        %2071 = vmatmul.mubr.f32.gmra.mrb[0].mxu0 %v1998
        %v2072 = vpop.f32.mrb[0].mxu0
        %v2073 = vadd.f32 0.0, %v2072
        %v2074 = vpop.f32.mrb[0].mxu0
        %2075 = vmatprep.mubr.f32.mxu0 0.0
        %2076 = vmatmul.mubr.f32.gmra.mrb[0].mxu0 %v2001
        %v2077 = vpop.f32.mrb[0].mxu0
        %v2078 = vadd.f32 0.0, %v2077
        %v2079 = vpop.f32.mrb[0].mxu0
        %2080 = vmatprep.mubr.f32.mxu0 0.0
        %2081 = vmatmul.mubr.f32.gmra.mrb[0].mxu0 %v2004
        %v2082 = vpop.f32.mrb[0].mxu0
        %v2083 = vadd.f32 0.0, %v2082
        %v2084 = vpop.f32.mrb[0].mxu0
        %2085 = vdwg.mxu0
        %v2086 = vadd.f32 %v1758, %v2073
        %v2087 = vadd.f32 %v1759, %v2078
        %v2088 = vadd.f32 %v1760, %v2083
        %v2089 = vadd.f32 %v608, %v2086
        %v2090 = vadd.f32 %v613, %v2087
        %v2091 = vadd.f32 %v618, %v2088
        %v2092 = vld [vmem:[%s7] sm:$0x1]
        %v2094 = vlaneseq
        %v2095 = vshrl.u32 %v2094, 7
        %v2096 = vsub.s32 0, %v2095
        %v2097 = vrot.slane %v2092, %v2096
        %v2099 = vadd.f32 %v2089, %v2097
        %v2100 = vadd.f32 %v2090, %v2097
        %v2101 = vadd.f32 %v2091, %v2097
        %v2102 = vsel %vm622, %v2099, 0.0
        %2103 = vadd.xlane.f32.xlu0 %v2102
        %v2104 = vpop.xlane.xlu0 %2103
        %v2105 = vsel %vm622, %v2100, 0.0
        %2106 = vadd.xlane.f32.xlu0 %v2105
        %v2107 = vpop.xlane.xlu0 %2106
        %v2108 = vsel %vm629, %v2101, 0.0
        %2109 = vadd.xlane.f32.xlu0 %v2108
        %v2110 = vpop.xlane.xlu0 %2109
        %v2111 = vmul.f32 %v2104, %v633
        %v2112 = vmul.f32 %v2107, %v633
        %v2113 = vmul.f32 %v2110, %v633
        %v2114 = vsub.f32 %v2099, %v2111
        %v2115 = vsub.f32 %v2100, %v2112
        %v2116 = vsub.f32 %v2101, %v2113
        %v2117 = vmul.f32 %v2114, %v2114
        %v2118 = vmul.f32 %v2115, %v2115
        %v2119 = vmul.f32 %v2116, %v2116
        %v2120 = vsel %vm622, %v2117, 0.0
        %2121 = vadd.xlane.f32.xlu0 %v2120
        %v2122 = vpop.xlane.xlu0 %2121
        %v2123 = vsel %vm622, %v2118, 0.0
        %2124 = vadd.xlane.f32.xlu0 %v2123
        %v2125 = vpop.xlane.xlu0 %2124
        %v2126 = vsel %vm629, %v2119, 0.0
        %2127 = vadd.xlane.f32.xlu0 %v2126
        %v2128 = vpop.xlane.xlu0 %2127
        %v2129 = vmul.f32 %v2122, %v633
        %v2130 = vmul.f32 %v2125, %v633
        %v2131 = vmul.f32 %v2128, %v633
        %v2132 = vadd.f32 %v2129, 1e-06
        %v2133 = vadd.f32 %v2130, 1e-06
        %v2134 = vadd.f32 %v2131, 1e-06
        %v2135 = vrsqrt.pop %v2132
        %v2136 = vrsqrt.pop %v2133
        %v2137 = vrsqrt.pop %v2134
        %v2138 = vmul.f32 %v2114, %v2135
        %v2139 = vmul.f32 %v2115, %v2136
        %v2140 = vmul.f32 %v2116, %v2137
        %v2141 = vlaneseq
        %v2142 = vshrl.u32 %v2141, 7
        %v2143 = vsub.s32 2, %v2142
        %v2144 = vrot.slane %v621, %v2143
        %v2145 = vmul.f32 %v2138, %v2144
        %v2146 = vmul.f32 %v2139, %v2144
        %v2147 = vmul.f32 %v2140, %v2144
        %v2148 = vlaneseq
        %v2149 = vshrl.u32 %v2148, 7
        %v2150 = vsub.s32 3, %v2149
        %v2151 = vrot.slane %v621, %v2150
        %v2152 = vadd.f32 %v2145, %v2151
        %v2153 = vadd.f32 %v2146, %v2151
        %v2154 = vadd.f32 %v2147, %v2151
        %v2155 = vld [vmem:[%s8] sm:$0xff]
        %v2156 = vld [vmem:[%s8 + $0x8] sm:$0xff]
        %v2157 = vld [vmem:[%s8 + $0x10] sm:$0xff]
        %v2158 = vld [vmem:[%s8 + $0x18] sm:$0xff]
        %v2159 = vld [vmem:[%s9] sm:$0x1]
        %v2161 = vlaneseq
        %v2162 = vshrl.u32 %v2161, 7
        %v2163 = vsub.s32 0, %v2162
        %v2164 = vrot.slane %v2159, %v2163
        %v2167 = vsel %vm622, %v2152, 0
        %v2170 = vsel %vm622, %v2153, 0
        %v2173 = vsel %vm622, %v2154, 0
        %2175 = vmatprep.subr.mxu0 0.0
        %2176 = vmatpush1.msra.mxu0 %v2155
        %2177 = vmatprep.subr.mxu0 0.0
        %2178 = vmatpush1.msra.mxu0 %v2156
        %2179 = vmatprep.subr.mxu0 0.0
        %2180 = vmatpush1.msra.mxu0 %v2157
        %2181 = vmatprep.subr.mxu0 0.0
        %2182 = vmatpush1.msra.mxu0 %v2158
        %2183 = vmatprep.subr.mxu0 0.0
        %2184 = vmatpush1.msra.mxu0 0.0
        %2185 = vmatprep.subr.mxu0 0.0
        %2186 = vmatpush1.msra.mxu0 0.0
        %2187 = vmatprep.subr.mxu0 0.0
        %2188 = vmatpush1.msra.mxu0 0.0
        %2189 = vmatprep.subr.mxu0 0.0
        %2190 = vmatpush1.msra.mxu0 0.0
        %2191 = vmatprep.subr.mxu0 0.0
        %2192 = vmatpush1.msra.mxu0 0.0
        %2193 = vmatprep.subr.mxu0 0.0
        %2194 = vmatpush1.msra.mxu0 0.0
        %2195 = vmatprep.subr.mxu0 0.0
        %2196 = vmatpush1.msra.mxu0 0.0
        %2197 = vmatprep.subr.mxu0 0.0
        %2198 = vmatpush1.msra.mxu0 0.0
        %2199 = vmatprep.subr.mxu0 0.0
        %2200 = vmatpush1.msra.mxu0 0.0
        %2201 = vmatprep.subr.mxu0 0.0
        %2202 = vmatpush1.msra.mxu0 0.0
        %2203 = vmatprep.subr.mxu0 0.0
        %2204 = vmatpush1.msra.mxu0 0.0
        %2205 = vmatprep.subr.mxu0 0.0
        %2206 = vmatpush1.msra.mxu0 0.0
        %2207 = vmatprep.subr.mxu0 0.0
        %2208 = vmatpush1.msra.mxu0 0.0
        %2209 = vmatprep.subr.mxu0 0.0
        %2210 = vmatpush1.msra.mxu0 0.0
        %2211 = vmatprep.subr.mxu0 0.0
        %2212 = vmatpush1.msra.mxu0 0.0
        %2213 = vmatprep.subr.mxu0 0.0
        %2214 = vmatpush1.msra.mxu0 0.0
        %2215 = vmatprep.subr.mxu0 0.0
        %2216 = vmatpush1.msra.mxu0 0.0
        %2217 = vmatprep.subr.mxu0 0.0
        %2218 = vmatpush1.msra.mxu0 0.0
        %2219 = vmatprep.subr.mxu0 0.0
        %2220 = vmatpush1.msra.mxu0 0.0
        %2221 = vmatprep.subr.mxu0 0.0
        %2222 = vmatpush1.msra.mxu0 0.0
        %2223 = vmatprep.subr.mxu0 0.0
        %2224 = vmatpush1.msra.mxu0 0.0
        %2225 = vmatprep.subr.mxu0 0.0
        %2226 = vmatpush1.msra.mxu0 0.0
        %2227 = vmatprep.subr.mxu0 0.0
        %2228 = vmatpush1.msra.mxu0 0.0
        %2229 = vmatprep.subr.mxu0 0.0
        %2230 = vmatpush1.msra.mxu0 0.0
        %2231 = vmatprep.subr.mxu0 0.0
        %2232 = vmatpush1.msra.mxu0 0.0
        %2233 = vmatprep.subr.mxu0 0.0
        %2234 = vmatpush1.msra.mxu0 0.0
        %2235 = vmatprep.subr.mxu0 0.0
        %2236 = vmatpush1.msra.mxu0 0.0
        %2237 = vmatprep.subr.mxu0 0.0
        %2238 = vmatpush1.msra.mxu0 0.0
        %2239 = vmatprep.mubr.f32.mxu0 0.0
        %2240 = vmatmul.mubr.f32.gmra.mrb[0].mxu0 %v2167
        %v2241 = vpop.f32.mrb[0].mxu0
        %v2242 = vadd.f32 %v2164, %v2241
        %v2243 = vpop.f32.mrb[0].mxu0
        %2244 = vmatprep.mubr.f32.mxu0 0.0
        %2245 = vmatmul.mubr.f32.gmra.mrb[0].mxu0 %v2170
        %v2246 = vpop.f32.mrb[0].mxu0
        %v2247 = vadd.f32 %v2164, %v2246
        %v2248 = vpop.f32.mrb[0].mxu0
        %2249 = vmatprep.mubr.f32.mxu0 0.0
        %2250 = vmatmul.mubr.f32.gmra.mrb[0].mxu0 %v2173
        %v2251 = vpop.f32.mrb[0].mxu0
        %v2252 = vadd.f32 %v2164, %v2251
        %v2253 = vpop.f32.mrb[0].mxu0
        %2254 = vdwg.mxu0
        %v2255 = vmul.f32 %v2242, 0.5
        %v2256 = vmul.f32 %v2247, 0.5
        %v2257 = vmul.f32 %v2252, 0.5
        %v2258 = vmul.f32 %v2242, 0.044715
        %v2259 = vmul.f32 %v2247, 0.044715
        %v2260 = vmul.f32 %v2252, 0.044715
        %v2261 = vmul.f32 %v2258, %v2242
        %v2262 = vmul.f32 %v2259, %v2247
        %v2263 = vmul.f32 %v2260, %v2252
        %v2264 = vmul.f32 %v2261, %v2242
        %v2265 = vmul.f32 %v2262, %v2247
        %v2266 = vmul.f32 %v2263, %v2252
        %v2267 = vadd.f32 %v2242, %v2264
        %v2268 = vadd.f32 %v2247, %v2265
        %v2269 = vadd.f32 %v2252, %v2266
        %v2270 = vmul.f32 %v2267, 0.7978846
        %v2271 = vmul.f32 %v2268, 0.7978846
        %v2272 = vmul.f32 %v2269, 0.7978846
        %v2273 = vtanh.pop %v2270
        %v2274 = vtanh.pop %v2271
        %v2275 = vtanh.pop %v2272
        %v2276 = vadd.f32 %v2273, 1.0
        %v2277 = vadd.f32 %v2274, 1.0
        %v2278 = vadd.f32 %v2275, 1.0
        %v2279 = vmul.f32 %v2255, %v2276
        %v2280 = vmul.f32 %v2256, %v2277
        %v2281 = vmul.f32 %v2257, %v2278
        %v2282 = vld [vmem:[%s10] sm:$0xff]
        %v2283 = vld [vmem:[%s10 + $0x8] sm:$0xff]
        %v2284 = vld [vmem:[%s10 + $0x10] sm:$0xff]
        %v2285 = vld [vmem:[%s10 + $0x18] sm:$0xff]
        %v2286 = vld [vmem:[%s10 + $0x20] sm:$0xff]
        %v2287 = vld [vmem:[%s10 + $0x28] sm:$0xff]
        %v2288 = vld [vmem:[%s10 + $0x30] sm:$0xff]
        %v2289 = vld [vmem:[%s10 + $0x38] sm:$0xff]
        %v2290 = vld [vmem:[%s11] sm:$0x1]
        %v2292 = vlaneseq
        %v2293 = vshrl.u32 %v2292, 7
        %v2294 = vsub.s32 0, %v2293
        %v2295 = vrot.slane %v2290, %v2294
        %vm2297 = vcmask 523264
        %v2299 = vsel %vm2297, %v2279, 0
        %v2302 = vsel %vm2297, %v2280, 0
        %v2305 = vsel %vm2297, %v2281, 0
        %2307 = vmatprep.subr.mxu0 0.0
        %2308 = vmatpush1.msra.mxu0 %v2282
        %2309 = vmatprep.subr.mxu0 0.0
        %2310 = vmatpush1.msra.mxu0 %v2283
        %2311 = vmatprep.subr.mxu0 0.0
        %2312 = vmatpush1.msra.mxu0 %v2284
        %2313 = vmatprep.subr.mxu0 0.0
        %2314 = vmatpush1.msra.mxu0 %v2285
        %2315 = vmatprep.subr.mxu0 0.0
        %2316 = vmatpush1.msra.mxu0 %v2286
        %2317 = vmatprep.subr.mxu0 0.0
        %2318 = vmatpush1.msra.mxu0 %v2287
        %2319 = vmatprep.subr.mxu0 0.0
        %2320 = vmatpush1.msra.mxu0 %v2288
        %2321 = vmatprep.subr.mxu0 0.0
        %2322 = vmatpush1.msra.mxu0 %v2289
        %2323 = vmatprep.subr.mxu0 0.0
        %2324 = vmatpush1.msra.mxu0 0.0
        %2325 = vmatprep.subr.mxu0 0.0
        %2326 = vmatpush1.msra.mxu0 0.0
        %2327 = vmatprep.subr.mxu0 0.0
        %2328 = vmatpush1.msra.mxu0 0.0
        %2329 = vmatprep.subr.mxu0 0.0
        %2330 = vmatpush1.msra.mxu0 0.0
        %2331 = vmatprep.subr.mxu0 0.0
        %2332 = vmatpush1.msra.mxu0 0.0
        %2333 = vmatprep.subr.mxu0 0.0
        %2334 = vmatpush1.msra.mxu0 0.0
        %2335 = vmatprep.subr.mxu0 0.0
        %2336 = vmatpush1.msra.mxu0 0.0
        %2337 = vmatprep.subr.mxu0 0.0
        %2338 = vmatpush1.msra.mxu0 0.0
        %2339 = vmatprep.subr.mxu0 0.0
        %2340 = vmatpush1.msra.mxu0 0.0
        %2341 = vmatprep.subr.mxu0 0.0
        %2342 = vmatpush1.msra.mxu0 0.0
        %2343 = vmatprep.subr.mxu0 0.0
        %2344 = vmatpush1.msra.mxu0 0.0
        %2345 = vmatprep.subr.mxu0 0.0
        %2346 = vmatpush1.msra.mxu0 0.0
        %2347 = vmatprep.subr.mxu0 0.0
        %2348 = vmatpush1.msra.mxu0 0.0
        %2349 = vmatprep.subr.mxu0 0.0
        %2350 = vmatpush1.msra.mxu0 0.0
        %2351 = vmatprep.subr.mxu0 0.0
        %2352 = vmatpush1.msra.mxu0 0.0
        %2353 = vmatprep.subr.mxu0 0.0
        %2354 = vmatpush1.msra.mxu0 0.0
        %2355 = vmatprep.subr.mxu0 0.0
        %2356 = vmatpush1.msra.mxu0 0.0
        %2357 = vmatprep.subr.mxu0 0.0
        %2358 = vmatpush1.msra.mxu0 0.0
        %2359 = vmatprep.subr.mxu0 0.0
        %2360 = vmatpush1.msra.mxu0 0.0
        %2361 = vmatprep.subr.mxu0 0.0
        %2362 = vmatpush1.msra.mxu0 0.0
        %2363 = vmatprep.subr.mxu0 0.0
        %2364 = vmatpush1.msra.mxu0 0.0
        %2365 = vmatprep.subr.mxu0 0.0
        %2366 = vmatpush1.msra.mxu0 0.0
        %2367 = vmatprep.subr.mxu0 0.0
        %2368 = vmatpush1.msra.mxu0 0.0
        %2369 = vmatprep.subr.mxu0 0.0
        %2370 = vmatpush1.msra.mxu0 0.0
        %2371 = vmatprep.mubr.f32.mxu0 0.0
        %2372 = vmatmul.mubr.f32.gmra.mrb[0].mxu0 %v2299
        %v2373 = vpop.f32.mrb[0].mxu0
        %v2374 = vadd.f32 %v2295, %v2373
        %v2375 = vpop.f32.mrb[0].mxu0
        %2376 = vmatprep.mubr.f32.mxu0 0.0
        %2377 = vmatmul.mubr.f32.gmra.mrb[0].mxu0 %v2302
        %v2378 = vpop.f32.mrb[0].mxu0
        %v2379 = vadd.f32 %v2295, %v2378
        %v2380 = vpop.f32.mrb[0].mxu0
        %2381 = vmatprep.mubr.f32.mxu0 0.0
        %2382 = vmatmul.mubr.f32.gmra.mrb[0].mxu0 %v2305
        %v2383 = vpop.f32.mrb[0].mxu0
        %v2384 = vadd.f32 %v2295, %v2383
        %v2385 = vpop.f32.mrb[0].mxu0
        %2386 = vdwg.mxu0
        %v2387 = vadd.f32 %v2099, %v2374
        %v2388 = vadd.f32 %v2100, %v2379
        %v2389 = vadd.f32 %v2101, %v2384
        %s2390 = scalar_lea.vmem %s3, 4
        %v2391 = vld [vmem:[%s2390] sm:$0xf]
        %v2392 = vsel %vm622, %v2387, 0.0
        %2393 = vadd.xlane.f32.xlu0 %v2392
        %v2394 = vpop.xlane.xlu0 %2393
        %v2395 = vsel %vm622, %v2388, 0.0
        %2396 = vadd.xlane.f32.xlu0 %v2395
        %v2397 = vpop.xlane.xlu0 %2396
        %v2398 = vsel %vm629, %v2389, 0.0
        %2399 = vadd.xlane.f32.xlu0 %v2398
        %v2400 = vpop.xlane.xlu0 %2399
        %v2401 = vmul.f32 %v2394, %v633
        %v2402 = vmul.f32 %v2397, %v633
        %v2403 = vmul.f32 %v2400, %v633
        %v2404 = vsub.f32 %v2387, %v2401
        %v2405 = vsub.f32 %v2388, %v2402
        %v2406 = vsub.f32 %v2389, %v2403
        %v2407 = vmul.f32 %v2404, %v2404
        %v2408 = vmul.f32 %v2405, %v2405
        %v2409 = vmul.f32 %v2406, %v2406
        %v2410 = vsel %vm622, %v2407, 0.0
        %2411 = vadd.xlane.f32.xlu0 %v2410
        %v2412 = vpop.xlane.xlu0 %2411
        %v2413 = vsel %vm622, %v2408, 0.0
        %2414 = vadd.xlane.f32.xlu0 %v2413
        %v2415 = vpop.xlane.xlu0 %2414
        %v2416 = vsel %vm629, %v2409, 0.0
        %2417 = vadd.xlane.f32.xlu0 %v2416
        %v2418 = vpop.xlane.xlu0 %2417
        %v2419 = vmul.f32 %v2412, %v633
        %v2420 = vmul.f32 %v2415, %v633
        %v2421 = vmul.f32 %v2418, %v633
        %v2422 = vadd.f32 %v2419, 1e-06
        %v2423 = vadd.f32 %v2420, 1e-06
        %v2424 = vadd.f32 %v2421, 1e-06
        %v2425 = vrsqrt.pop %v2422
        %v2426 = vrsqrt.pop %v2423
        %v2427 = vrsqrt.pop %v2424
        %v2428 = vmul.f32 %v2404, %v2425
        %v2429 = vmul.f32 %v2405, %v2426
        %v2430 = vmul.f32 %v2406, %v2427
        %v2431 = vlaneseq
        %v2432 = vshrl.u32 %v2431, 7
        %v2433 = vsub.s32 0, %v2432
        %v2434 = vrot.slane %v2391, %v2433
        %v2435 = vmul.f32 %v2428, %v2434
        %v2436 = vmul.f32 %v2429, %v2434
        %v2437 = vmul.f32 %v2430, %v2434
        %v2438 = vlaneseq
        %v2439 = vshrl.u32 %v2438, 7
        %v2440 = vsub.s32 1, %v2439
        %v2441 = vrot.slane %v2391, %v2440
        %v2442 = vadd.f32 %v2435, %v2441
        %v2443 = vadd.f32 %v2436, %v2441
        %v2444 = vadd.f32 %v2437, %v2441
        %s2445 = scalar_lea.vmem %s4, 32
        %v2446 = vld [vmem:[%s2445] sm:$0xff]
        %v2447 = vld [vmem:[%s2445 + $0x8] sm:$0xff]
        %v2448 = vld [vmem:[%s2445 + $0x10] sm:$0xff]
        %v2449 = vld [vmem:[%s2445 + $0x18] sm:$0xff]
        %s2450 = scalar_lea.vmem %s5, 1
        %v2451 = vld [vmem:[%s2450] sm:$0x1]
        %v2453 = vlaneseq
        %v2454 = vshrl.u32 %v2453, 7
        %v2455 = vsub.s32 0, %v2454
        %v2456 = vrot.slane %v2451, %v2455
        %v2459 = vsel %vm622, %v2442, 0
        %v2462 = vsel %vm622, %v2443, 0
        %v2465 = vsel %vm622, %v2444, 0
        %2467 = vmatprep.subr.mxu0 0.0
        %2468 = vmatpush1.msra.mxu0 %v2446
        %2469 = vmatprep.subr.mxu0 0.0
        %2470 = vmatpush1.msra.mxu0 %v2447
        %2471 = vmatprep.subr.mxu0 0.0
        %2472 = vmatpush1.msra.mxu0 %v2448
        %2473 = vmatprep.subr.mxu0 0.0
        %2474 = vmatpush1.msra.mxu0 %v2449
        %2475 = vmatprep.subr.mxu0 0.0
        %2476 = vmatpush1.msra.mxu0 0.0
        %2477 = vmatprep.subr.mxu0 0.0
        %2478 = vmatpush1.msra.mxu0 0.0
        %2479 = vmatprep.subr.mxu0 0.0
        %2480 = vmatpush1.msra.mxu0 0.0
        %2481 = vmatprep.subr.mxu0 0.0
        %2482 = vmatpush1.msra.mxu0 0.0
        %2483 = vmatprep.subr.mxu0 0.0
        %2484 = vmatpush1.msra.mxu0 0.0
        %2485 = vmatprep.subr.mxu0 0.0
        %2486 = vmatpush1.msra.mxu0 0.0
        %2487 = vmatprep.subr.mxu0 0.0
        %2488 = vmatpush1.msra.mxu0 0.0
        %2489 = vmatprep.subr.mxu0 0.0
        %2490 = vmatpush1.msra.mxu0 0.0
        %2491 = vmatprep.subr.mxu0 0.0
        %2492 = vmatpush1.msra.mxu0 0.0
        %2493 = vmatprep.subr.mxu0 0.0
        %2494 = vmatpush1.msra.mxu0 0.0
        %2495 = vmatprep.subr.mxu0 0.0
        %2496 = vmatpush1.msra.mxu0 0.0
        %2497 = vmatprep.subr.mxu0 0.0
        %2498 = vmatpush1.msra.mxu0 0.0
        %2499 = vmatprep.subr.mxu0 0.0
        %2500 = vmatpush1.msra.mxu0 0.0
        %2501 = vmatprep.subr.mxu0 0.0
        %2502 = vmatpush1.msra.mxu0 0.0
        %2503 = vmatprep.subr.mxu0 0.0
        %2504 = vmatpush1.msra.mxu0 0.0
        %2505 = vmatprep.subr.mxu0 0.0
        %2506 = vmatpush1.msra.mxu0 0.0
        %2507 = vmatprep.subr.mxu0 0.0
        %2508 = vmatpush1.msra.mxu0 0.0
        %2509 = vmatprep.subr.mxu0 0.0
        %2510 = vmatpush1.msra.mxu0 0.0
        %2511 = vmatprep.subr.mxu0 0.0
        %2512 = vmatpush1.msra.mxu0 0.0
        %2513 = vmatprep.subr.mxu0 0.0
        %2514 = vmatpush1.msra.mxu0 0.0
        %2515 = vmatprep.subr.mxu0 0.0
        %2516 = vmatpush1.msra.mxu0 0.0
        %2517 = vmatprep.subr.mxu0 0.0
        %2518 = vmatpush1.msra.mxu0 0.0
        %2519 = vmatprep.subr.mxu0 0.0
        %2520 = vmatpush1.msra.mxu0 0.0
        %2521 = vmatprep.subr.mxu0 0.0
        %2522 = vmatpush1.msra.mxu0 0.0
        %2523 = vmatprep.subr.mxu0 0.0
        %2524 = vmatpush1.msra.mxu0 0.0
        %2525 = vmatprep.subr.mxu0 0.0
        %2526 = vmatpush1.msra.mxu0 0.0
        %2527 = vmatprep.subr.mxu0 0.0
        %2528 = vmatpush1.msra.mxu0 0.0
        %2529 = vmatprep.subr.mxu0 0.0
        %2530 = vmatpush1.msra.mxu0 0.0
        %2531 = vmatprep.mubr.f32.mxu0 0.0
        %2532 = vmatmul.mubr.f32.gmra.mrb[0].mxu0 %v2459
        %v2533 = vpop.f32.mrb[0].mxu0
        %v2534 = vadd.f32 %v2456, %v2533
        %v2535 = vpop.f32.mrb[0].mxu0
        %2536 = vmatprep.mubr.f32.mxu0 0.0
        %2537 = vmatmul.mubr.f32.gmra.mrb[0].mxu0 %v2462
        %v2538 = vpop.f32.mrb[0].mxu0
        %v2539 = vadd.f32 %v2456, %v2538
        %v2540 = vpop.f32.mrb[0].mxu0
        %2541 = vmatprep.mubr.f32.mxu0 0.0
        %2542 = vmatmul.mubr.f32.gmra.mrb[0].mxu0 %v2465
        %v2543 = vpop.f32.mrb[0].mxu0
        %v2544 = vadd.f32 %v2456, %v2543
        %v2545 = vpop.f32.mrb[0].mxu0
        %2546 = vdwg.mxu0
        %s2547 = scalar_lea.vmem %s6, 32
        %v2548 = vld [vmem:[%s2547] sm:$0xff]
        %v2549 = vld [vmem:[%s2547 + $0x8] sm:$0xff]
        %v2550 = vld [vmem:[%s2547 + $0x10] sm:$0xff]
        %v2551 = vld [vmem:[%s2547 + $0x18] sm:$0xff]
        %2555 = vrot.lane.b32.xlu0 %v2534, 96
        %v2556 = vpop.permute.xlu0 %2555
        %2557 = vrot.lane.b32.xlu0 %v2539, 96
        %v2558 = vpop.permute.xlu0 %2557
        %2559 = vrot.lane.b32.xlu0 %v2544, 96
        %v2560 = vpop.permute.xlu0 %2559
        %v2561 = vsel %vm791, %v2534, 0
        %v2563 = vsel %vm791, %v2539, 0
        %v2565 = vsel %vm791, %v2544, 0
        %v2567 = vsel %vm791, %v2556, 0
        %v2569 = vsel %vm791, %v2558, 0
        %v2571 = vsel %vm791, %v2560, 0
        %2573 = vmatprep.subr.mxu0 0.0
        %2574 = vmatpush1.xpose.msra.mxu0 %v2567
        %2575 = vmatprep.subr.mxu0 0.0
        %2576 = vmatpush1.xpose.msra.mxu0 %v2569
        %2577 = vmatprep.subr.mxu0 0.0
        %2578 = vmatpush1.xpose.msra.mxu0 %v2571
        %2579 = vmatprep.subr.mxu0 0.0
        %2580 = vmatpush1.xpose.msra.mxu0 0.0
        %2581 = vmatprep.subr.mxu0 0.0
        %2582 = vmatpush1.xpose.msra.mxu0 0.0
        %2583 = vmatprep.subr.mxu0 0.0
        %2584 = vmatpush1.xpose.msra.mxu0 0.0
        %2585 = vmatprep.subr.mxu0 0.0
        %2586 = vmatpush1.xpose.msra.mxu0 0.0
        %2587 = vmatprep.subr.mxu0 0.0
        %2588 = vmatpush1.xpose.msra.mxu0 0.0
        %2589 = vmatprep.subr.mxu0 0.0
        %2590 = vmatpush1.xpose.msra.mxu0 0.0
        %2591 = vmatprep.subr.mxu0 0.0
        %2592 = vmatpush1.xpose.msra.mxu0 0.0
        %2593 = vmatprep.subr.mxu0 0.0
        %2594 = vmatpush1.xpose.msra.mxu0 0.0
        %2595 = vmatprep.subr.mxu0 0.0
        %2596 = vmatpush1.xpose.msra.mxu0 0.0
        %2597 = vmatprep.subr.mxu0 0.0
        %2598 = vmatpush1.xpose.msra.mxu0 0.0
        %2599 = vmatprep.subr.mxu0 0.0
        %2600 = vmatpush1.xpose.msra.mxu0 0.0
        %2601 = vmatprep.subr.mxu0 0.0
        %2602 = vmatpush1.xpose.msra.mxu0 0.0
        %2603 = vmatprep.subr.mxu0 0.0
        %2604 = vmatpush1.xpose.msra.mxu0 0.0
        %2605 = vmatprep.subr.mxu0 0.0
        %2606 = vmatpush1.xpose.msra.mxu0 0.0
        %2607 = vmatprep.subr.mxu0 0.0
        %2608 = vmatpush1.xpose.msra.mxu0 0.0
        %2609 = vmatprep.subr.mxu0 0.0
        %2610 = vmatpush1.xpose.msra.mxu0 0.0
        %2611 = vmatprep.subr.mxu0 0.0
        %2612 = vmatpush1.xpose.msra.mxu0 0.0
        %2613 = vmatprep.subr.mxu0 0.0
        %2614 = vmatpush1.xpose.msra.mxu0 0.0
        %2615 = vmatprep.subr.mxu0 0.0
        %2616 = vmatpush1.xpose.msra.mxu0 0.0
        %2617 = vmatprep.subr.mxu0 0.0
        %2618 = vmatpush1.xpose.msra.mxu0 0.0
        %2619 = vmatprep.subr.mxu0 0.0
        %2620 = vmatpush1.xpose.msra.mxu0 0.0
        %2621 = vmatprep.subr.mxu0 0.0
        %2622 = vmatpush1.xpose.msra.mxu0 0.0
        %2623 = vmatprep.subr.mxu0 0.0
        %2624 = vmatpush1.xpose.msra.mxu0 0.0
        %2625 = vmatprep.subr.mxu0 0.0
        %2626 = vmatpush1.xpose.msra.mxu0 0.0
        %2627 = vmatprep.subr.mxu0 0.0
        %2628 = vmatpush1.xpose.msra.mxu0 0.0
        %2629 = vmatprep.subr.mxu0 0.0
        %2630 = vmatpush1.xpose.msra.mxu0 0.0
        %2631 = vmatprep.subr.mxu0 0.0
        %2632 = vmatpush1.xpose.msra.mxu0 0.0
        %2633 = vmatprep.subr.mxu0 0.0
        %2634 = vmatpush1.xpose.msra.mxu0 0.0
        %2635 = vmatprep.subr.mxu0 0.0
        %2636 = vmatpush1.xpose.msra.mxu0 0.0
        %2637 = vmatprep.mubr.f32.mxu0 0.0
        %2638 = vmatmul.mubr.f32.gmra.mrb[0].mxu0 %v2561
        %v2639 = vpop.f32.mrb[0].mxu0
        %v2640 = vadd.f32 0.0, %v2639
        %v2641 = vpop.f32.mrb[0].mxu0
        %2642 = vmatprep.mubr.f32.mxu0 0.0
        %2643 = vmatmul.mubr.f32.gmra.mrb[0].mxu0 %v2563
        %v2644 = vpop.f32.mrb[0].mxu0
        %v2645 = vadd.f32 0.0, %v2644
        %v2646 = vpop.f32.mrb[0].mxu0
        %2647 = vmatprep.mubr.f32.mxu0 0.0
        %2648 = vmatmul.mubr.f32.gmra.mrb[0].mxu0 %v2565
        %v2649 = vpop.f32.mrb[0].mxu0
        %v2650 = vadd.f32 0.0, %v2649
        %v2651 = vpop.f32.mrb[0].mxu0
        %2652 = vdwg.mxu0
        %v2653 = vsel %vm884, %v2640, -inf
        %2654 = vmax.xlane.f32.xlu0 %v2653
        %v2655 = vpop.xlane.xlu0 %2654
        %v2656 = vsel %vm884, %v2645, -inf
        %2657 = vmax.xlane.f32.xlu0 %v2656
        %v2658 = vpop.xlane.xlu0 %2657
        %v2659 = vsel %vm891, %v2650, -inf
        %2660 = vmax.xlane.f32.xlu0 %v2659
        %v2661 = vpop.xlane.xlu0 %2660
        %v2662 = vsub.f32 %v2640, %v2655
        %v2663 = vsub.f32 %v2645, %v2658
        %v2664 = vsub.f32 %v2650, %v2661
        %v2665 = vmul.f32 %v2662, 1.442695
        %v2666 = vpow.pop %v2665
        %v2667 = vmul.f32 %v2663, 1.442695
        %v2668 = vpow.pop %v2667
        %v2669 = vmul.f32 %v2664, 1.442695
        %v2670 = vpow.pop %v2669
        %v2671 = vsel %vm884, %v2666, 0.0
        %2672 = vadd.xlane.f32.xlu0 %v2671
        %v2673 = vpop.xlane.xlu0 %2672
        %v2674 = vsel %vm884, %v2668, 0.0
        %2675 = vadd.xlane.f32.xlu0 %v2674
        %v2676 = vpop.xlane.xlu0 %2675
        %v2677 = vsel %vm891, %v2670, 0.0
        %2678 = vadd.xlane.f32.xlu0 %v2677
        %v2679 = vpop.xlane.xlu0 %2678
        %v2680 = vrcp.pop %v2673
        %v2681 = vrcp.pop %v2676
        %v2682 = vrcp.pop %v2679
        %v2683 = vmul.f32 %v2666, %v2680
        %v2684 = vmul.f32 %v2668, %v2681
        %v2685 = vmul.f32 %v2670, %v2682
        %2686 = vrot.lane.b32.xlu0 %v2534, 64
        %v2687 = vpop.permute.xlu0 %2686
        %2688 = vrot.lane.b32.xlu0 %v2539, 64
        %v2689 = vpop.permute.xlu0 %2688
        %2690 = vrot.lane.b32.xlu0 %v2544, 64
        %v2691 = vpop.permute.xlu0 %2690
        %v2695 = vsel %vm884, %v2683, 0
        %v2698 = vsel %vm884, %v2684, 0
        %v2701 = vsel %vm884, %v2685, 0
        %v2703 = vsel %vm936, %v2691, 0
        %2705 = vmatprep.subr.mxu0 0.0
        %2706 = vmatpush1.msra.mxu0 %v2687
        %2707 = vmatprep.subr.mxu0 0.0
        %2708 = vmatpush1.msra.mxu0 %v2689
        %2709 = vmatprep.subr.mxu0 0.0
        %2710 = vmatpush1.msra.mxu0 %v2703
        %2711 = vmatprep.subr.mxu0 0.0
        %2712 = vmatpush1.msra.mxu0 0.0
        %2713 = vmatprep.subr.mxu0 0.0
        %2714 = vmatpush1.msra.mxu0 0.0
        %2715 = vmatprep.subr.mxu0 0.0
        %2716 = vmatpush1.msra.mxu0 0.0
        %2717 = vmatprep.subr.mxu0 0.0
        %2718 = vmatpush1.msra.mxu0 0.0
        %2719 = vmatprep.subr.mxu0 0.0
        %2720 = vmatpush1.msra.mxu0 0.0
        %2721 = vmatprep.subr.mxu0 0.0
        %2722 = vmatpush1.msra.mxu0 0.0
        %2723 = vmatprep.subr.mxu0 0.0
        %2724 = vmatpush1.msra.mxu0 0.0
        %2725 = vmatprep.subr.mxu0 0.0
        %2726 = vmatpush1.msra.mxu0 0.0
        %2727 = vmatprep.subr.mxu0 0.0
        %2728 = vmatpush1.msra.mxu0 0.0
        %2729 = vmatprep.subr.mxu0 0.0
        %2730 = vmatpush1.msra.mxu0 0.0
        %2731 = vmatprep.subr.mxu0 0.0
        %2732 = vmatpush1.msra.mxu0 0.0
        %2733 = vmatprep.subr.mxu0 0.0
        %2734 = vmatpush1.msra.mxu0 0.0
        %2735 = vmatprep.subr.mxu0 0.0
        %2736 = vmatpush1.msra.mxu0 0.0
        %2737 = vmatprep.subr.mxu0 0.0
        %2738 = vmatpush1.msra.mxu0 0.0
        %2739 = vmatprep.subr.mxu0 0.0
        %2740 = vmatpush1.msra.mxu0 0.0
        %2741 = vmatprep.subr.mxu0 0.0
        %2742 = vmatpush1.msra.mxu0 0.0
        %2743 = vmatprep.subr.mxu0 0.0
        %2744 = vmatpush1.msra.mxu0 0.0
        %2745 = vmatprep.subr.mxu0 0.0
        %2746 = vmatpush1.msra.mxu0 0.0
        %2747 = vmatprep.subr.mxu0 0.0
        %2748 = vmatpush1.msra.mxu0 0.0
        %2749 = vmatprep.subr.mxu0 0.0
        %2750 = vmatpush1.msra.mxu0 0.0
        %2751 = vmatprep.subr.mxu0 0.0
        %2752 = vmatpush1.msra.mxu0 0.0
        %2753 = vmatprep.subr.mxu0 0.0
        %2754 = vmatpush1.msra.mxu0 0.0
        %2755 = vmatprep.subr.mxu0 0.0
        %2756 = vmatpush1.msra.mxu0 0.0
        %2757 = vmatprep.subr.mxu0 0.0
        %2758 = vmatpush1.msra.mxu0 0.0
        %2759 = vmatprep.subr.mxu0 0.0
        %2760 = vmatpush1.msra.mxu0 0.0
        %2761 = vmatprep.subr.mxu0 0.0
        %2762 = vmatpush1.msra.mxu0 0.0
        %2763 = vmatprep.subr.mxu0 0.0
        %2764 = vmatpush1.msra.mxu0 0.0
        %2765 = vmatprep.subr.mxu0 0.0
        %2766 = vmatpush1.msra.mxu0 0.0
        %2767 = vmatprep.subr.mxu0 0.0
        %2768 = vmatpush1.msra.mxu0 0.0
        %2769 = vmatprep.mubr.f32.mxu0 0.0
        %2770 = vmatmul.mubr.f32.gmra.mrb[0].mxu0 %v2695
        %v2771 = vpop.f32.mrb[0].mxu0
        %v2772 = vadd.f32 0.0, %v2771
        %v2773 = vpop.f32.mrb[0].mxu0
        %2774 = vmatprep.mubr.f32.mxu0 0.0
        %2775 = vmatmul.mubr.f32.gmra.mrb[0].mxu0 %v2698
        %v2776 = vpop.f32.mrb[0].mxu0
        %v2777 = vadd.f32 0.0, %v2776
        %v2778 = vpop.f32.mrb[0].mxu0
        %2779 = vmatprep.mubr.f32.mxu0 0.0
        %2780 = vmatmul.mubr.f32.gmra.mrb[0].mxu0 %v2701
        %v2781 = vpop.f32.mrb[0].mxu0
        %v2782 = vadd.f32 0.0, %v2781
        %v2783 = vpop.f32.mrb[0].mxu0
        %2784 = vdwg.mxu0
        %2785 = vrot.lane.b32.xlu0 %v2534, 120
        %v2786 = vpop.permute.xlu0 %2785
        %2787 = vrot.lane.b32.xlu0 %v2539, 120
        %v2788 = vpop.permute.xlu0 %2787
        %2789 = vrot.lane.b32.xlu0 %v2544, 120
        %v2790 = vpop.permute.xlu0 %2789
        %2791 = vrot.lane.b32.xlu0 %v2534, 88
        %v2792 = vpop.permute.xlu0 %2791
        %2793 = vrot.lane.b32.xlu0 %v2539, 88
        %v2794 = vpop.permute.xlu0 %2793
        %2795 = vrot.lane.b32.xlu0 %v2544, 88
        %v2796 = vpop.permute.xlu0 %2795
        %v2797 = vsel %vm791, %v2786, 0
        %v2799 = vsel %vm791, %v2788, 0
        %v2801 = vsel %vm791, %v2790, 0
        %v2803 = vsel %vm791, %v2792, 0
        %v2805 = vsel %vm791, %v2794, 0
        %v2807 = vsel %vm791, %v2796, 0
        %2809 = vmatprep.subr.mxu0 0.0
        %2810 = vmatpush1.xpose.msra.mxu0 %v2803
        %2811 = vmatprep.subr.mxu0 0.0
        %2812 = vmatpush1.xpose.msra.mxu0 %v2805
        %2813 = vmatprep.subr.mxu0 0.0
        %2814 = vmatpush1.xpose.msra.mxu0 %v2807
        %2815 = vmatprep.subr.mxu0 0.0
        %2816 = vmatpush1.xpose.msra.mxu0 0.0
        %2817 = vmatprep.subr.mxu0 0.0
        %2818 = vmatpush1.xpose.msra.mxu0 0.0
        %2819 = vmatprep.subr.mxu0 0.0
        %2820 = vmatpush1.xpose.msra.mxu0 0.0
        %2821 = vmatprep.subr.mxu0 0.0
        %2822 = vmatpush1.xpose.msra.mxu0 0.0
        %2823 = vmatprep.subr.mxu0 0.0
        %2824 = vmatpush1.xpose.msra.mxu0 0.0
        %2825 = vmatprep.subr.mxu0 0.0
        %2826 = vmatpush1.xpose.msra.mxu0 0.0
        %2827 = vmatprep.subr.mxu0 0.0
        %2828 = vmatpush1.xpose.msra.mxu0 0.0
        %2829 = vmatprep.subr.mxu0 0.0
        %2830 = vmatpush1.xpose.msra.mxu0 0.0
        %2831 = vmatprep.subr.mxu0 0.0
        %2832 = vmatpush1.xpose.msra.mxu0 0.0
        %2833 = vmatprep.subr.mxu0 0.0
        %2834 = vmatpush1.xpose.msra.mxu0 0.0
        %2835 = vmatprep.subr.mxu0 0.0
        %2836 = vmatpush1.xpose.msra.mxu0 0.0
        %2837 = vmatprep.subr.mxu0 0.0
        %2838 = vmatpush1.xpose.msra.mxu0 0.0
        %2839 = vmatprep.subr.mxu0 0.0
        %2840 = vmatpush1.xpose.msra.mxu0 0.0
        %2841 = vmatprep.subr.mxu0 0.0
        %2842 = vmatpush1.xpose.msra.mxu0 0.0
        %2843 = vmatprep.subr.mxu0 0.0
        %2844 = vmatpush1.xpose.msra.mxu0 0.0
        %2845 = vmatprep.subr.mxu0 0.0
        %2846 = vmatpush1.xpose.msra.mxu0 0.0
        %2847 = vmatprep.subr.mxu0 0.0
        %2848 = vmatpush1.xpose.msra.mxu0 0.0
        %2849 = vmatprep.subr.mxu0 0.0
        %2850 = vmatpush1.xpose.msra.mxu0 0.0
        %2851 = vmatprep.subr.mxu0 0.0
        %2852 = vmatpush1.xpose.msra.mxu0 0.0
        %2853 = vmatprep.subr.mxu0 0.0
        %2854 = vmatpush1.xpose.msra.mxu0 0.0
        %2855 = vmatprep.subr.mxu0 0.0
        %2856 = vmatpush1.xpose.msra.mxu0 0.0
        %2857 = vmatprep.subr.mxu0 0.0
        %2858 = vmatpush1.xpose.msra.mxu0 0.0
        %2859 = vmatprep.subr.mxu0 0.0
        %2860 = vmatpush1.xpose.msra.mxu0 0.0
        %2861 = vmatprep.subr.mxu0 0.0
        %2862 = vmatpush1.xpose.msra.mxu0 0.0
        %2863 = vmatprep.subr.mxu0 0.0
        %2864 = vmatpush1.xpose.msra.mxu0 0.0
        %2865 = vmatprep.subr.mxu0 0.0
        %2866 = vmatpush1.xpose.msra.mxu0 0.0
        %2867 = vmatprep.subr.mxu0 0.0
        %2868 = vmatpush1.xpose.msra.mxu0 0.0
        %2869 = vmatprep.subr.mxu0 0.0
        %2870 = vmatpush1.xpose.msra.mxu0 0.0
        %2871 = vmatprep.subr.mxu0 0.0
        %2872 = vmatpush1.xpose.msra.mxu0 0.0
        %2873 = vmatprep.mubr.f32.mxu0 0.0
        %2874 = vmatmul.mubr.f32.gmra.mrb[0].mxu0 %v2797
        %v2875 = vpop.f32.mrb[0].mxu0
        %v2876 = vadd.f32 0.0, %v2875
        %v2877 = vpop.f32.mrb[0].mxu0
        %2878 = vmatprep.mubr.f32.mxu0 0.0
        %2879 = vmatmul.mubr.f32.gmra.mrb[0].mxu0 %v2799
        %v2880 = vpop.f32.mrb[0].mxu0
        %v2881 = vadd.f32 0.0, %v2880
        %v2882 = vpop.f32.mrb[0].mxu0
        %2883 = vmatprep.mubr.f32.mxu0 0.0
        %2884 = vmatmul.mubr.f32.gmra.mrb[0].mxu0 %v2801
        %v2885 = vpop.f32.mrb[0].mxu0
        %v2886 = vadd.f32 0.0, %v2885
        %v2887 = vpop.f32.mrb[0].mxu0
        %2888 = vdwg.mxu0
        %v2889 = vsel %vm884, %v2876, -inf
        %2890 = vmax.xlane.f32.xlu0 %v2889
        %v2891 = vpop.xlane.xlu0 %2890
        %v2892 = vsel %vm884, %v2881, -inf
        %2893 = vmax.xlane.f32.xlu0 %v2892
        %v2894 = vpop.xlane.xlu0 %2893
        %v2895 = vsel %vm891, %v2886, -inf
        %2896 = vmax.xlane.f32.xlu0 %v2895
        %v2897 = vpop.xlane.xlu0 %2896
        %v2898 = vsub.f32 %v2876, %v2891
        %v2899 = vsub.f32 %v2881, %v2894
        %v2900 = vsub.f32 %v2886, %v2897
        %v2901 = vmul.f32 %v2898, 1.442695
        %v2902 = vpow.pop %v2901
        %v2903 = vmul.f32 %v2899, 1.442695
        %v2904 = vpow.pop %v2903
        %v2905 = vmul.f32 %v2900, 1.442695
        %v2906 = vpow.pop %v2905
        %v2907 = vsel %vm884, %v2902, 0.0
        %2908 = vadd.xlane.f32.xlu0 %v2907
        %v2909 = vpop.xlane.xlu0 %2908
        %v2910 = vsel %vm884, %v2904, 0.0
        %2911 = vadd.xlane.f32.xlu0 %v2910
        %v2912 = vpop.xlane.xlu0 %2911
        %v2913 = vsel %vm891, %v2906, 0.0
        %2914 = vadd.xlane.f32.xlu0 %v2913
        %v2915 = vpop.xlane.xlu0 %2914
        %v2916 = vrcp.pop %v2909
        %v2917 = vrcp.pop %v2912
        %v2918 = vrcp.pop %v2915
        %v2919 = vmul.f32 %v2902, %v2916
        %v2920 = vmul.f32 %v2904, %v2917
        %v2921 = vmul.f32 %v2906, %v2918
        %2922 = vrot.lane.b32.xlu0 %v2534, 56
        %v2923 = vpop.permute.xlu0 %2922
        %2924 = vrot.lane.b32.xlu0 %v2539, 56
        %v2925 = vpop.permute.xlu0 %2924
        %2926 = vrot.lane.b32.xlu0 %v2544, 56
        %v2927 = vpop.permute.xlu0 %2926
        %v2931 = vsel %vm884, %v2919, 0
        %v2934 = vsel %vm884, %v2920, 0
        %v2937 = vsel %vm884, %v2921, 0
        %v2939 = vsel %vm936, %v2927, 0
        %2941 = vmatprep.subr.mxu0 0.0
        %2942 = vmatpush1.msra.mxu0 %v2923
        %2943 = vmatprep.subr.mxu0 0.0
        %2944 = vmatpush1.msra.mxu0 %v2925
        %2945 = vmatprep.subr.mxu0 0.0
        %2946 = vmatpush1.msra.mxu0 %v2939
        %2947 = vmatprep.subr.mxu0 0.0
        %2948 = vmatpush1.msra.mxu0 0.0
        %2949 = vmatprep.subr.mxu0 0.0
        %2950 = vmatpush1.msra.mxu0 0.0
        %2951 = vmatprep.subr.mxu0 0.0
        %2952 = vmatpush1.msra.mxu0 0.0
        %2953 = vmatprep.subr.mxu0 0.0
        %2954 = vmatpush1.msra.mxu0 0.0
        %2955 = vmatprep.subr.mxu0 0.0
        %2956 = vmatpush1.msra.mxu0 0.0
        %2957 = vmatprep.subr.mxu0 0.0
        %2958 = vmatpush1.msra.mxu0 0.0
        %2959 = vmatprep.subr.mxu0 0.0
        %2960 = vmatpush1.msra.mxu0 0.0
        %2961 = vmatprep.subr.mxu0 0.0
        %2962 = vmatpush1.msra.mxu0 0.0
        %2963 = vmatprep.subr.mxu0 0.0
        %2964 = vmatpush1.msra.mxu0 0.0
        %2965 = vmatprep.subr.mxu0 0.0
        %2966 = vmatpush1.msra.mxu0 0.0
        %2967 = vmatprep.subr.mxu0 0.0
        %2968 = vmatpush1.msra.mxu0 0.0
        %2969 = vmatprep.subr.mxu0 0.0
        %2970 = vmatpush1.msra.mxu0 0.0
        %2971 = vmatprep.subr.mxu0 0.0
        %2972 = vmatpush1.msra.mxu0 0.0
        %2973 = vmatprep.subr.mxu0 0.0
        %2974 = vmatpush1.msra.mxu0 0.0
        %2975 = vmatprep.subr.mxu0 0.0
        %2976 = vmatpush1.msra.mxu0 0.0
        %2977 = vmatprep.subr.mxu0 0.0
        %2978 = vmatpush1.msra.mxu0 0.0
        %2979 = vmatprep.subr.mxu0 0.0
        %2980 = vmatpush1.msra.mxu0 0.0
        %2981 = vmatprep.subr.mxu0 0.0
        %2982 = vmatpush1.msra.mxu0 0.0
        %2983 = vmatprep.subr.mxu0 0.0
        %2984 = vmatpush1.msra.mxu0 0.0
        %2985 = vmatprep.subr.mxu0 0.0
        %2986 = vmatpush1.msra.mxu0 0.0
        %2987 = vmatprep.subr.mxu0 0.0
        %2988 = vmatpush1.msra.mxu0 0.0
        %2989 = vmatprep.subr.mxu0 0.0
        %2990 = vmatpush1.msra.mxu0 0.0
        %2991 = vmatprep.subr.mxu0 0.0
        %2992 = vmatpush1.msra.mxu0 0.0
        %2993 = vmatprep.subr.mxu0 0.0
        %2994 = vmatpush1.msra.mxu0 0.0
        %2995 = vmatprep.subr.mxu0 0.0
        %2996 = vmatpush1.msra.mxu0 0.0
        %2997 = vmatprep.subr.mxu0 0.0
        %2998 = vmatpush1.msra.mxu0 0.0
        %2999 = vmatprep.subr.mxu0 0.0
        %3000 = vmatpush1.msra.mxu0 0.0
        %3001 = vmatprep.subr.mxu0 0.0
        %3002 = vmatpush1.msra.mxu0 0.0
        %3003 = vmatprep.subr.mxu0 0.0
        %3004 = vmatpush1.msra.mxu0 0.0
        %3005 = vmatprep.mubr.f32.mxu0 0.0
        %3006 = vmatmul.mubr.f32.gmra.mrb[0].mxu0 %v2931
        %v3007 = vpop.f32.mrb[0].mxu0
        %v3008 = vadd.f32 0.0, %v3007
        %v3009 = vpop.f32.mrb[0].mxu0
        %3010 = vmatprep.mubr.f32.mxu0 0.0
        %3011 = vmatmul.mubr.f32.gmra.mrb[0].mxu0 %v2934
        %v3012 = vpop.f32.mrb[0].mxu0
        %v3013 = vadd.f32 0.0, %v3012
        %v3014 = vpop.f32.mrb[0].mxu0
        %3015 = vmatprep.mubr.f32.mxu0 0.0
        %3016 = vmatmul.mubr.f32.gmra.mrb[0].mxu0 %v2937
        %v3017 = vpop.f32.mrb[0].mxu0
        %v3018 = vadd.f32 0.0, %v3017
        %v3019 = vpop.f32.mrb[0].mxu0
        %3020 = vdwg.mxu0
        %v3022 = vsel %vm791, %v3008, 0
        %v3025 = vsel %vm791, %v3013, 0
        %v3028 = vsel %vm791, %v3018, 0
        %3030 = vmatprep.subr.mxu0 0.0
        %3031 = vmatpush1.msra.mxu0 %v2549
        %3032 = vmatprep.subr.mxu0 0.0
        %3033 = vmatpush1.msra.mxu0 0.0
        %3034 = vmatprep.subr.mxu0 0.0
        %3035 = vmatpush1.msra.mxu0 0.0
        %3036 = vmatprep.subr.mxu0 0.0
        %3037 = vmatpush1.msra.mxu0 0.0
        %3038 = vmatprep.subr.mxu0 0.0
        %3039 = vmatpush1.msra.mxu0 0.0
        %3040 = vmatprep.subr.mxu0 0.0
        %3041 = vmatpush1.msra.mxu0 0.0
        %3042 = vmatprep.subr.mxu0 0.0
        %3043 = vmatpush1.msra.mxu0 0.0
        %3044 = vmatprep.subr.mxu0 0.0
        %3045 = vmatpush1.msra.mxu0 0.0
        %3046 = vmatprep.subr.mxu0 0.0
        %3047 = vmatpush1.msra.mxu0 0.0
        %3048 = vmatprep.subr.mxu0 0.0
        %3049 = vmatpush1.msra.mxu0 0.0
        %3050 = vmatprep.subr.mxu0 0.0
        %3051 = vmatpush1.msra.mxu0 0.0
        %3052 = vmatprep.subr.mxu0 0.0
        %3053 = vmatpush1.msra.mxu0 0.0
        %3054 = vmatprep.subr.mxu0 0.0
        %3055 = vmatpush1.msra.mxu0 0.0
        %3056 = vmatprep.subr.mxu0 0.0
        %3057 = vmatpush1.msra.mxu0 0.0
        %3058 = vmatprep.subr.mxu0 0.0
        %3059 = vmatpush1.msra.mxu0 0.0
        %3060 = vmatprep.subr.mxu0 0.0
        %3061 = vmatpush1.msra.mxu0 0.0
        %3062 = vmatprep.subr.mxu0 0.0
        %3063 = vmatpush1.msra.mxu0 0.0
        %3064 = vmatprep.subr.mxu0 0.0
        %3065 = vmatpush1.msra.mxu0 0.0
        %3066 = vmatprep.subr.mxu0 0.0
        %3067 = vmatpush1.msra.mxu0 0.0
        %3068 = vmatprep.subr.mxu0 0.0
        %3069 = vmatpush1.msra.mxu0 0.0
        %3070 = vmatprep.subr.mxu0 0.0
        %3071 = vmatpush1.msra.mxu0 0.0
        %3072 = vmatprep.subr.mxu0 0.0
        %3073 = vmatpush1.msra.mxu0 0.0
        %3074 = vmatprep.subr.mxu0 0.0
        %3075 = vmatpush1.msra.mxu0 0.0
        %3076 = vmatprep.subr.mxu0 0.0
        %3077 = vmatpush1.msra.mxu0 0.0
        %3078 = vmatprep.subr.mxu0 0.0
        %3079 = vmatpush1.msra.mxu0 0.0
        %3080 = vmatprep.subr.mxu0 0.0
        %3081 = vmatpush1.msra.mxu0 0.0
        %3082 = vmatprep.subr.mxu0 0.0
        %3083 = vmatpush1.msra.mxu0 0.0
        %3084 = vmatprep.subr.mxu0 0.0
        %3085 = vmatpush1.msra.mxu0 0.0
        %3086 = vmatprep.subr.mxu0 0.0
        %3087 = vmatpush1.msra.mxu0 0.0
        %3088 = vmatprep.subr.mxu0 0.0
        %3089 = vmatpush1.msra.mxu0 0.0
        %3090 = vmatprep.subr.mxu0 0.0
        %3091 = vmatpush1.msra.mxu0 0.0
        %3092 = vmatprep.subr.mxu0 0.0
        %3093 = vmatpush1.msra.mxu0 0.0
        %3094 = vmatprep.mubr.f32.mxu0 0.0
        %3095 = vmatmul.mubr.f32.gmra.mrb[0].mxu0 %v3022
        %v3096 = vpop.f32.mrb[0].mxu0
        %v3097 = vadd.f32 0.0, %v3096
        %v3098 = vpop.f32.mrb[0].mxu0
        %3099 = vmatprep.mubr.f32.mxu0 0.0
        %3100 = vmatmul.mubr.f32.gmra.mrb[0].mxu0 %v3025
        %v3101 = vpop.f32.mrb[0].mxu0
        %v3102 = vadd.f32 0.0, %v3101
        %v3103 = vpop.f32.mrb[0].mxu0
        %3104 = vmatprep.mubr.f32.mxu0 0.0
        %3105 = vmatmul.mubr.f32.gmra.mrb[0].mxu0 %v3028
        %v3106 = vpop.f32.mrb[0].mxu0
        %v3107 = vadd.f32 0.0, %v3106
        %v3108 = vpop.f32.mrb[0].mxu0
        %3109 = vdwg.mxu0
        %v3111 = vsel %vm791, %v2772, 0
        %v3114 = vsel %vm791, %v2777, 0
        %v3117 = vsel %vm791, %v2782, 0
        %3119 = vmatprep.subr.mxu0 0.0
        %3120 = vmatpush1.msra.mxu0 %v2548
        %3121 = vmatprep.subr.mxu0 0.0
        %3122 = vmatpush1.msra.mxu0 0.0
        %3123 = vmatprep.subr.mxu0 0.0
        %3124 = vmatpush1.msra.mxu0 0.0
        %3125 = vmatprep.subr.mxu0 0.0
        %3126 = vmatpush1.msra.mxu0 0.0
        %3127 = vmatprep.subr.mxu0 0.0
        %3128 = vmatpush1.msra.mxu0 0.0
        %3129 = vmatprep.subr.mxu0 0.0
        %3130 = vmatpush1.msra.mxu0 0.0
        %3131 = vmatprep.subr.mxu0 0.0
        %3132 = vmatpush1.msra.mxu0 0.0
        %3133 = vmatprep.subr.mxu0 0.0
        %3134 = vmatpush1.msra.mxu0 0.0
        %3135 = vmatprep.subr.mxu0 0.0
        %3136 = vmatpush1.msra.mxu0 0.0
        %3137 = vmatprep.subr.mxu0 0.0
        %3138 = vmatpush1.msra.mxu0 0.0
        %3139 = vmatprep.subr.mxu0 0.0
        %3140 = vmatpush1.msra.mxu0 0.0
        %3141 = vmatprep.subr.mxu0 0.0
        %3142 = vmatpush1.msra.mxu0 0.0
        %3143 = vmatprep.subr.mxu0 0.0
        %3144 = vmatpush1.msra.mxu0 0.0
        %3145 = vmatprep.subr.mxu0 0.0
        %3146 = vmatpush1.msra.mxu0 0.0
        %3147 = vmatprep.subr.mxu0 0.0
        %3148 = vmatpush1.msra.mxu0 0.0
        %3149 = vmatprep.subr.mxu0 0.0
        %3150 = vmatpush1.msra.mxu0 0.0
        %3151 = vmatprep.subr.mxu0 0.0
        %3152 = vmatpush1.msra.mxu0 0.0
        %3153 = vmatprep.subr.mxu0 0.0
        %3154 = vmatpush1.msra.mxu0 0.0
        %3155 = vmatprep.subr.mxu0 0.0
        %3156 = vmatpush1.msra.mxu0 0.0
        %3157 = vmatprep.subr.mxu0 0.0
        %3158 = vmatpush1.msra.mxu0 0.0
        %3159 = vmatprep.subr.mxu0 0.0
        %3160 = vmatpush1.msra.mxu0 0.0
        %3161 = vmatprep.subr.mxu0 0.0
        %3162 = vmatpush1.msra.mxu0 0.0
        %3163 = vmatprep.subr.mxu0 0.0
        %3164 = vmatpush1.msra.mxu0 0.0
        %3165 = vmatprep.subr.mxu0 0.0
        %3166 = vmatpush1.msra.mxu0 0.0
        %3167 = vmatprep.subr.mxu0 0.0
        %3168 = vmatpush1.msra.mxu0 0.0
        %3169 = vmatprep.subr.mxu0 0.0
        %3170 = vmatpush1.msra.mxu0 0.0
        %3171 = vmatprep.subr.mxu0 0.0
        %3172 = vmatpush1.msra.mxu0 0.0
        %3173 = vmatprep.subr.mxu0 0.0
        %3174 = vmatpush1.msra.mxu0 0.0
        %3175 = vmatprep.subr.mxu0 0.0
        %3176 = vmatpush1.msra.mxu0 0.0
        %3177 = vmatprep.subr.mxu0 0.0
        %3178 = vmatpush1.msra.mxu0 0.0
        %3179 = vmatprep.subr.mxu0 0.0
        %3180 = vmatpush1.msra.mxu0 0.0
        %3181 = vmatprep.subr.mxu0 0.0
        %3182 = vmatpush1.msra.mxu0 0.0
        %3183 = vmatprep.mubr.f32.mxu0 0.0
        %3184 = vmatmul.mubr.f32.gmra.mrb[0].mxu0 %v3111
        %v3185 = vpop.f32.mrb[0].mxu0
        %v3186 = vadd.f32 %v3097, %v3185
        %v3187 = vpop.f32.mrb[0].mxu0
        %3188 = vmatprep.mubr.f32.mxu0 0.0
        %3189 = vmatmul.mubr.f32.gmra.mrb[0].mxu0 %v3114
        %v3190 = vpop.f32.mrb[0].mxu0
        %v3191 = vadd.f32 %v3102, %v3190
        %v3192 = vpop.f32.mrb[0].mxu0
        %3193 = vmatprep.mubr.f32.mxu0 0.0
        %3194 = vmatmul.mubr.f32.gmra.mrb[0].mxu0 %v3117
        %v3195 = vpop.f32.mrb[0].mxu0
        %v3196 = vadd.f32 %v3107, %v3195
        %v3197 = vpop.f32.mrb[0].mxu0
        %3198 = vdwg.mxu0
        %3199 = vrot.lane.b32.xlu0 %v2534, 112
        %v3200 = vpop.permute.xlu0 %3199
        %3201 = vrot.lane.b32.xlu0 %v2539, 112
        %v3202 = vpop.permute.xlu0 %3201
        %3203 = vrot.lane.b32.xlu0 %v2544, 112
        %v3204 = vpop.permute.xlu0 %3203
        %3205 = vrot.lane.b32.xlu0 %v2534, 80
        %v3206 = vpop.permute.xlu0 %3205
        %3207 = vrot.lane.b32.xlu0 %v2539, 80
        %v3208 = vpop.permute.xlu0 %3207
        %3209 = vrot.lane.b32.xlu0 %v2544, 80
        %v3210 = vpop.permute.xlu0 %3209
        %v3211 = vsel %vm791, %v3200, 0
        %v3213 = vsel %vm791, %v3202, 0
        %v3215 = vsel %vm791, %v3204, 0
        %v3217 = vsel %vm791, %v3206, 0
        %v3219 = vsel %vm791, %v3208, 0
        %v3221 = vsel %vm791, %v3210, 0
        %3223 = vmatprep.subr.mxu0 0.0
        %3224 = vmatpush1.xpose.msra.mxu0 %v3217
        %3225 = vmatprep.subr.mxu0 0.0
        %3226 = vmatpush1.xpose.msra.mxu0 %v3219
        %3227 = vmatprep.subr.mxu0 0.0
        %3228 = vmatpush1.xpose.msra.mxu0 %v3221
        %3229 = vmatprep.subr.mxu0 0.0
        %3230 = vmatpush1.xpose.msra.mxu0 0.0
        %3231 = vmatprep.subr.mxu0 0.0
        %3232 = vmatpush1.xpose.msra.mxu0 0.0
        %3233 = vmatprep.subr.mxu0 0.0
        %3234 = vmatpush1.xpose.msra.mxu0 0.0
        %3235 = vmatprep.subr.mxu0 0.0
        %3236 = vmatpush1.xpose.msra.mxu0 0.0
        %3237 = vmatprep.subr.mxu0 0.0
        %3238 = vmatpush1.xpose.msra.mxu0 0.0
        %3239 = vmatprep.subr.mxu0 0.0
        %3240 = vmatpush1.xpose.msra.mxu0 0.0
        %3241 = vmatprep.subr.mxu0 0.0
        %3242 = vmatpush1.xpose.msra.mxu0 0.0
        %3243 = vmatprep.subr.mxu0 0.0
        %3244 = vmatpush1.xpose.msra.mxu0 0.0
        %3245 = vmatprep.subr.mxu0 0.0
        %3246 = vmatpush1.xpose.msra.mxu0 0.0
        %3247 = vmatprep.subr.mxu0 0.0
        %3248 = vmatpush1.xpose.msra.mxu0 0.0
        %3249 = vmatprep.subr.mxu0 0.0
        %3250 = vmatpush1.xpose.msra.mxu0 0.0
        %3251 = vmatprep.subr.mxu0 0.0
        %3252 = vmatpush1.xpose.msra.mxu0 0.0
        %3253 = vmatprep.subr.mxu0 0.0
        %3254 = vmatpush1.xpose.msra.mxu0 0.0
        %3255 = vmatprep.subr.mxu0 0.0
        %3256 = vmatpush1.xpose.msra.mxu0 0.0
        %3257 = vmatprep.subr.mxu0 0.0
        %3258 = vmatpush1.xpose.msra.mxu0 0.0
        %3259 = vmatprep.subr.mxu0 0.0
        %3260 = vmatpush1.xpose.msra.mxu0 0.0
        %3261 = vmatprep.subr.mxu0 0.0
        %3262 = vmatpush1.xpose.msra.mxu0 0.0
        %3263 = vmatprep.subr.mxu0 0.0
        %3264 = vmatpush1.xpose.msra.mxu0 0.0
        %3265 = vmatprep.subr.mxu0 0.0
        %3266 = vmatpush1.xpose.msra.mxu0 0.0
        %3267 = vmatprep.subr.mxu0 0.0
        %3268 = vmatpush1.xpose.msra.mxu0 0.0
        %3269 = vmatprep.subr.mxu0 0.0
        %3270 = vmatpush1.xpose.msra.mxu0 0.0
        %3271 = vmatprep.subr.mxu0 0.0
        %3272 = vmatpush1.xpose.msra.mxu0 0.0
        %3273 = vmatprep.subr.mxu0 0.0
        %3274 = vmatpush1.xpose.msra.mxu0 0.0
        %3275 = vmatprep.subr.mxu0 0.0
        %3276 = vmatpush1.xpose.msra.mxu0 0.0
        %3277 = vmatprep.subr.mxu0 0.0
        %3278 = vmatpush1.xpose.msra.mxu0 0.0
        %3279 = vmatprep.subr.mxu0 0.0
        %3280 = vmatpush1.xpose.msra.mxu0 0.0
        %3281 = vmatprep.subr.mxu0 0.0
        %3282 = vmatpush1.xpose.msra.mxu0 0.0
        %3283 = vmatprep.subr.mxu0 0.0
        %3284 = vmatpush1.xpose.msra.mxu0 0.0
        %3285 = vmatprep.subr.mxu0 0.0
        %3286 = vmatpush1.xpose.msra.mxu0 0.0
        %3287 = vmatprep.mubr.f32.mxu0 0.0
        %3288 = vmatmul.mubr.f32.gmra.mrb[0].mxu0 %v3211
        %v3289 = vpop.f32.mrb[0].mxu0
        %v3290 = vadd.f32 0.0, %v3289
        %v3291 = vpop.f32.mrb[0].mxu0
        %3292 = vmatprep.mubr.f32.mxu0 0.0
        %3293 = vmatmul.mubr.f32.gmra.mrb[0].mxu0 %v3213
        %v3294 = vpop.f32.mrb[0].mxu0
        %v3295 = vadd.f32 0.0, %v3294
        %v3296 = vpop.f32.mrb[0].mxu0
        %3297 = vmatprep.mubr.f32.mxu0 0.0
        %3298 = vmatmul.mubr.f32.gmra.mrb[0].mxu0 %v3215
        %v3299 = vpop.f32.mrb[0].mxu0
        %v3300 = vadd.f32 0.0, %v3299
        %v3301 = vpop.f32.mrb[0].mxu0
        %3302 = vdwg.mxu0
        %v3303 = vsel %vm884, %v3290, -inf
        %3304 = vmax.xlane.f32.xlu0 %v3303
        %v3305 = vpop.xlane.xlu0 %3304
        %v3306 = vsel %vm884, %v3295, -inf
        %3307 = vmax.xlane.f32.xlu0 %v3306
        %v3308 = vpop.xlane.xlu0 %3307
        %v3309 = vsel %vm891, %v3300, -inf
        %3310 = vmax.xlane.f32.xlu0 %v3309
        %v3311 = vpop.xlane.xlu0 %3310
        %v3312 = vsub.f32 %v3290, %v3305
        %v3313 = vsub.f32 %v3295, %v3308
        %v3314 = vsub.f32 %v3300, %v3311
        %v3315 = vmul.f32 %v3312, 1.442695
        %v3316 = vpow.pop %v3315
        %v3317 = vmul.f32 %v3313, 1.442695
        %v3318 = vpow.pop %v3317
        %v3319 = vmul.f32 %v3314, 1.442695
        %v3320 = vpow.pop %v3319
        %v3321 = vsel %vm884, %v3316, 0.0
        %3322 = vadd.xlane.f32.xlu0 %v3321
        %v3323 = vpop.xlane.xlu0 %3322
        %v3324 = vsel %vm884, %v3318, 0.0
        %3325 = vadd.xlane.f32.xlu0 %v3324
        %v3326 = vpop.xlane.xlu0 %3325
        %v3327 = vsel %vm891, %v3320, 0.0
        %3328 = vadd.xlane.f32.xlu0 %v3327
        %v3329 = vpop.xlane.xlu0 %3328
        %v3330 = vrcp.pop %v3323
        %v3331 = vrcp.pop %v3326
        %v3332 = vrcp.pop %v3329
        %v3333 = vmul.f32 %v3316, %v3330
        %v3334 = vmul.f32 %v3318, %v3331
        %v3335 = vmul.f32 %v3320, %v3332
        %3336 = vrot.lane.b32.xlu0 %v2534, 48
        %v3337 = vpop.permute.xlu0 %3336
        %3338 = vrot.lane.b32.xlu0 %v2539, 48
        %v3339 = vpop.permute.xlu0 %3338
        %3340 = vrot.lane.b32.xlu0 %v2544, 48
        %v3341 = vpop.permute.xlu0 %3340
        %v3345 = vsel %vm884, %v3333, 0
        %v3348 = vsel %vm884, %v3334, 0
        %v3351 = vsel %vm884, %v3335, 0
        %v3353 = vsel %vm936, %v3341, 0
        %3355 = vmatprep.subr.mxu0 0.0
        %3356 = vmatpush1.msra.mxu0 %v3337
        %3357 = vmatprep.subr.mxu0 0.0
        %3358 = vmatpush1.msra.mxu0 %v3339
        %3359 = vmatprep.subr.mxu0 0.0
        %3360 = vmatpush1.msra.mxu0 %v3353
        %3361 = vmatprep.subr.mxu0 0.0
        %3362 = vmatpush1.msra.mxu0 0.0
        %3363 = vmatprep.subr.mxu0 0.0
        %3364 = vmatpush1.msra.mxu0 0.0
        %3365 = vmatprep.subr.mxu0 0.0
        %3366 = vmatpush1.msra.mxu0 0.0
        %3367 = vmatprep.subr.mxu0 0.0
        %3368 = vmatpush1.msra.mxu0 0.0
        %3369 = vmatprep.subr.mxu0 0.0
        %3370 = vmatpush1.msra.mxu0 0.0
        %3371 = vmatprep.subr.mxu0 0.0
        %3372 = vmatpush1.msra.mxu0 0.0
        %3373 = vmatprep.subr.mxu0 0.0
        %3374 = vmatpush1.msra.mxu0 0.0
        %3375 = vmatprep.subr.mxu0 0.0
        %3376 = vmatpush1.msra.mxu0 0.0
        %3377 = vmatprep.subr.mxu0 0.0
        %3378 = vmatpush1.msra.mxu0 0.0
        %3379 = vmatprep.subr.mxu0 0.0
        %3380 = vmatpush1.msra.mxu0 0.0
        %3381 = vmatprep.subr.mxu0 0.0
        %3382 = vmatpush1.msra.mxu0 0.0
        %3383 = vmatprep.subr.mxu0 0.0
        %3384 = vmatpush1.msra.mxu0 0.0
        %3385 = vmatprep.subr.mxu0 0.0
        %3386 = vmatpush1.msra.mxu0 0.0
        %3387 = vmatprep.subr.mxu0 0.0
        %3388 = vmatpush1.msra.mxu0 0.0
        %3389 = vmatprep.subr.mxu0 0.0
        %3390 = vmatpush1.msra.mxu0 0.0
        %3391 = vmatprep.subr.mxu0 0.0
        %3392 = vmatpush1.msra.mxu0 0.0
        %3393 = vmatprep.subr.mxu0 0.0
        %3394 = vmatpush1.msra.mxu0 0.0
        %3395 = vmatprep.subr.mxu0 0.0
        %3396 = vmatpush1.msra.mxu0 0.0
        %3397 = vmatprep.subr.mxu0 0.0
        %3398 = vmatpush1.msra.mxu0 0.0
        %3399 = vmatprep.subr.mxu0 0.0
        %3400 = vmatpush1.msra.mxu0 0.0
        %3401 = vmatprep.subr.mxu0 0.0
        %3402 = vmatpush1.msra.mxu0 0.0
        %3403 = vmatprep.subr.mxu0 0.0
        %3404 = vmatpush1.msra.mxu0 0.0
        %3405 = vmatprep.subr.mxu0 0.0
        %3406 = vmatpush1.msra.mxu0 0.0
        %3407 = vmatprep.subr.mxu0 0.0
        %3408 = vmatpush1.msra.mxu0 0.0
        %3409 = vmatprep.subr.mxu0 0.0
        %3410 = vmatpush1.msra.mxu0 0.0
        %3411 = vmatprep.subr.mxu0 0.0
        %3412 = vmatpush1.msra.mxu0 0.0
        %3413 = vmatprep.subr.mxu0 0.0
        %3414 = vmatpush1.msra.mxu0 0.0
        %3415 = vmatprep.subr.mxu0 0.0
        %3416 = vmatpush1.msra.mxu0 0.0
        %3417 = vmatprep.subr.mxu0 0.0
        %3418 = vmatpush1.msra.mxu0 0.0
        %3419 = vmatprep.mubr.f32.mxu0 0.0
        %3420 = vmatmul.mubr.f32.gmra.mrb[0].mxu0 %v3345
        %v3421 = vpop.f32.mrb[0].mxu0
        %v3422 = vadd.f32 0.0, %v3421
        %v3423 = vpop.f32.mrb[0].mxu0
        %3424 = vmatprep.mubr.f32.mxu0 0.0
        %3425 = vmatmul.mubr.f32.gmra.mrb[0].mxu0 %v3348
        %v3426 = vpop.f32.mrb[0].mxu0
        %v3427 = vadd.f32 0.0, %v3426
        %v3428 = vpop.f32.mrb[0].mxu0
        %3429 = vmatprep.mubr.f32.mxu0 0.0
        %3430 = vmatmul.mubr.f32.gmra.mrb[0].mxu0 %v3351
        %v3431 = vpop.f32.mrb[0].mxu0
        %v3432 = vadd.f32 0.0, %v3431
        %v3433 = vpop.f32.mrb[0].mxu0
        %3434 = vdwg.mxu0
        %v3436 = vsel %vm791, %v3422, 0
        %v3439 = vsel %vm791, %v3427, 0
        %v3442 = vsel %vm791, %v3432, 0
        %3444 = vmatprep.subr.mxu0 0.0
        %3445 = vmatpush1.msra.mxu0 %v2550
        %3446 = vmatprep.subr.mxu0 0.0
        %3447 = vmatpush1.msra.mxu0 0.0
        %3448 = vmatprep.subr.mxu0 0.0
        %3449 = vmatpush1.msra.mxu0 0.0
        %3450 = vmatprep.subr.mxu0 0.0
        %3451 = vmatpush1.msra.mxu0 0.0
        %3452 = vmatprep.subr.mxu0 0.0
        %3453 = vmatpush1.msra.mxu0 0.0
        %3454 = vmatprep.subr.mxu0 0.0
        %3455 = vmatpush1.msra.mxu0 0.0
        %3456 = vmatprep.subr.mxu0 0.0
        %3457 = vmatpush1.msra.mxu0 0.0
        %3458 = vmatprep.subr.mxu0 0.0
        %3459 = vmatpush1.msra.mxu0 0.0
        %3460 = vmatprep.subr.mxu0 0.0
        %3461 = vmatpush1.msra.mxu0 0.0
        %3462 = vmatprep.subr.mxu0 0.0
        %3463 = vmatpush1.msra.mxu0 0.0
        %3464 = vmatprep.subr.mxu0 0.0
        %3465 = vmatpush1.msra.mxu0 0.0
        %3466 = vmatprep.subr.mxu0 0.0
        %3467 = vmatpush1.msra.mxu0 0.0
        %3468 = vmatprep.subr.mxu0 0.0
        %3469 = vmatpush1.msra.mxu0 0.0
        %3470 = vmatprep.subr.mxu0 0.0
        %3471 = vmatpush1.msra.mxu0 0.0
        %3472 = vmatprep.subr.mxu0 0.0
        %3473 = vmatpush1.msra.mxu0 0.0
        %3474 = vmatprep.subr.mxu0 0.0
        %3475 = vmatpush1.msra.mxu0 0.0
        %3476 = vmatprep.subr.mxu0 0.0
        %3477 = vmatpush1.msra.mxu0 0.0
        %3478 = vmatprep.subr.mxu0 0.0
        %3479 = vmatpush1.msra.mxu0 0.0
        %3480 = vmatprep.subr.mxu0 0.0
        %3481 = vmatpush1.msra.mxu0 0.0
        %3482 = vmatprep.subr.mxu0 0.0
        %3483 = vmatpush1.msra.mxu0 0.0
        %3484 = vmatprep.subr.mxu0 0.0
        %3485 = vmatpush1.msra.mxu0 0.0
        %3486 = vmatprep.subr.mxu0 0.0
        %3487 = vmatpush1.msra.mxu0 0.0
        %3488 = vmatprep.subr.mxu0 0.0
        %3489 = vmatpush1.msra.mxu0 0.0
        %3490 = vmatprep.subr.mxu0 0.0
        %3491 = vmatpush1.msra.mxu0 0.0
        %3492 = vmatprep.subr.mxu0 0.0
        %3493 = vmatpush1.msra.mxu0 0.0
        %3494 = vmatprep.subr.mxu0 0.0
        %3495 = vmatpush1.msra.mxu0 0.0
        %3496 = vmatprep.subr.mxu0 0.0
        %3497 = vmatpush1.msra.mxu0 0.0
        %3498 = vmatprep.subr.mxu0 0.0
        %3499 = vmatpush1.msra.mxu0 0.0
        %3500 = vmatprep.subr.mxu0 0.0
        %3501 = vmatpush1.msra.mxu0 0.0
        %3502 = vmatprep.subr.mxu0 0.0
        %3503 = vmatpush1.msra.mxu0 0.0
        %3504 = vmatprep.subr.mxu0 0.0
        %3505 = vmatpush1.msra.mxu0 0.0
        %3506 = vmatprep.subr.mxu0 0.0
        %3507 = vmatpush1.msra.mxu0 0.0
        %3508 = vmatprep.mubr.f32.mxu0 0.0
        %3509 = vmatmul.mubr.f32.gmra.mrb[0].mxu0 %v3436
        %v3510 = vpop.f32.mrb[0].mxu0
        %v3511 = vadd.f32 0.0, %v3510
        %v3512 = vpop.f32.mrb[0].mxu0
        %3513 = vmatprep.mubr.f32.mxu0 0.0
        %3514 = vmatmul.mubr.f32.gmra.mrb[0].mxu0 %v3439
        %v3515 = vpop.f32.mrb[0].mxu0
        %v3516 = vadd.f32 0.0, %v3515
        %v3517 = vpop.f32.mrb[0].mxu0
        %3518 = vmatprep.mubr.f32.mxu0 0.0
        %3519 = vmatmul.mubr.f32.gmra.mrb[0].mxu0 %v3442
        %v3520 = vpop.f32.mrb[0].mxu0
        %v3521 = vadd.f32 0.0, %v3520
        %v3522 = vpop.f32.mrb[0].mxu0
        %3523 = vdwg.mxu0
        %v3524 = vadd.f32 %v3186, %v3511
        %v3525 = vadd.f32 %v3191, %v3516
        %v3526 = vadd.f32 %v3196, %v3521
        %3527 = vrot.lane.b32.xlu0 %v2534, 104
        %v3528 = vpop.permute.xlu0 %3527
        %3529 = vrot.lane.b32.xlu0 %v2539, 104
        %v3530 = vpop.permute.xlu0 %3529
        %3531 = vrot.lane.b32.xlu0 %v2544, 104
        %v3532 = vpop.permute.xlu0 %3531
        %3533 = vrot.lane.b32.xlu0 %v2534, 72
        %v3534 = vpop.permute.xlu0 %3533
        %3535 = vrot.lane.b32.xlu0 %v2539, 72
        %v3536 = vpop.permute.xlu0 %3535
        %3537 = vrot.lane.b32.xlu0 %v2544, 72
        %v3538 = vpop.permute.xlu0 %3537
        %v3539 = vsel %vm791, %v3528, 0
        %v3541 = vsel %vm791, %v3530, 0
        %v3543 = vsel %vm791, %v3532, 0
        %v3545 = vsel %vm791, %v3534, 0
        %v3547 = vsel %vm791, %v3536, 0
        %v3549 = vsel %vm791, %v3538, 0
        %3551 = vmatprep.subr.mxu0 0.0
        %3552 = vmatpush1.xpose.msra.mxu0 %v3545
        %3553 = vmatprep.subr.mxu0 0.0
        %3554 = vmatpush1.xpose.msra.mxu0 %v3547
        %3555 = vmatprep.subr.mxu0 0.0
        %3556 = vmatpush1.xpose.msra.mxu0 %v3549
        %3557 = vmatprep.subr.mxu0 0.0
        %3558 = vmatpush1.xpose.msra.mxu0 0.0
        %3559 = vmatprep.subr.mxu0 0.0
        %3560 = vmatpush1.xpose.msra.mxu0 0.0
        %3561 = vmatprep.subr.mxu0 0.0
        %3562 = vmatpush1.xpose.msra.mxu0 0.0
        %3563 = vmatprep.subr.mxu0 0.0
        %3564 = vmatpush1.xpose.msra.mxu0 0.0
        %3565 = vmatprep.subr.mxu0 0.0
        %3566 = vmatpush1.xpose.msra.mxu0 0.0
        %3567 = vmatprep.subr.mxu0 0.0
        %3568 = vmatpush1.xpose.msra.mxu0 0.0
        %3569 = vmatprep.subr.mxu0 0.0
        %3570 = vmatpush1.xpose.msra.mxu0 0.0
        %3571 = vmatprep.subr.mxu0 0.0
        %3572 = vmatpush1.xpose.msra.mxu0 0.0
        %3573 = vmatprep.subr.mxu0 0.0
        %3574 = vmatpush1.xpose.msra.mxu0 0.0
        %3575 = vmatprep.subr.mxu0 0.0
        %3576 = vmatpush1.xpose.msra.mxu0 0.0
        %3577 = vmatprep.subr.mxu0 0.0
        %3578 = vmatpush1.xpose.msra.mxu0 0.0
        %3579 = vmatprep.subr.mxu0 0.0
        %3580 = vmatpush1.xpose.msra.mxu0 0.0
        %3581 = vmatprep.subr.mxu0 0.0
        %3582 = vmatpush1.xpose.msra.mxu0 0.0
        %3583 = vmatprep.subr.mxu0 0.0
        %3584 = vmatpush1.xpose.msra.mxu0 0.0
        %3585 = vmatprep.subr.mxu0 0.0
        %3586 = vmatpush1.xpose.msra.mxu0 0.0
        %3587 = vmatprep.subr.mxu0 0.0
        %3588 = vmatpush1.xpose.msra.mxu0 0.0
        %3589 = vmatprep.subr.mxu0 0.0
        %3590 = vmatpush1.xpose.msra.mxu0 0.0
        %3591 = vmatprep.subr.mxu0 0.0
        %3592 = vmatpush1.xpose.msra.mxu0 0.0
        %3593 = vmatprep.subr.mxu0 0.0
        %3594 = vmatpush1.xpose.msra.mxu0 0.0
        %3595 = vmatprep.subr.mxu0 0.0
        %3596 = vmatpush1.xpose.msra.mxu0 0.0
        %3597 = vmatprep.subr.mxu0 0.0
        %3598 = vmatpush1.xpose.msra.mxu0 0.0
        %3599 = vmatprep.subr.mxu0 0.0
        %3600 = vmatpush1.xpose.msra.mxu0 0.0
        %3601 = vmatprep.subr.mxu0 0.0
        %3602 = vmatpush1.xpose.msra.mxu0 0.0
        %3603 = vmatprep.subr.mxu0 0.0
        %3604 = vmatpush1.xpose.msra.mxu0 0.0
        %3605 = vmatprep.subr.mxu0 0.0
        %3606 = vmatpush1.xpose.msra.mxu0 0.0
        %3607 = vmatprep.subr.mxu0 0.0
        %3608 = vmatpush1.xpose.msra.mxu0 0.0
        %3609 = vmatprep.subr.mxu0 0.0
        %3610 = vmatpush1.xpose.msra.mxu0 0.0
        %3611 = vmatprep.subr.mxu0 0.0
        %3612 = vmatpush1.xpose.msra.mxu0 0.0
        %3613 = vmatprep.subr.mxu0 0.0
        %3614 = vmatpush1.xpose.msra.mxu0 0.0
        %3615 = vmatprep.mubr.f32.mxu0 0.0
        %3616 = vmatmul.mubr.f32.gmra.mrb[0].mxu0 %v3539
        %v3617 = vpop.f32.mrb[0].mxu0
        %v3618 = vadd.f32 0.0, %v3617
        %v3619 = vpop.f32.mrb[0].mxu0
        %3620 = vmatprep.mubr.f32.mxu0 0.0
        %3621 = vmatmul.mubr.f32.gmra.mrb[0].mxu0 %v3541
        %v3622 = vpop.f32.mrb[0].mxu0
        %v3623 = vadd.f32 0.0, %v3622
        %v3624 = vpop.f32.mrb[0].mxu0
        %3625 = vmatprep.mubr.f32.mxu0 0.0
        %3626 = vmatmul.mubr.f32.gmra.mrb[0].mxu0 %v3543
        %v3627 = vpop.f32.mrb[0].mxu0
        %v3628 = vadd.f32 0.0, %v3627
        %v3629 = vpop.f32.mrb[0].mxu0
        %3630 = vdwg.mxu0
        %v3631 = vsel %vm884, %v3618, -inf
        %3632 = vmax.xlane.f32.xlu0 %v3631
        %v3633 = vpop.xlane.xlu0 %3632
        %v3634 = vsel %vm884, %v3623, -inf
        %3635 = vmax.xlane.f32.xlu0 %v3634
        %v3636 = vpop.xlane.xlu0 %3635
        %v3637 = vsel %vm891, %v3628, -inf
        %3638 = vmax.xlane.f32.xlu0 %v3637
        %v3639 = vpop.xlane.xlu0 %3638
        %v3640 = vsub.f32 %v3618, %v3633
        %v3641 = vsub.f32 %v3623, %v3636
        %v3642 = vsub.f32 %v3628, %v3639
        %v3643 = vmul.f32 %v3640, 1.442695
        %v3644 = vpow.pop %v3643
        %v3645 = vmul.f32 %v3641, 1.442695
        %v3646 = vpow.pop %v3645
        %v3647 = vmul.f32 %v3642, 1.442695
        %v3648 = vpow.pop %v3647
        %v3649 = vsel %vm884, %v3644, 0.0
        %3650 = vadd.xlane.f32.xlu0 %v3649
        %v3651 = vpop.xlane.xlu0 %3650
        %v3652 = vsel %vm884, %v3646, 0.0
        %3653 = vadd.xlane.f32.xlu0 %v3652
        %v3654 = vpop.xlane.xlu0 %3653
        %v3655 = vsel %vm891, %v3648, 0.0
        %3656 = vadd.xlane.f32.xlu0 %v3655
        %v3657 = vpop.xlane.xlu0 %3656
        %v3658 = vrcp.pop %v3651
        %v3659 = vrcp.pop %v3654
        %v3660 = vrcp.pop %v3657
        %v3661 = vmul.f32 %v3644, %v3658
        %v3662 = vmul.f32 %v3646, %v3659
        %v3663 = vmul.f32 %v3648, %v3660
        %3664 = vrot.lane.b32.xlu0 %v2534, 40
        %v3665 = vpop.permute.xlu0 %3664
        %3666 = vrot.lane.b32.xlu0 %v2539, 40
        %v3667 = vpop.permute.xlu0 %3666
        %3668 = vrot.lane.b32.xlu0 %v2544, 40
        %v3669 = vpop.permute.xlu0 %3668
        %v3673 = vsel %vm884, %v3661, 0
        %v3676 = vsel %vm884, %v3662, 0
        %v3679 = vsel %vm884, %v3663, 0
        %v3681 = vsel %vm936, %v3669, 0
        %3683 = vmatprep.subr.mxu0 0.0
        %3684 = vmatpush1.msra.mxu0 %v3665
        %3685 = vmatprep.subr.mxu0 0.0
        %3686 = vmatpush1.msra.mxu0 %v3667
        %3687 = vmatprep.subr.mxu0 0.0
        %3688 = vmatpush1.msra.mxu0 %v3681
        %3689 = vmatprep.subr.mxu0 0.0
        %3690 = vmatpush1.msra.mxu0 0.0
        %3691 = vmatprep.subr.mxu0 0.0
        %3692 = vmatpush1.msra.mxu0 0.0
        %3693 = vmatprep.subr.mxu0 0.0
        %3694 = vmatpush1.msra.mxu0 0.0
        %3695 = vmatprep.subr.mxu0 0.0
        %3696 = vmatpush1.msra.mxu0 0.0
        %3697 = vmatprep.subr.mxu0 0.0
        %3698 = vmatpush1.msra.mxu0 0.0
        %3699 = vmatprep.subr.mxu0 0.0
        %3700 = vmatpush1.msra.mxu0 0.0
        %3701 = vmatprep.subr.mxu0 0.0
        %3702 = vmatpush1.msra.mxu0 0.0
        %3703 = vmatprep.subr.mxu0 0.0
        %3704 = vmatpush1.msra.mxu0 0.0
        %3705 = vmatprep.subr.mxu0 0.0
        %3706 = vmatpush1.msra.mxu0 0.0
        %3707 = vmatprep.subr.mxu0 0.0
        %3708 = vmatpush1.msra.mxu0 0.0
        %3709 = vmatprep.subr.mxu0 0.0
        %3710 = vmatpush1.msra.mxu0 0.0
        %3711 = vmatprep.subr.mxu0 0.0
        %3712 = vmatpush1.msra.mxu0 0.0
        %3713 = vmatprep.subr.mxu0 0.0
        %3714 = vmatpush1.msra.mxu0 0.0
        %3715 = vmatprep.subr.mxu0 0.0
        %3716 = vmatpush1.msra.mxu0 0.0
        %3717 = vmatprep.subr.mxu0 0.0
        %3718 = vmatpush1.msra.mxu0 0.0
        %3719 = vmatprep.subr.mxu0 0.0
        %3720 = vmatpush1.msra.mxu0 0.0
        %3721 = vmatprep.subr.mxu0 0.0
        %3722 = vmatpush1.msra.mxu0 0.0
        %3723 = vmatprep.subr.mxu0 0.0
        %3724 = vmatpush1.msra.mxu0 0.0
        %3725 = vmatprep.subr.mxu0 0.0
        %3726 = vmatpush1.msra.mxu0 0.0
        %3727 = vmatprep.subr.mxu0 0.0
        %3728 = vmatpush1.msra.mxu0 0.0
        %3729 = vmatprep.subr.mxu0 0.0
        %3730 = vmatpush1.msra.mxu0 0.0
        %3731 = vmatprep.subr.mxu0 0.0
        %3732 = vmatpush1.msra.mxu0 0.0
        %3733 = vmatprep.subr.mxu0 0.0
        %3734 = vmatpush1.msra.mxu0 0.0
        %3735 = vmatprep.subr.mxu0 0.0
        %3736 = vmatpush1.msra.mxu0 0.0
        %3737 = vmatprep.subr.mxu0 0.0
        %3738 = vmatpush1.msra.mxu0 0.0
        %3739 = vmatprep.subr.mxu0 0.0
        %3740 = vmatpush1.msra.mxu0 0.0
        %3741 = vmatprep.subr.mxu0 0.0
        %3742 = vmatpush1.msra.mxu0 0.0
        %3743 = vmatprep.subr.mxu0 0.0
        %3744 = vmatpush1.msra.mxu0 0.0
        %3745 = vmatprep.subr.mxu0 0.0
        %3746 = vmatpush1.msra.mxu0 0.0
        %3747 = vmatprep.mubr.f32.mxu0 0.0
        %3748 = vmatmul.mubr.f32.gmra.mrb[0].mxu0 %v3673
        %v3749 = vpop.f32.mrb[0].mxu0
        %v3750 = vadd.f32 0.0, %v3749
        %v3751 = vpop.f32.mrb[0].mxu0
        %3752 = vmatprep.mubr.f32.mxu0 0.0
        %3753 = vmatmul.mubr.f32.gmra.mrb[0].mxu0 %v3676
        %v3754 = vpop.f32.mrb[0].mxu0
        %v3755 = vadd.f32 0.0, %v3754
        %v3756 = vpop.f32.mrb[0].mxu0
        %3757 = vmatprep.mubr.f32.mxu0 0.0
        %3758 = vmatmul.mubr.f32.gmra.mrb[0].mxu0 %v3679
        %v3759 = vpop.f32.mrb[0].mxu0
        %v3760 = vadd.f32 0.0, %v3759
        %v3761 = vpop.f32.mrb[0].mxu0
        %3762 = vdwg.mxu0
        %v3764 = vsel %vm791, %v3750, 0
        %v3767 = vsel %vm791, %v3755, 0
        %v3770 = vsel %vm791, %v3760, 0
        %3772 = vmatprep.subr.mxu0 0.0
        %3773 = vmatpush1.msra.mxu0 %v2551
        %3774 = vmatprep.subr.mxu0 0.0
        %3775 = vmatpush1.msra.mxu0 0.0
        %3776 = vmatprep.subr.mxu0 0.0
        %3777 = vmatpush1.msra.mxu0 0.0
        %3778 = vmatprep.subr.mxu0 0.0
        %3779 = vmatpush1.msra.mxu0 0.0
        %3780 = vmatprep.subr.mxu0 0.0
        %3781 = vmatpush1.msra.mxu0 0.0
        %3782 = vmatprep.subr.mxu0 0.0
        %3783 = vmatpush1.msra.mxu0 0.0
        %3784 = vmatprep.subr.mxu0 0.0
        %3785 = vmatpush1.msra.mxu0 0.0
        %3786 = vmatprep.subr.mxu0 0.0
        %3787 = vmatpush1.msra.mxu0 0.0
        %3788 = vmatprep.subr.mxu0 0.0
        %3789 = vmatpush1.msra.mxu0 0.0
        %3790 = vmatprep.subr.mxu0 0.0
        %3791 = vmatpush1.msra.mxu0 0.0
        %3792 = vmatprep.subr.mxu0 0.0
        %3793 = vmatpush1.msra.mxu0 0.0
        %3794 = vmatprep.subr.mxu0 0.0
        %3795 = vmatpush1.msra.mxu0 0.0
        %3796 = vmatprep.subr.mxu0 0.0
        %3797 = vmatpush1.msra.mxu0 0.0
        %3798 = vmatprep.subr.mxu0 0.0
        %3799 = vmatpush1.msra.mxu0 0.0
        %3800 = vmatprep.subr.mxu0 0.0
        %3801 = vmatpush1.msra.mxu0 0.0
        %3802 = vmatprep.subr.mxu0 0.0
        %3803 = vmatpush1.msra.mxu0 0.0
        %3804 = vmatprep.subr.mxu0 0.0
        %3805 = vmatpush1.msra.mxu0 0.0
        %3806 = vmatprep.subr.mxu0 0.0
        %3807 = vmatpush1.msra.mxu0 0.0
        %3808 = vmatprep.subr.mxu0 0.0
        %3809 = vmatpush1.msra.mxu0 0.0
        %3810 = vmatprep.subr.mxu0 0.0
        %3811 = vmatpush1.msra.mxu0 0.0
        %3812 = vmatprep.subr.mxu0 0.0
        %3813 = vmatpush1.msra.mxu0 0.0
        %3814 = vmatprep.subr.mxu0 0.0
        %3815 = vmatpush1.msra.mxu0 0.0
        %3816 = vmatprep.subr.mxu0 0.0
        %3817 = vmatpush1.msra.mxu0 0.0
        %3818 = vmatprep.subr.mxu0 0.0
        %3819 = vmatpush1.msra.mxu0 0.0
        %3820 = vmatprep.subr.mxu0 0.0
        %3821 = vmatpush1.msra.mxu0 0.0
        %3822 = vmatprep.subr.mxu0 0.0
        %3823 = vmatpush1.msra.mxu0 0.0
        %3824 = vmatprep.subr.mxu0 0.0
        %3825 = vmatpush1.msra.mxu0 0.0
        %3826 = vmatprep.subr.mxu0 0.0
        %3827 = vmatpush1.msra.mxu0 0.0
        %3828 = vmatprep.subr.mxu0 0.0
        %3829 = vmatpush1.msra.mxu0 0.0
        %3830 = vmatprep.subr.mxu0 0.0
        %3831 = vmatpush1.msra.mxu0 0.0
        %3832 = vmatprep.subr.mxu0 0.0
        %3833 = vmatpush1.msra.mxu0 0.0
        %3834 = vmatprep.subr.mxu0 0.0
        %3835 = vmatpush1.msra.mxu0 0.0
        %3836 = vmatprep.mubr.f32.mxu0 0.0
        %3837 = vmatmul.mubr.f32.gmra.mrb[0].mxu0 %v3764
        %v3838 = vpop.f32.mrb[0].mxu0
        %v3839 = vadd.f32 0.0, %v3838
        %v3840 = vpop.f32.mrb[0].mxu0
        %3841 = vmatprep.mubr.f32.mxu0 0.0
        %3842 = vmatmul.mubr.f32.gmra.mrb[0].mxu0 %v3767
        %v3843 = vpop.f32.mrb[0].mxu0
        %v3844 = vadd.f32 0.0, %v3843
        %v3845 = vpop.f32.mrb[0].mxu0
        %3846 = vmatprep.mubr.f32.mxu0 0.0
        %3847 = vmatmul.mubr.f32.gmra.mrb[0].mxu0 %v3770
        %v3848 = vpop.f32.mrb[0].mxu0
        %v3849 = vadd.f32 0.0, %v3848
        %v3850 = vpop.f32.mrb[0].mxu0
        %3851 = vdwg.mxu0
        %v3852 = vadd.f32 %v3524, %v3839
        %v3853 = vadd.f32 %v3525, %v3844
        %v3854 = vadd.f32 %v3526, %v3849
        %v3855 = vadd.f32 %v2387, %v3852
        %v3856 = vadd.f32 %v2388, %v3853
        %v3857 = vadd.f32 %v2389, %v3854
        %s3858 = scalar_lea.vmem %s7, 1
        %v3859 = vld [vmem:[%s3858] sm:$0x1]
        %v3861 = vlaneseq
        %v3862 = vshrl.u32 %v3861, 7
        %v3863 = vsub.s32 0, %v3862
        %v3864 = vrot.slane %v3859, %v3863
        %v3866 = vadd.f32 %v3855, %v3864
        %v3867 = vadd.f32 %v3856, %v3864
        %v3868 = vadd.f32 %v3857, %v3864
        %v3869 = vsel %vm622, %v3866, 0.0
        %3870 = vadd.xlane.f32.xlu0 %v3869
        %v3871 = vpop.xlane.xlu0 %3870
        %v3872 = vsel %vm622, %v3867, 0.0
        %3873 = vadd.xlane.f32.xlu0 %v3872
        %v3874 = vpop.xlane.xlu0 %3873
        %v3875 = vsel %vm629, %v3868, 0.0
        %3876 = vadd.xlane.f32.xlu0 %v3875
        %v3877 = vpop.xlane.xlu0 %3876
        %v3878 = vmul.f32 %v3871, %v633
        %v3879 = vmul.f32 %v3874, %v633
        %v3880 = vmul.f32 %v3877, %v633
        %v3881 = vsub.f32 %v3866, %v3878
        %v3882 = vsub.f32 %v3867, %v3879
        %v3883 = vsub.f32 %v3868, %v3880
        %v3884 = vmul.f32 %v3881, %v3881
        %v3885 = vmul.f32 %v3882, %v3882
        %v3886 = vmul.f32 %v3883, %v3883
        %v3887 = vsel %vm622, %v3884, 0.0
        %3888 = vadd.xlane.f32.xlu0 %v3887
        %v3889 = vpop.xlane.xlu0 %3888
        %v3890 = vsel %vm622, %v3885, 0.0
        %3891 = vadd.xlane.f32.xlu0 %v3890
        %v3892 = vpop.xlane.xlu0 %3891
        %v3893 = vsel %vm629, %v3886, 0.0
        %3894 = vadd.xlane.f32.xlu0 %v3893
        %v3895 = vpop.xlane.xlu0 %3894
        %v3896 = vmul.f32 %v3889, %v633
        %v3897 = vmul.f32 %v3892, %v633
        %v3898 = vmul.f32 %v3895, %v633
        %v3899 = vadd.f32 %v3896, 1e-06
        %v3900 = vadd.f32 %v3897, 1e-06
        %v3901 = vadd.f32 %v3898, 1e-06
        %v3902 = vrsqrt.pop %v3899
        %v3903 = vrsqrt.pop %v3900
        %v3904 = vrsqrt.pop %v3901
        %v3905 = vmul.f32 %v3881, %v3902
        %v3906 = vmul.f32 %v3882, %v3903
        %v3907 = vmul.f32 %v3883, %v3904
        %v3908 = vlaneseq
        %v3909 = vshrl.u32 %v3908, 7
        %v3910 = vsub.s32 2, %v3909
        %v3911 = vrot.slane %v2391, %v3910
        %v3912 = vmul.f32 %v3905, %v3911
        %v3913 = vmul.f32 %v3906, %v3911
        %v3914 = vmul.f32 %v3907, %v3911
        %v3915 = vlaneseq
        %v3916 = vshrl.u32 %v3915, 7
        %v3917 = vsub.s32 3, %v3916
        %v3918 = vrot.slane %v2391, %v3917
        %v3919 = vadd.f32 %v3912, %v3918
        %v3920 = vadd.f32 %v3913, %v3918
        %v3921 = vadd.f32 %v3914, %v3918
        %s3922 = scalar_lea.vmem %s8, 32
        %v3923 = vld [vmem:[%s3922] sm:$0xff]
        %v3924 = vld [vmem:[%s3922 + $0x8] sm:$0xff]
        %v3925 = vld [vmem:[%s3922 + $0x10] sm:$0xff]
        %v3926 = vld [vmem:[%s3922 + $0x18] sm:$0xff]
        %s3927 = scalar_lea.vmem %s9, 1
        %v3928 = vld [vmem:[%s3927] sm:$0x1]
        %v3930 = vlaneseq
        %v3931 = vshrl.u32 %v3930, 7
        %v3932 = vsub.s32 0, %v3931
        %v3933 = vrot.slane %v3928, %v3932
        %v3936 = vsel %vm622, %v3919, 0
        %v3939 = vsel %vm622, %v3920, 0
        %v3942 = vsel %vm622, %v3921, 0
        %3944 = vmatprep.subr.mxu0 0.0
        %3945 = vmatpush1.msra.mxu0 %v3923
        %3946 = vmatprep.subr.mxu0 0.0
        %3947 = vmatpush1.msra.mxu0 %v3924
        %3948 = vmatprep.subr.mxu0 0.0
        %3949 = vmatpush1.msra.mxu0 %v3925
        %3950 = vmatprep.subr.mxu0 0.0
        %3951 = vmatpush1.msra.mxu0 %v3926
        %3952 = vmatprep.subr.mxu0 0.0
        %3953 = vmatpush1.msra.mxu0 0.0
        %3954 = vmatprep.subr.mxu0 0.0
        %3955 = vmatpush1.msra.mxu0 0.0
        %3956 = vmatprep.subr.mxu0 0.0
        %3957 = vmatpush1.msra.mxu0 0.0
        %3958 = vmatprep.subr.mxu0 0.0
        %3959 = vmatpush1.msra.mxu0 0.0
        %3960 = vmatprep.subr.mxu0 0.0
        %3961 = vmatpush1.msra.mxu0 0.0
        %3962 = vmatprep.subr.mxu0 0.0
        %3963 = vmatpush1.msra.mxu0 0.0
        %3964 = vmatprep.subr.mxu0 0.0
        %3965 = vmatpush1.msra.mxu0 0.0
        %3966 = vmatprep.subr.mxu0 0.0
        %3967 = vmatpush1.msra.mxu0 0.0
        %3968 = vmatprep.subr.mxu0 0.0
        %3969 = vmatpush1.msra.mxu0 0.0
        %3970 = vmatprep.subr.mxu0 0.0
        %3971 = vmatpush1.msra.mxu0 0.0
        %3972 = vmatprep.subr.mxu0 0.0
        %3973 = vmatpush1.msra.mxu0 0.0
        %3974 = vmatprep.subr.mxu0 0.0
        %3975 = vmatpush1.msra.mxu0 0.0
        %3976 = vmatprep.subr.mxu0 0.0
        %3977 = vmatpush1.msra.mxu0 0.0
        %3978 = vmatprep.subr.mxu0 0.0
        %3979 = vmatpush1.msra.mxu0 0.0
        %3980 = vmatprep.subr.mxu0 0.0
        %3981 = vmatpush1.msra.mxu0 0.0
        %3982 = vmatprep.subr.mxu0 0.0
        %3983 = vmatpush1.msra.mxu0 0.0
        %3984 = vmatprep.subr.mxu0 0.0
        %3985 = vmatpush1.msra.mxu0 0.0
        %3986 = vmatprep.subr.mxu0 0.0
        %3987 = vmatpush1.msra.mxu0 0.0
        %3988 = vmatprep.subr.mxu0 0.0
        %3989 = vmatpush1.msra.mxu0 0.0
        %3990 = vmatprep.subr.mxu0 0.0
        %3991 = vmatpush1.msra.mxu0 0.0
        %3992 = vmatprep.subr.mxu0 0.0
        %3993 = vmatpush1.msra.mxu0 0.0
        %3994 = vmatprep.subr.mxu0 0.0
        %3995 = vmatpush1.msra.mxu0 0.0
        %3996 = vmatprep.subr.mxu0 0.0
        %3997 = vmatpush1.msra.mxu0 0.0
        %3998 = vmatprep.subr.mxu0 0.0
        %3999 = vmatpush1.msra.mxu0 0.0
        %4000 = vmatprep.subr.mxu0 0.0
        %4001 = vmatpush1.msra.mxu0 0.0
        %4002 = vmatprep.subr.mxu0 0.0
        %4003 = vmatpush1.msra.mxu0 0.0
        %4004 = vmatprep.subr.mxu0 0.0
        %4005 = vmatpush1.msra.mxu0 0.0
        %4006 = vmatprep.subr.mxu0 0.0
        %4007 = vmatpush1.msra.mxu0 0.0
        %4008 = vmatprep.mubr.f32.mxu0 0.0
        %4009 = vmatmul.mubr.f32.gmra.mrb[0].mxu0 %v3936
        %v4010 = vpop.f32.mrb[0].mxu0
        %v4011 = vadd.f32 %v3933, %v4010
        %v4012 = vpop.f32.mrb[0].mxu0
        %4013 = vmatprep.mubr.f32.mxu0 0.0
        %4014 = vmatmul.mubr.f32.gmra.mrb[0].mxu0 %v3939
        %v4015 = vpop.f32.mrb[0].mxu0
        %v4016 = vadd.f32 %v3933, %v4015
        %v4017 = vpop.f32.mrb[0].mxu0
        %4018 = vmatprep.mubr.f32.mxu0 0.0
        %4019 = vmatmul.mubr.f32.gmra.mrb[0].mxu0 %v3942
        %v4020 = vpop.f32.mrb[0].mxu0
        %v4021 = vadd.f32 %v3933, %v4020
        %v4022 = vpop.f32.mrb[0].mxu0
        %4023 = vdwg.mxu0
        %v4024 = vmul.f32 %v4011, 0.5
        %v4025 = vmul.f32 %v4016, 0.5
        %v4026 = vmul.f32 %v4021, 0.5
        %v4027 = vmul.f32 %v4011, 0.044715
        %v4028 = vmul.f32 %v4016, 0.044715
        %v4029 = vmul.f32 %v4021, 0.044715
        %v4030 = vmul.f32 %v4027, %v4011
        %v4031 = vmul.f32 %v4028, %v4016
        %v4032 = vmul.f32 %v4029, %v4021
        %v4033 = vmul.f32 %v4030, %v4011
        %v4034 = vmul.f32 %v4031, %v4016
        %v4035 = vmul.f32 %v4032, %v4021
        %v4036 = vadd.f32 %v4011, %v4033
        %v4037 = vadd.f32 %v4016, %v4034
        %v4038 = vadd.f32 %v4021, %v4035
        %v4039 = vmul.f32 %v4036, 0.7978846
        %v4040 = vmul.f32 %v4037, 0.7978846
        %v4041 = vmul.f32 %v4038, 0.7978846
        %v4042 = vtanh.pop %v4039
        %v4043 = vtanh.pop %v4040
        %v4044 = vtanh.pop %v4041
        %v4045 = vadd.f32 %v4042, 1.0
        %v4046 = vadd.f32 %v4043, 1.0
        %v4047 = vadd.f32 %v4044, 1.0
        %v4048 = vmul.f32 %v4024, %v4045
        %v4049 = vmul.f32 %v4025, %v4046
        %v4050 = vmul.f32 %v4026, %v4047
        %s4051 = scalar_lea.vmem %s10, 64
        %v4052 = vld [vmem:[%s4051] sm:$0xff]
        %v4053 = vld [vmem:[%s4051 + $0x8] sm:$0xff]
        %v4054 = vld [vmem:[%s4051 + $0x10] sm:$0xff]
        %v4055 = vld [vmem:[%s4051 + $0x18] sm:$0xff]
        %v4056 = vld [vmem:[%s4051 + $0x20] sm:$0xff]
        %v4057 = vld [vmem:[%s4051 + $0x28] sm:$0xff]
        %v4058 = vld [vmem:[%s4051 + $0x30] sm:$0xff]
        %v4059 = vld [vmem:[%s4051 + $0x38] sm:$0xff]
        %s4060 = scalar_lea.vmem %s11, 1
        %v4061 = vld [vmem:[%s4060] sm:$0x1]
        %v4063 = vlaneseq
        %v4064 = vshrl.u32 %v4063, 7
        %v4065 = vsub.s32 0, %v4064
        %v4066 = vrot.slane %v4061, %v4065
        %v4069 = vsel %vm2297, %v4048, 0
        %v4072 = vsel %vm2297, %v4049, 0
        %v4075 = vsel %vm2297, %v4050, 0
        %4077 = vmatprep.subr.mxu0 0.0
        %4078 = vmatpush1.msra.mxu0 %v4052
        %4079 = vmatprep.subr.mxu0 0.0
        %4080 = vmatpush1.msra.mxu0 %v4053
        %4081 = vmatprep.subr.mxu0 0.0
        %4082 = vmatpush1.msra.mxu0 %v4054
        %4083 = vmatprep.subr.mxu0 0.0
        %4084 = vmatpush1.msra.mxu0 %v4055
        %4085 = vmatprep.subr.mxu0 0.0
        %4086 = vmatpush1.msra.mxu0 %v4056
        %4087 = vmatprep.subr.mxu0 0.0
        %4088 = vmatpush1.msra.mxu0 %v4057
        %4089 = vmatprep.subr.mxu0 0.0
        %4090 = vmatpush1.msra.mxu0 %v4058
        %4091 = vmatprep.subr.mxu0 0.0
        %4092 = vmatpush1.msra.mxu0 %v4059
        %4093 = vmatprep.subr.mxu0 0.0
        %4094 = vmatpush1.msra.mxu0 0.0
        %4095 = vmatprep.subr.mxu0 0.0
        %4096 = vmatpush1.msra.mxu0 0.0
        %4097 = vmatprep.subr.mxu0 0.0
        %4098 = vmatpush1.msra.mxu0 0.0
        %4099 = vmatprep.subr.mxu0 0.0
        %4100 = vmatpush1.msra.mxu0 0.0
        %4101 = vmatprep.subr.mxu0 0.0
        %4102 = vmatpush1.msra.mxu0 0.0
        %4103 = vmatprep.subr.mxu0 0.0
        %4104 = vmatpush1.msra.mxu0 0.0
        %4105 = vmatprep.subr.mxu0 0.0
        %4106 = vmatpush1.msra.mxu0 0.0
        %4107 = vmatprep.subr.mxu0 0.0
        %4108 = vmatpush1.msra.mxu0 0.0
        %4109 = vmatprep.subr.mxu0 0.0
        %4110 = vmatpush1.msra.mxu0 0.0
        %4111 = vmatprep.subr.mxu0 0.0
        %4112 = vmatpush1.msra.mxu0 0.0
        %4113 = vmatprep.subr.mxu0 0.0
        %4114 = vmatpush1.msra.mxu0 0.0
        %4115 = vmatprep.subr.mxu0 0.0
        %4116 = vmatpush1.msra.mxu0 0.0
        %4117 = vmatprep.subr.mxu0 0.0
        %4118 = vmatpush1.msra.mxu0 0.0
        %4119 = vmatprep.subr.mxu0 0.0
        %4120 = vmatpush1.msra.mxu0 0.0
        %4121 = vmatprep.subr.mxu0 0.0
        %4122 = vmatpush1.msra.mxu0 0.0
        %4123 = vmatprep.subr.mxu0 0.0
        %4124 = vmatpush1.msra.mxu0 0.0
        %4125 = vmatprep.subr.mxu0 0.0
        %4126 = vmatpush1.msra.mxu0 0.0
        %4127 = vmatprep.subr.mxu0 0.0
        %4128 = vmatpush1.msra.mxu0 0.0
        %4129 = vmatprep.subr.mxu0 0.0
        %4130 = vmatpush1.msra.mxu0 0.0
        %4131 = vmatprep.subr.mxu0 0.0
        %4132 = vmatpush1.msra.mxu0 0.0
        %4133 = vmatprep.subr.mxu0 0.0
        %4134 = vmatpush1.msra.mxu0 0.0
        %4135 = vmatprep.subr.mxu0 0.0
        %4136 = vmatpush1.msra.mxu0 0.0
        %4137 = vmatprep.subr.mxu0 0.0
        %4138 = vmatpush1.msra.mxu0 0.0
        %4139 = vmatprep.subr.mxu0 0.0
        %4140 = vmatpush1.msra.mxu0 0.0
        %4141 = vmatprep.mubr.f32.mxu0 0.0
        %4142 = vmatmul.mubr.f32.gmra.mrb[0].mxu0 %v4069
        %v4143 = vpop.f32.mrb[0].mxu0
        %v4144 = vadd.f32 %v4066, %v4143
        %v4145 = vpop.f32.mrb[0].mxu0
        %4146 = vmatprep.mubr.f32.mxu0 0.0
        %4147 = vmatmul.mubr.f32.gmra.mrb[0].mxu0 %v4072
        %v4148 = vpop.f32.mrb[0].mxu0
        %v4149 = vpop.f32.mrb[0].mxu0
        %4150 = vmatprep.mubr.f32.mxu0 0.0
        %4151 = vmatmul.mubr.f32.gmra.mrb[0].mxu0 %v4075
        %v4152 = vpop.f32.mrb[0].mxu0
        %v4153 = vpop.f32.mrb[0].mxu0
        %4154 = vdwg.mxu0
        %v4155 = vadd.f32 %v3866, %v4144
        %v4156 = vld [vmem:[%s12] sm:$0x1]
        %v4157 = vld [vmem:[%s13] sm:$0x1]
        %v4158 = vsel %vm629, %v4155, 0.0
        %4159 = vadd.xlane.f32.xlu0 %v4158
        %v4160 = vpop.xlane.xlu0 %4159
        %v4161 = vmul.f32 %v4160, %v633
        %v4162 = vsub.f32 %v4155, %v4161
        %v4163 = vmul.f32 %v4162, %v4162
        %v4164 = vsel %vm629, %v4163, 0.0
        %4165 = vadd.xlane.f32.xlu0 %v4164
        %v4166 = vpop.xlane.xlu0 %4165
        %v4167 = vmul.f32 %v4166, %v633
        %v4168 = vadd.f32 %v4167, 1e-06
        %v4169 = vrsqrt.pop %v4168
        %v4170 = vmul.f32 %v4162, %v4169
        %v4171 = vmul.f32 %v4170, %v4156
        %v4172 = vadd.f32 %v4171, %v4157
        %v4173 = vld [vmem:[%s14] sm:$0xff]
        %v4174 = vld [vmem:[%s14 + $0x8] sm:$0xff]
        %v4175 = vld [vmem:[%s14 + $0x10] sm:$0xff]
        %v4176 = vld [vmem:[%s14 + $0x18] sm:$0xff]
        %v4177 = vld [vmem:[%s15] sm:$0x1]
        %v4179 = vsel %vm622, %v4172, 0
        %4181 = vmatprep.subr.mxu0 0.0
        %4182 = vmatpush1.msra.mxu0 %v4173
        %4183 = vmatprep.subr.mxu0 0.0
        %4184 = vmatpush1.msra.mxu0 %v4174
        %4185 = vmatprep.subr.mxu0 0.0
        %4186 = vmatpush1.msra.mxu0 %v4175
        %4187 = vmatprep.subr.mxu0 0.0
        %4188 = vmatpush1.msra.mxu0 %v4176
        %4189 = vmatprep.subr.mxu0 0.0
        %4190 = vmatpush1.msra.mxu0 0.0
        %4191 = vmatprep.subr.mxu0 0.0
        %4192 = vmatpush1.msra.mxu0 0.0
        %4193 = vmatprep.subr.mxu0 0.0
        %4194 = vmatpush1.msra.mxu0 0.0
        %4195 = vmatprep.subr.mxu0 0.0
        %4196 = vmatpush1.msra.mxu0 0.0
        %4197 = vmatprep.subr.mxu0 0.0
        %4198 = vmatpush1.msra.mxu0 0.0
        %4199 = vmatprep.subr.mxu0 0.0
        %4200 = vmatpush1.msra.mxu0 0.0
        %4201 = vmatprep.subr.mxu0 0.0
        %4202 = vmatpush1.msra.mxu0 0.0
        %4203 = vmatprep.subr.mxu0 0.0
        %4204 = vmatpush1.msra.mxu0 0.0
        %4205 = vmatprep.subr.mxu0 0.0
        %4206 = vmatpush1.msra.mxu0 0.0
        %4207 = vmatprep.subr.mxu0 0.0
        %4208 = vmatpush1.msra.mxu0 0.0
        %4209 = vmatprep.subr.mxu0 0.0
        %4210 = vmatpush1.msra.mxu0 0.0
        %4211 = vmatprep.subr.mxu0 0.0
        %4212 = vmatpush1.msra.mxu0 0.0
        %4213 = vmatprep.subr.mxu0 0.0
        %4214 = vmatpush1.msra.mxu0 0.0
        %4215 = vmatprep.subr.mxu0 0.0
        %4216 = vmatpush1.msra.mxu0 0.0
        %4217 = vmatprep.subr.mxu0 0.0
        %4218 = vmatpush1.msra.mxu0 0.0
        %4219 = vmatprep.subr.mxu0 0.0
        %4220 = vmatpush1.msra.mxu0 0.0
        %4221 = vmatprep.subr.mxu0 0.0
        %4222 = vmatpush1.msra.mxu0 0.0
        %4223 = vmatprep.subr.mxu0 0.0
        %4224 = vmatpush1.msra.mxu0 0.0
        %4225 = vmatprep.subr.mxu0 0.0
        %4226 = vmatpush1.msra.mxu0 0.0
        %4227 = vmatprep.subr.mxu0 0.0
        %4228 = vmatpush1.msra.mxu0 0.0
        %4229 = vmatprep.subr.mxu0 0.0
        %4230 = vmatpush1.msra.mxu0 0.0
        %4231 = vmatprep.subr.mxu0 0.0
        %4232 = vmatpush1.msra.mxu0 0.0
        %4233 = vmatprep.subr.mxu0 0.0
        %4234 = vmatpush1.msra.mxu0 0.0
        %4235 = vmatprep.subr.mxu0 0.0
        %4236 = vmatpush1.msra.mxu0 0.0
        %4237 = vmatprep.subr.mxu0 0.0
        %4238 = vmatpush1.msra.mxu0 0.0
        %4239 = vmatprep.subr.mxu0 0.0
        %4240 = vmatpush1.msra.mxu0 0.0
        %4241 = vmatprep.subr.mxu0 0.0
        %4242 = vmatpush1.msra.mxu0 0.0
        %4243 = vmatprep.subr.mxu0 0.0
        %4244 = vmatpush1.msra.mxu0 0.0
        %4245 = vmatprep.mubr.f32.mxu0 0.0
        %4246 = vmatmul.mubr.f32.gmra.mrb[0].mxu0 %v4179
        %v4247 = vpop.f32.mrb[0].mxu0
        %v4248 = vadd.f32 %v4177, %v4247
        %v4249 = vpop.f32.mrb[0].mxu0
        %4250 = vdwg.mxu0
        %v4251 = vtanh.pop %v4248
        %vm4252 = vcmask 57344
        %4253 = vst.msk [vmem:[%s513] sm:$0x1] %vm4252, %v4251
        %s4254 = sand.u32 %s379, 1
        %s4255 = scalar_lea.sflag [#allocation3], %s4254
        %s4256 = sand.u32 %s379, 1
        %s4257 = scalar_lea.vmem [#allocation2], %s4256
        // Predicated region
        $region85: #{retrieval_model_forward.1} parent=83 // pred_check
          %p4258 = pneg %p389
        $region86: #{retrieval_model_forward.1} parent=83 // pred_check_branch
          %4260 = sbr.rel (%p4258) target = $region88
        $region87: #{retrieval_model_forward.1} parent=83 // pred_region
          %s4262 = ssub.s32 16, 16
          %4263 = vsyncadd %s4255, %s4262
          %s4264 = smul.addr %s30, 16
          %s4265 = scalar_lea.hbm %s16, %s4264
          %s4267 = sshll.u32 %s4257, 4
          %s4268 = int_to_ptr.vmem [resolvable:$true] %s4267
          %4270 = dma.vmem_to_hbm [thread:$0]  %s4268, 16, %s4265, %s4255
        $region88: #{retrieval_model_forward.1} parent=83 // pred_fallthru
          _
      $region84: #{retrieval_model_forward.1} parent=5 // pred_fallthru
        _
      %p4271 = scmp.le.s32.totalorder 2, %s25
      // Predicated region
      $region89: #{retrieval_model_forward.1} parent=5 // pred_check
        %p4272 = pneg %p4271
      $region90: #{retrieval_model_forward.1} parent=5 // pred_check_branch
        %4274 = sbr.rel (%p4272) target = $region92
      $region91: #{retrieval_model_forward.1} parent=5 // pred_region
        %s4275 = ssub.s32 %s25, 2
        // Predicated region
        $region93: #{retrieval_model_forward.1} parent=91 // pred_check
          %p4276 = pneg %p395
        $region94: #{retrieval_model_forward.1} parent=91 // pred_check_branch
          %4278 = sbr.rel (%p4276) target = $region96
        $region95: #{retrieval_model_forward.1} parent=91 // pred_region
          %s4279 = sand.u32 %s380, 1
          %s4280 = scalar_lea.sflag [#allocation3], %s4279
          %s4281 = sand.u32 %s380, 1
          %s4282 = scalar_lea.vmem [#allocation2], %s4281
          %4283 = dma.done %s4280, 16
        $region96: #{retrieval_model_forward.1} parent=91 // pred_fallthru
          _
      $region92: #{retrieval_model_forward.1} parent=5 // pred_fallthru
        _
    $region6: #{retrieval_model_forward.1} parent=1 // loop_footer
      %s29 = sadd.s32 1, %s25
    $region7: #{retrieval_model_forward.1} parent=1 // loop_footer_branch
      %24 = sbr.rel target = $region3
    $region8: #{retrieval_model_forward.1} parent=1 // loop_exit
      _
    %4284 = vsyncpa [#allocation3], 1
    %s4285 = scalar_lea.sflag [#allocation3], 1
    %4286 = vsyncpa %s4285, 1

</llo_original>
